<compile_context>
chip_gen: v5e
topology: v5e:2x2
jax: 0.10.0
libtpu: 0.0.40
codegen_flags: <defaults>
</compile_context>

<pallas_src>
import jax
import jax.numpy as jnp
import numpy as np
from jax.experimental import pallas as pl
from jax.experimental.pallas import tpu as pltpu

# Shapes chosen so the flattened pooled size is exactly 1575 (Linear(1575, 32)):
#   x: (B, 1, 72, 54) -> conv: (B, 5, 65, 47) -> pool: (B, 5, 21, 15); 5*21*15 = 1575
H_IN, W_IN = 72, 54
PAD = 1
KC = 10                                             # conv kernel size
C_OUT = 5                                           # conv output channels
HP, WP = H_IN + 2 * PAD, W_IN + 2 * PAD             # padded input: 74, 56
CH, CW = HP - KC + 1, WP - KC + 1                   # conv output:  65, 47
PK, PS = 5, 3                                       # pool kernel / stride
DH = CH - PK + 1                                    # dense H-max extent: 61
PH, PW = (CH - PK) // PS + 1, (CW - PK) // PS + 1   # pooled: 21, 15
FLAT = C_OUT * PH * PW                              # 1575
HID = 32
NOUT = 4
CTOT = C_OUT * CW                                   # 235  channel-stacked lane width
WD = CTOT - (PK - 1)                                # 231  dense W-max width
KWIDE = PH * HID                                    # 672


def net_kernel(x_ref, wb_ref, bias_ref, sht_ref, sww1_ref, mask_ref, etile_ref,
               b1_ref, w2_ref, b2_ref, out_ref, acc_ref, mw_ref):
    """Fused Conv+ReLU+MaxPool+FC1+ReLU+FC2 for one batch tile of BB elements.

    x_ref:    (BB, HP, WP)       padded input planes for this batch tile
    wb_ref:   (KC, WP, CTOT)     banded conv weights, channels stacked on lanes
    bias_ref: (1, CTOT)          conv bias broadcast over channel blocks
    sht_ref:  (PH, DH)           one-hot stride-3 row-select
    sww1_ref: (WD, PH*HID)       stride-3 col-select fused with w1 (scattered rows)
    mask_ref: (PH, PH*HID)       block-diagonal mask (k//HID == ph)
    etile_ref:(PH*HID, HID)      tiled identity (k%HID == n)
    b1_ref:   (1, HID); w2_ref: (HID, NOUT); b2_ref: (1, NOUT)
    out_ref:  (BB, 1, NOUT)
    acc_ref:  (CH, CTOT) f32 scratch; mw_ref: (CH, WD) f32 scratch
    """
    BB = x_ref.shape[0]
    for j in range(BB):                                   # static unroll over tile
        # --- convolution on the MXU: accumulate 10 row-shifted matmuls ---
        acc = jnp.dot(x_ref[j, 0:CH, :], wb_ref[0],
                      preferred_element_type=jnp.float32)
        for kh in range(1, KC):
            acc = acc + jnp.dot(x_ref[j, kh:kh + CH, :], wb_ref[kh],
                                preferred_element_type=jnp.float32)
        # bias (added once) + ReLU
        acc_ref[...] = jnp.maximum(acc + bias_ref[...], 0.0)          # (CH, CTOT)

        # --- separable 5x5 stride-1 dense max: W (lanes) then H (sublanes) ---
        mw = acc_ref[:, 0:WD]
        for s in range(1, PK):
            mw = jnp.maximum(mw, acc_ref[:, s:s + WD])
        mw_ref[...] = mw                                              # (CH, WD)
        mh = mw_ref[0:DH, :]
        for s in range(1, PK):
            mh = jnp.maximum(mh, mw_ref[s:s + DH, :])                 # (DH, WD)

        # --- stride-3 row select (one-hot matmul) ---
        a = jnp.dot(sht_ref[...], mh, preferred_element_type=jnp.float32)   # (PH, WD)

        # --- fused stride-3 col select + flatten + Linear(1575, 32) ---
        # R[ph, ph*HID+n] = sum_{oc,pw} pooled[oc,ph,pw] * w1[oc*PH*PW+ph*PW+pw, n]
        r = jnp.dot(a, sww1_ref[...], preferred_element_type=jnp.float32)   # (PH, KWIDE)
        csum = jnp.sum(r * mask_ref[...], axis=0, keepdims=True)            # (1, KWIDE)
        h = jnp.dot(csum, etile_ref[...], preferred_element_type=jnp.float32)  # (1, HID)
        h = jnp.maximum(h + b1_ref[...], 0.0)

        # --- Linear(32, 4) ---
        out_ref[j] = (jnp.dot(h, w2_ref[...], preferred_element_type=jnp.float32)
                      + b2_ref[...])                                  # (1, NOUT)


def net_forward(x, params, *, batch_tile=None):
    conv_w, conv_b, w1, b1, w2, b2 = params
    B = x.shape[0]

    # Batch tile: amortize per-grid-step overhead for larger batches, but keep
    # >= 2 grid steps when possible so v7x megacore still splits the work.
    if batch_tile is None:
        batch_tile = 1 if B < 4 else min(4, max(1, B // 2))
    BB = int(batch_tile)
    Bp = ((B + BB - 1) // BB) * BB                                # padded batch

    # Drop the singleton channel, apply conv padding (p=1) and batch padding.
    xp = jnp.pad(x[:, 0], ((0, Bp - B), (PAD, PAD), (PAD, PAD)))  # (Bp, HP, WP)

    # Banded conv-weight matrices: wb[kh, c, oc*CW + j] = w[oc, kh, c-j] (0<=c-j<KC).
    diff = jnp.arange(WP)[:, None] - jnp.arange(CW)[None, :]      # (WP, CW)
    valid = (diff >= 0) & (diff < KC)
    gath = conv_w[:, 0][:, :, jnp.clip(diff, 0, KC - 1)]          # (C_OUT, KC, WP, CW)
    band = jnp.where(valid[None, None], gath, 0.0)
    wb = jnp.transpose(band, (1, 2, 0, 3)).reshape(KC, WP, CTOT)  # (KC, WP, CTOT)

    bias_big = jnp.repeat(conv_b, CW)[None, :]                    # (1, CTOT)

    # One-hot stride-3 row selection.
    sht = (jnp.arange(DH)[None, :] == PS * jnp.arange(PH)[:, None]).astype(jnp.float32)

    # Stride-3 column selection fused with w1:
    #   sww1[oc*CW + 3*pw, ph*HID + n] = w1[oc*PH*PW + ph*PW + pw, n], zero elsewhere.
    w1_r = w1.reshape(C_OUT, PH, PW, HID)
    rows = (jnp.arange(C_OUT)[:, None] * CW + PS * jnp.arange(PW)[None, :]).reshape(-1)
    vals = jnp.transpose(w1_r, (0, 2, 1, 3)).reshape(C_OUT * PW, PH, HID)
    sww1 = jnp.zeros((WD, PH, HID), jnp.float32).at[rows].set(vals).reshape(WD, KWIDE)

    # Block-diagonal mask and tiled identity for extracting h[n] = sum_ph R[ph, ph*HID+n].
    mask = (jnp.arange(KWIDE)[None, :] // HID == jnp.arange(PH)[:, None]).astype(jnp.float32)
    etile = jnp.tile(jnp.eye(HID, dtype=jnp.float32), (PH, 1))    # (KWIDE, HID)

    # Advisory cost hint for the XLA scheduler around the custom call.
    flops_per = (2 * KC * CH * WP * CTOT + 2 * PH * DH * WD + 2 * PH * WD * KWIDE
                 + 2 * KWIDE * HID + 2 * HID * NOUT)
    weight_bytes = 4 * (KC * WP * CTOT + CTOT + PH * DH + WD * KWIDE + PH * KWIDE
                        + KWIDE * HID + HID + HID * NOUT + NOUT)
    cost = pl.CostEstimate(flops=Bp * flops_per, transcendentals=0,
                           bytes_accessed=Bp * (HP * WP + NOUT) * 4 + weight_bytes)

    out = pl.pallas_call(
        net_kernel,
        out_shape=jax.ShapeDtypeStruct((Bp, 1, NOUT), jnp.float32),
        grid=(Bp // BB,),
        in_specs=[
            pl.BlockSpec((BB, HP, WP), lambda b: (b, 0, 0)),      # per-tile input planes
            pl.BlockSpec((KC, WP, CTOT), lambda b: (0, 0, 0)),    # resident conv weights
            pl.BlockSpec((1, CTOT), lambda b: (0, 0)),
            pl.BlockSpec((PH, DH), lambda b: (0, 0)),
            pl.BlockSpec((WD, KWIDE), lambda b: (0, 0)),          # resident fused w1
            pl.BlockSpec((PH, KWIDE), lambda b: (0, 0)),
            pl.BlockSpec((KWIDE, HID), lambda b: (0, 0)),
            pl.BlockSpec((1, HID), lambda b: (0, 0)),
            pl.BlockSpec((HID, NOUT), lambda b: (0, 0)),
            pl.BlockSpec((1, NOUT), lambda b: (0, 0)),
        ],
        out_specs=pl.BlockSpec((BB, 1, NOUT), lambda b: (b, 0, 0)),
        scratch_shapes=[pltpu.VMEM((CH, CTOT), jnp.float32),
                        pltpu.VMEM((CH, WD), jnp.float32)],
        compiler_params=pltpu.CompilerParams(dimension_semantics=("parallel",)),
        cost_estimate=cost,
    )(xp, wb, bias_big, sht, sww1, mask, etile,
      b1.reshape(1, HID), w2, b2.reshape(1, NOUT))
    return out.reshape(Bp, NOUT)[:B]


def ref_forward(x, conv_w, conv_b, w1, b1, w2, b2):
    """Pure-JAX reference matching the PyTorch forward."""
    y = jax.lax.conv_general_dilated(
        x, conv_w, window_strides=(1, 1), padding=[(PAD, PAD), (PAD, PAD)],
        dimension_numbers=("NCHW", "OIHW", "NCHW"),
        precision=jax.lax.Precision.HIGHEST)
    y = jnp.maximum(y + conv_b[None, :, None, None], 0.0)
    y = jax.lax.reduce_window(y, -jnp.inf, jax.lax.max,
                              (1, 1, PK, PK), (1, 1, PS, PS), "VALID")
    y = y.reshape(x.shape[0], FLAT)
    y = jnp.maximum(jnp.dot(y, w1, precision="highest") + b1, 0.0)
    return jnp.dot(y, w2, precision="highest") + b2


if __name__ == "__main__":
    key = jax.random.PRNGKey(0)
    kx, kw0, kb0, kw1, kb1, kw2, kb2, kx2 = jax.random.split(key, 8)

    x = jax.random.normal(kx, (2, 1, H_IN, W_IN), jnp.float32)

    # Deterministic synthetic parameters (shapes from Net.__init__).
    conv_w = jax.random.normal(kw0, (C_OUT, 1, KC, KC), jnp.float32) * 0.05
    conv_b = jax.random.normal(kb0, (C_OUT,), jnp.float32) * 0.05
    w1 = jax.random.normal(kw1, (FLAT, HID), jnp.float32) * (FLAT ** -0.5)
    b1 = jax.random.normal(kb1, (HID,), jnp.float32) * 0.05
    w2 = jax.random.normal(kw2, (HID, NOUT), jnp.float32) * (HID ** -0.5)
    b2 = jax.random.normal(kb2, (NOUT,), jnp.float32) * 0.05
    params = (conv_w, conv_b, w1, b1, w2, b2)

    fwd = jax.jit(net_forward)

    # Small batch (batch_tile == 1, one element per grid step).
    out = jax.block_until_ready(fwd(x, params))
    assert out.shape == (2, NOUT), out.shape
    ref = jax.block_until_ready(ref_forward(x, *params))
    np.testing.assert_allclose(np.asarray(out), np.asarray(ref), rtol=5e-2, atol=5e-2)

    # Larger batch exercises the multi-element-per-step path (batch_tile > 1,
    # padded batch, amortized per-step overhead).
    x5 = jax.random.normal(kx2, (5, 1, H_IN, W_IN), jnp.float32)
    out5 = jax.block_until_ready(fwd(x5, params))
    ref5 = jax.block_until_ready(ref_forward(x5, *params))
    np.testing.assert_allclose(np.asarray(out5), np.asarray(ref5), rtol=5e-2, atol=5e-2)

    print("KERNEL_OK")
</pallas_src>

<mosaic_0001>
module attributes {stable_mosaic.version = 11 : i64} {
  func.func @net_kernel(%arg0: i32, %arg1: memref<1x74x56xf32, #tpu.memory_space<vmem>>, %arg2: memref<10x56x235xf32, #tpu.memory_space<vmem>>, %arg3: memref<1x235xf32, #tpu.memory_space<vmem>>, %arg4: memref<21x61xf32, #tpu.memory_space<vmem>>, %arg5: memref<231x672xf32, #tpu.memory_space<vmem>>, %arg6: memref<21x672xf32, #tpu.memory_space<vmem>>, %arg7: memref<672x32xf32, #tpu.memory_space<vmem>>, %arg8: memref<1x32xf32, #tpu.memory_space<vmem>>, %arg9: memref<32x4xf32, #tpu.memory_space<vmem>>, %arg10: memref<1x4xf32, #tpu.memory_space<vmem>>, %arg11: memref<1x1x4xf32, #tpu.memory_space<vmem>>, %arg12: memref<65x235xf32, #tpu.memory_space<vmem>>, %arg13: memref<65x231xf32, #tpu.memory_space<vmem>>) attributes {dimension_semantics = [#tpu.dimension_semantics<parallel>], iteration_bounds = array<i64: 2>, scalar_prefetch = 0 : i64, scratch_operands = 2 : i64, tpu.core_type = #tpu.core_type<tc>, window_params = [{transform_indices = @transform_0, window_bounds = array<i64: 1, 74, 56>}, {pipeline_mode = #tpu.pipeline_mode<synchronous>, transform_indices = @transform_1, window_bounds = array<i64: 10, 56, 235>}, {pipeline_mode = #tpu.pipeline_mode<synchronous>, transform_indices = @transform_2, window_bounds = array<i64: 1, 235>}, {pipeline_mode = #tpu.pipeline_mode<synchronous>, transform_indices = @transform_3, window_bounds = array<i64: 21, 61>}, {pipeline_mode = #tpu.pipeline_mode<synchronous>, transform_indices = @transform_4, window_bounds = array<i64: 231, 672>}, {pipeline_mode = #tpu.pipeline_mode<synchronous>, transform_indices = @transform_5, window_bounds = array<i64: 21, 672>}, {pipeline_mode = #tpu.pipeline_mode<synchronous>, transform_indices = @transform_6, window_bounds = array<i64: 672, 32>}, {pipeline_mode = #tpu.pipeline_mode<synchronous>, transform_indices = @transform_7, window_bounds = array<i64: 1, 32>}, {pipeline_mode = #tpu.pipeline_mode<synchronous>, transform_indices = @transform_8, window_bounds = array<i64: 32, 4>}, {pipeline_mode = #tpu.pipeline_mode<synchronous>, transform_indices = @transform_9, window_bounds = array<i64: 1, 4>}, {transform_indices = @transform_10, window_bounds = array<i64: 1, 1, 4>}]} {
    %c0 = arith.constant 0 : index
    %c0_0 = arith.constant 0 : index
    %c0_1 = arith.constant 0 : index
    %0 = vector.load %arg1[%c0, %c0_0, %c0_1] : memref<1x74x56xf32, #tpu.memory_space<vmem>>, vector<1x65x56xf32>
    %1 = vector.shape_cast %0 : vector<1x65x56xf32> to vector<65x56xf32>
    %c0_2 = arith.constant 0 : index
    %c0_3 = arith.constant 0 : index
    %c0_4 = arith.constant 0 : index
    %2 = vector.load %arg2[%c0_2, %c0_3, %c0_4] : memref<10x56x235xf32, #tpu.memory_space<vmem>>, vector<1x56x235xf32>
    %3 = vector.shape_cast %2 : vector<1x56x235xf32> to vector<56x235xf32>
    %cst = arith.constant dense<0.000000e+00> : vector<65x235xf32>
    %4 = tpu.matmul %1, %3, %cst {dimension_numbers = #tpu.dot_dimension_numbers<[1], [0], [0], [1], [0, 0, 1, 1], [], []>} : vector<65x56xf32>, vector<56x235xf32>, vector<65x235xf32> -> vector<65x235xf32>
    %c0_5 = arith.constant 0 : index
    %c1 = arith.constant 1 : index
    %c0_6 = arith.constant 0 : index
    %5 = vector.load %arg1[%c0_5, %c1, %c0_6] : memref<1x74x56xf32, #tpu.memory_space<vmem>>, vector<1x65x56xf32>
    %6 = vector.shape_cast %5 : vector<1x65x56xf32> to vector<65x56xf32>
    %c1_7 = arith.constant 1 : index
    %c0_8 = arith.constant 0 : index
    %c0_9 = arith.constant 0 : index
    %7 = vector.load %arg2[%c1_7, %c0_8, %c0_9] : memref<10x56x235xf32, #tpu.memory_space<vmem>>, vector<1x56x235xf32>
    %8 = vector.shape_cast %7 : vector<1x56x235xf32> to vector<56x235xf32>
    %cst_10 = arith.constant dense<0.000000e+00> : vector<65x235xf32>
    %9 = tpu.matmul %6, %8, %cst_10 {dimension_numbers = #tpu.dot_dimension_numbers<[1], [0], [0], [1], [0, 0, 1, 1], [], []>} : vector<65x56xf32>, vector<56x235xf32>, vector<65x235xf32> -> vector<65x235xf32>
    %10 = arith.addf %4, %9 : vector<65x235xf32>
    %c0_11 = arith.constant 0 : index
    %c2 = arith.constant 2 : index
    %c0_12 = arith.constant 0 : index
    %11 = vector.load %arg1[%c0_11, %c2, %c0_12] : memref<1x74x56xf32, #tpu.memory_space<vmem>>, vector<1x65x56xf32>
    %12 = vector.shape_cast %11 : vector<1x65x56xf32> to vector<65x56xf32>
    %c2_13 = arith.constant 2 : index
    %c0_14 = arith.constant 0 : index
    %c0_15 = arith.constant 0 : index
    %13 = vector.load %arg2[%c2_13, %c0_14, %c0_15] : memref<10x56x235xf32, #tpu.memory_space<vmem>>, vector<1x56x235xf32>
    %14 = vector.shape_cast %13 : vector<1x56x235xf32> to vector<56x235xf32>
    %cst_16 = arith.constant dense<0.000000e+00> : vector<65x235xf32>
    %15 = tpu.matmul %12, %14, %cst_16 {dimension_numbers = #tpu.dot_dimension_numbers<[1], [0], [0], [1], [0, 0, 1, 1], [], []>} : vector<65x56xf32>, vector<56x235xf32>, vector<65x235xf32> -> vector<65x235xf32>
    %16 = arith.addf %10, %15 : vector<65x235xf32>
    %c0_17 = arith.constant 0 : index
    %c3 = arith.constant 3 : index
    %c0_18 = arith.constant 0 : index
    %17 = vector.load %arg1[%c0_17, %c3, %c0_18] : memref<1x74x56xf32, #tpu.memory_space<vmem>>, vector<1x65x56xf32>
    %18 = vector.shape_cast %17 : vector<1x65x56xf32> to vector<65x56xf32>
    %c3_19 = arith.constant 3 : index
    %c0_20 = arith.constant 0 : index
    %c0_21 = arith.constant 0 : index
    %19 = vector.load %arg2[%c3_19, %c0_20, %c0_21] : memref<10x56x235xf32, #tpu.memory_space<vmem>>, vector<1x56x235xf32>
    %20 = vector.shape_cast %19 : vector<1x56x235xf32> to vector<56x235xf32>
    %cst_22 = arith.constant dense<0.000000e+00> : vector<65x235xf32>
    %21 = tpu.matmul %18, %20, %cst_22 {dimension_numbers = #tpu.dot_dimension_numbers<[1], [0], [0], [1], [0, 0, 1, 1], [], []>} : vector<65x56xf32>, vector<56x235xf32>, vector<65x235xf32> -> vector<65x235xf32>
    %22 = arith.addf %16, %21 : vector<65x235xf32>
    %c0_23 = arith.constant 0 : index
    %c4 = arith.constant 4 : index
    %c0_24 = arith.constant 0 : index
    %23 = vector.load %arg1[%c0_23, %c4, %c0_24] : memref<1x74x56xf32, #tpu.memory_space<vmem>>, vector<1x65x56xf32>
    %24 = vector.shape_cast %23 : vector<1x65x56xf32> to vector<65x56xf32>
    %c4_25 = arith.constant 4 : index
    %c0_26 = arith.constant 0 : index
    %c0_27 = arith.constant 0 : index
    %25 = vector.load %arg2[%c4_25, %c0_26, %c0_27] : memref<10x56x235xf32, #tpu.memory_space<vmem>>, vector<1x56x235xf32>
    %26 = vector.shape_cast %25 : vector<1x56x235xf32> to vector<56x235xf32>
    %cst_28 = arith.constant dense<0.000000e+00> : vector<65x235xf32>
    %27 = tpu.matmul %24, %26, %cst_28 {dimension_numbers = #tpu.dot_dimension_numbers<[1], [0], [0], [1], [0, 0, 1, 1], [], []>} : vector<65x56xf32>, vector<56x235xf32>, vector<65x235xf32> -> vector<65x235xf32>
    %28 = arith.addf %22, %27 : vector<65x235xf32>
    %c0_29 = arith.constant 0 : index
    %c5 = arith.constant 5 : index
    %c0_30 = arith.constant 0 : index
    %29 = vector.load %arg1[%c0_29, %c5, %c0_30] : memref<1x74x56xf32, #tpu.memory_space<vmem>>, vector<1x65x56xf32>
    %30 = vector.shape_cast %29 : vector<1x65x56xf32> to vector<65x56xf32>
    %c5_31 = arith.constant 5 : index
    %c0_32 = arith.constant 0 : index
    %c0_33 = arith.constant 0 : index
    %31 = vector.load %arg2[%c5_31, %c0_32, %c0_33] : memref<10x56x235xf32, #tpu.memory_space<vmem>>, vector<1x56x235xf32>
    %32 = vector.shape_cast %31 : vector<1x56x235xf32> to vector<56x235xf32>
    %cst_34 = arith.constant dense<0.000000e+00> : vector<65x235xf32>
    %33 = tpu.matmul %30, %32, %cst_34 {dimension_numbers = #tpu.dot_dimension_numbers<[1], [0], [0], [1], [0, 0, 1, 1], [], []>} : vector<65x56xf32>, vector<56x235xf32>, vector<65x235xf32> -> vector<65x235xf32>
    %34 = arith.addf %28, %33 : vector<65x235xf32>
    %c0_35 = arith.constant 0 : index
    %c6 = arith.constant 6 : index
    %c0_36 = arith.constant 0 : index
    %35 = vector.load %arg1[%c0_35, %c6, %c0_36] : memref<1x74x56xf32, #tpu.memory_space<vmem>>, vector<1x65x56xf32>
    %36 = vector.shape_cast %35 : vector<1x65x56xf32> to vector<65x56xf32>
    %c6_37 = arith.constant 6 : index
    %c0_38 = arith.constant 0 : index
    %c0_39 = arith.constant 0 : index
    %37 = vector.load %arg2[%c6_37, %c0_38, %c0_39] : memref<10x56x235xf32, #tpu.memory_space<vmem>>, vector<1x56x235xf32>
    %38 = vector.shape_cast %37 : vector<1x56x235xf32> to vector<56x235xf32>
    %cst_40 = arith.constant dense<0.000000e+00> : vector<65x235xf32>
    %39 = tpu.matmul %36, %38, %cst_40 {dimension_numbers = #tpu.dot_dimension_numbers<[1], [0], [0], [1], [0, 0, 1, 1], [], []>} : vector<65x56xf32>, vector<56x235xf32>, vector<65x235xf32> -> vector<65x235xf32>
    %40 = arith.addf %34, %39 : vector<65x235xf32>
    %c0_41 = arith.constant 0 : index
    %c7 = arith.constant 7 : index
    %c0_42 = arith.constant 0 : index
    %41 = vector.load %arg1[%c0_41, %c7, %c0_42] : memref<1x74x56xf32, #tpu.memory_space<vmem>>, vector<1x65x56xf32>
    %42 = vector.shape_cast %41 : vector<1x65x56xf32> to vector<65x56xf32>
    %c7_43 = arith.constant 7 : index
    %c0_44 = arith.constant 0 : index
    %c0_45 = arith.constant 0 : index
    %43 = vector.load %arg2[%c7_43, %c0_44, %c0_45] : memref<10x56x235xf32, #tpu.memory_space<vmem>>, vector<1x56x235xf32>
    %44 = vector.shape_cast %43 : vector<1x56x235xf32> to vector<56x235xf32>
    %cst_46 = arith.constant dense<0.000000e+00> : vector<65x235xf32>
    %45 = tpu.matmul %42, %44, %cst_46 {dimension_numbers = #tpu.dot_dimension_numbers<[1], [0], [0], [1], [0, 0, 1, 1], [], []>} : vector<65x56xf32>, vector<56x235xf32>, vector<65x235xf32> -> vector<65x235xf32>
    %46 = arith.addf %40, %45 : vector<65x235xf32>
    %c0_47 = arith.constant 0 : index
    %c8 = arith.constant 8 : index
    %c0_48 = arith.constant 0 : index
    %47 = vector.load %arg1[%c0_47, %c8, %c0_48] : memref<1x74x56xf32, #tpu.memory_space<vmem>>, vector<1x65x56xf32>
    %48 = vector.shape_cast %47 : vector<1x65x56xf32> to vector<65x56xf32>
    %c8_49 = arith.constant 8 : index
    %c0_50 = arith.constant 0 : index
    %c0_51 = arith.constant 0 : index
    %49 = vector.load %arg2[%c8_49, %c0_50, %c0_51] : memref<10x56x235xf32, #tpu.memory_space<vmem>>, vector<1x56x235xf32>
    %50 = vector.shape_cast %49 : vector<1x56x235xf32> to vector<56x235xf32>
    %cst_52 = arith.constant dense<0.000000e+00> : vector<65x235xf32>
    %51 = tpu.matmul %48, %50, %cst_52 {dimension_numbers = #tpu.dot_dimension_numbers<[1], [0], [0], [1], [0, 0, 1, 1], [], []>} : vector<65x56xf32>, vector<56x235xf32>, vector<65x235xf32> -> vector<65x235xf32>
    %52 = arith.addf %46, %51 : vector<65x235xf32>
    %c0_53 = arith.constant 0 : index
    %c9 = arith.constant 9 : index
    %c0_54 = arith.constant 0 : index
    %53 = vector.load %arg1[%c0_53, %c9, %c0_54] : memref<1x74x56xf32, #tpu.memory_space<vmem>>, vector<1x65x56xf32>
    %54 = vector.shape_cast %53 : vector<1x65x56xf32> to vector<65x56xf32>
    %c9_55 = arith.constant 9 : index
    %c0_56 = arith.constant 0 : index
    %c0_57 = arith.constant 0 : index
    %55 = vector.load %arg2[%c9_55, %c0_56, %c0_57] : memref<10x56x235xf32, #tpu.memory_space<vmem>>, vector<1x56x235xf32>
    %56 = vector.shape_cast %55 : vector<1x56x235xf32> to vector<56x235xf32>
    %cst_58 = arith.constant dense<0.000000e+00> : vector<65x235xf32>
    %57 = tpu.matmul %54, %56, %cst_58 {dimension_numbers = #tpu.dot_dimension_numbers<[1], [0], [0], [1], [0, 0, 1, 1], [], []>} : vector<65x56xf32>, vector<56x235xf32>, vector<65x235xf32> -> vector<65x235xf32>
    %58 = arith.addf %52, %57 : vector<65x235xf32>
    %c0_59 = arith.constant 0 : index
    %c0_60 = arith.constant 0 : index
    %59 = vector.load %arg3[%c0_59, %c0_60] : memref<1x235xf32, #tpu.memory_space<vmem>>, vector<1x235xf32>
    %60 = vector.broadcast %59 : vector<1x235xf32> to vector<65x235xf32>
    %61 = arith.addf %58, %60 : vector<65x235xf32>
    %cst_61 = arith.constant 0.000000e+00 : f32
    %62 = vector.broadcast %cst_61 : f32 to vector<65x235xf32>
    %63 = arith.maximumf %61, %62 : vector<65x235xf32>
    %c0_62 = arith.constant 0 : index
    %c0_63 = arith.constant 0 : index
    %64 = vector.load %arg12[%c0_62, %c0_63] : memref<65x235xf32, #tpu.memory_space<vmem>>, vector<65x235xf32>
    tpu.vector_store %arg12[%c0_62, %c0_63], %63 {strides = array<i32>} : memref<65x235xf32, #tpu.memory_space<vmem>>, vector<65x235xf32>,
    %c0_64 = arith.constant 0 : index
    %c0_65 = arith.constant 0 : index
    %65 = vector.load %arg12[%c0_64, %c0_65] : memref<65x235xf32, #tpu.memory_space<vmem>>, vector<65x231xf32>
    %c0_66 = arith.constant 0 : index
    %c1_67 = arith.constant 1 : index
    %66 = vector.load %arg12[%c0_66, %c1_67] : memref<65x235xf32, #tpu.memory_space<vmem>>, vector<65x231xf32>
    %67 = arith.maximumf %65, %66 : vector<65x231xf32>
    %c0_68 = arith.constant 0 : index
    %c2_69 = arith.constant 2 : index
    %68 = vector.load %arg12[%c0_68, %c2_69] : memref<65x235xf32, #tpu.memory_space<vmem>>, vector<65x231xf32>
    %69 = arith.maximumf %67, %68 : vector<65x231xf32>
    %c0_70 = arith.constant 0 : index
    %c3_71 = arith.constant 3 : index
    %70 = vector.load %arg12[%c0_70, %c3_71] : memref<65x235xf32, #tpu.memory_space<vmem>>, vector<65x231xf32>
    %71 = arith.maximumf %69, %70 : vector<65x231xf32>
    %c0_72 = arith.constant 0 : index
    %c4_73 = arith.constant 4 : index
    %72 = vector.load %arg12[%c0_72, %c4_73] : memref<65x235xf32, #tpu.memory_space<vmem>>, vector<65x231xf32>
    %73 = arith.maximumf %71, %72 : vector<65x231xf32>
    %c0_74 = arith.constant 0 : index
    %c0_75 = arith.constant 0 : index
    %74 = vector.load %arg13[%c0_74, %c0_75] : memref<65x231xf32, #tpu.memory_space<vmem>>, vector<65x231xf32>
    tpu.vector_store %arg13[%c0_74, %c0_75], %73 {strides = array<i32>} : memref<65x231xf32, #tpu.memory_space<vmem>>, vector<65x231xf32>,
    %c0_76 = arith.constant 0 : index
    %c0_77 = arith.constant 0 : index
    %75 = vector.load %arg13[%c0_76, %c0_77] : memref<65x231xf32, #tpu.memory_space<vmem>>, vector<61x231xf32>
    %c1_78 = arith.constant 1 : index
    %c0_79 = arith.constant 0 : index
    %76 = vector.load %arg13[%c1_78, %c0_79] : memref<65x231xf32, #tpu.memory_space<vmem>>, vector<61x231xf32>
    %77 = arith.maximumf %75, %76 : vector<61x231xf32>
    %c2_80 = arith.constant 2 : index
    %c0_81 = arith.constant 0 : index
    %78 = vector.load %arg13[%c2_80, %c0_81] : memref<65x231xf32, #tpu.memory_space<vmem>>, vector<61x231xf32>
    %79 = arith.maximumf %77, %78 : vector<61x231xf32>
    %c3_82 = arith.constant 3 : index
    %c0_83 = arith.constant 0 : index
    %80 = vector.load %arg13[%c3_82, %c0_83] : memref<65x231xf32, #tpu.memory_space<vmem>>, vector<61x231xf32>
    %81 = arith.maximumf %79, %80 : vector<61x231xf32>
    %c4_84 = arith.constant 4 : index
    %c0_85 = arith.constant 0 : index
    %82 = vector.load %arg13[%c4_84, %c0_85] : memref<65x231xf32, #tpu.memory_space<vmem>>, vector<61x231xf32>
    %83 = arith.maximumf %81, %82 : vector<61x231xf32>
    %c0_86 = arith.constant 0 : index
    %c0_87 = arith.constant 0 : index
    %84 = vector.load %arg4[%c0_86, %c0_87] : memref<21x61xf32, #tpu.memory_space<vmem>>, vector<21x61xf32>
    %cst_88 = arith.constant dense<0.000000e+00> : vector<21x231xf32>
    %85 = tpu.matmul %84, %83, %cst_88 {dimension_numbers = #tpu.dot_dimension_numbers<[1], [0], [0], [1], [0, 0, 1, 1], [], []>} : vector<21x61xf32>, vector<61x231xf32>, vector<21x231xf32> -> vector<21x231xf32>
    %c0_89 = arith.constant 0 : index
    %c0_90 = arith.constant 0 : index
    %86 = vector.load %arg5[%c0_89, %c0_90] : memref<231x672xf32, #tpu.memory_space<vmem>>, vector<231x672xf32>
    %cst_91 = arith.constant dense<0.000000e+00> : vector<21x672xf32>
    %87 = tpu.matmul %85, %86, %cst_91 {dimension_numbers = #tpu.dot_dimension_numbers<[1], [0], [0], [1], [0, 0, 1, 1], [], []>} : vector<21x231xf32>, vector<231x672xf32>, vector<21x672xf32> -> vector<21x672xf32>
    %c0_92 = arith.constant 0 : index
    %c0_93 = arith.constant 0 : index
    %88 = vector.load %arg6[%c0_92, %c0_93] : memref<21x672xf32, #tpu.memory_space<vmem>>, vector<21x672xf32>
    %89 = arith.mulf %87, %88 : vector<21x672xf32>
    %cst_94 = arith.constant dense<0.000000e+00> : vector<672xf32>
    %90 = vector.multi_reduction <add>, %89, %cst_94 [0] : vector<21x672xf32> to vector<672xf32>
    %91 = vector.shape_cast %90 : vector<672xf32> to vector<1x672xf32>
    %c0_95 = arith.constant 0 : index
    %c0_96 = arith.constant 0 : index
    %92 = vector.load %arg7[%c0_95, %c0_96] : memref<672x32xf32, #tpu.memory_space<vmem>>, vector<672x32xf32>
    %cst_97 = arith.constant dense<0.000000e+00> : vector<1x32xf32>
    %93 = tpu.matmul %91, %92, %cst_97 {dimension_numbers = #tpu.dot_dimension_numbers<[1], [0], [0], [1], [0, 0, 1, 1], [], []>} : vector<1x672xf32>, vector<672x32xf32>, vector<1x32xf32> -> vector<1x32xf32>
    %c0_98 = arith.constant 0 : index
    %c0_99 = arith.constant 0 : index
    %94 = vector.load %arg8[%c0_98, %c0_99] : memref<1x32xf32, #tpu.memory_space<vmem>>, vector<1x32xf32>
    %95 = arith.addf %93, %94 : vector<1x32xf32>
    %cst_100 = arith.constant 0.000000e+00 : f32
    %96 = vector.broadcast %cst_100 : f32 to vector<1x32xf32>
    %97 = arith.maximumf %95, %96 : vector<1x32xf32>
    %c0_101 = arith.constant 0 : index
    %c0_102 = arith.constant 0 : index
    %98 = vector.load %arg9[%c0_101, %c0_102] : memref<32x4xf32, #tpu.memory_space<vmem>>, vector<32x4xf32>
    %cst_103 = arith.constant dense<0.000000e+00> : vector<1x4xf32>
    %99 = tpu.matmul %97, %98, %cst_103 {dimension_numbers = #tpu.dot_dimension_numbers<[1], [0], [0], [1], [0, 0, 1, 1], [], []>} : vector<1x32xf32>, vector<32x4xf32>, vector<1x4xf32> -> vector<1x4xf32>
    %c0_104 = arith.constant 0 : index
    %c0_105 = arith.constant 0 : index
    %100 = vector.load %arg10[%c0_104, %c0_105] : memref<1x4xf32, #tpu.memory_space<vmem>>, vector<1x4xf32>
    %101 = arith.addf %99, %100 : vector<1x4xf32>
    %c0_106 = arith.constant 0 : index
    %c0_107 = arith.constant 0 : index
    %c0_108 = arith.constant 0 : index
    %102 = vector.load %arg11[%c0_106, %c0_107, %c0_108] : memref<1x1x4xf32, #tpu.memory_space<vmem>>, vector<1x1x4xf32>
    %103 = vector.shape_cast %102 : vector<1x1x4xf32> to vector<1x4xf32>
    %104 = vector.shape_cast %101 : vector<1x4xf32> to vector<1x1x4xf32>
    tpu.vector_store %arg11[%c0_106, %c0_107, %c0_108], %104 {strides = array<i32>} : memref<1x1x4xf32, #tpu.memory_space<vmem>>, vector<1x1x4xf32>,
    return
  }
  func.func @transform_0(%arg0: i32) -> (i32, i32, i32) {
    %c0_i32 = arith.constant 0 : i32
    %c0_i32_0 = arith.constant 0 : i32
    %c0_i32_1 = arith.constant 0 : i32
    return %arg0, %c0_i32, %c0_i32_0 : i32, i32, i32
  }
  func.func @transform_1(%arg0: i32) -> (i32, i32, i32) {
    %c0_i32 = arith.constant 0 : i32
    %c0_i32_0 = arith.constant 0 : i32
    %c0_i32_1 = arith.constant 0 : i32
    %c0_i32_2 = arith.constant 0 : i32
    return %c0_i32, %c0_i32_0, %c0_i32_1 : i32, i32, i32
  }
  func.func @transform_2(%arg0: i32) -> (i32, i32) {
    %c0_i32 = arith.constant 0 : i32
    %c0_i32_0 = arith.constant 0 : i32
    %c0_i32_1 = arith.constant 0 : i32
    return %c0_i32, %c0_i32_0 : i32, i32
  }
  func.func @transform_3(%arg0: i32) -> (i32, i32) {
    %c0_i32 = arith.constant 0 : i32
    %c0_i32_0 = arith.constant 0 : i32
    %c0_i32_1 = arith.constant 0 : i32
    return %c0_i32, %c0_i32_0 : i32, i32
  }
  func.func @transform_4(%arg0: i32) -> (i32, i32) {
    %c0_i32 = arith.constant 0 : i32
    %c0_i32_0 = arith.constant 0 : i32
    %c0_i32_1 = arith.constant 0 : i32
    return %c0_i32, %c0_i32_0 : i32, i32
  }
  func.func @transform_5(%arg0: i32) -> (i32, i32) {
    %c0_i32 = arith.constant 0 : i32
    %c0_i32_0 = arith.constant 0 : i32
    %c0_i32_1 = arith.constant 0 : i32
    return %c0_i32, %c0_i32_0 : i32, i32
  }
  func.func @transform_6(%arg0: i32) -> (i32, i32) {
    %c0_i32 = arith.constant 0 : i32
    %c0_i32_0 = arith.constant 0 : i32
    %c0_i32_1 = arith.constant 0 : i32
    return %c0_i32, %c0_i32_0 : i32, i32
  }
  func.func @transform_7(%arg0: i32) -> (i32, i32) {
    %c0_i32 = arith.constant 0 : i32
    %c0_i32_0 = arith.constant 0 : i32
    %c0_i32_1 = arith.constant 0 : i32
    return %c0_i32, %c0_i32_0 : i32, i32
  }
  func.func @transform_8(%arg0: i32) -> (i32, i32) {
    %c0_i32 = arith.constant 0 : i32
    %c0_i32_0 = arith.constant 0 : i32
    %c0_i32_1 = arith.constant 0 : i32
    return %c0_i32, %c0_i32_0 : i32, i32
  }
  func.func @transform_9(%arg0: i32) -> (i32, i32) {
    %c0_i32 = arith.constant 0 : i32
    %c0_i32_0 = arith.constant 0 : i32
    %c0_i32_1 = arith.constant 0 : i32
    return %c0_i32, %c0_i32_0 : i32, i32
  }
  func.func @transform_10(%arg0: i32) -> (i32, i32, i32) {
    %c0_i32 = arith.constant 0 : i32
    %c0_i32_0 = arith.constant 0 : i32
    %c0_i32_1 = arith.constant 0 : i32
    return %arg0, %c0_i32, %c0_i32_0 : i32, i32, i32
  }
}

</mosaic_0001>

<llo_original>
// kernel: net_forward.1
$region0: #{net_forward.1}
  #allocation0 [shape = 'u32[]', space=smem, size = 0x4, offset = 0x4, fixed_abs, tag = 'smem constant byte address 0x4 - core index']
  #allocation1 [shape = 'u32[72,128]{1,0:T(1,128)}', space=vmem, size = 0x9000, scoped, tag = 'internal scratch']
  #allocation2 [shape = 'f32[65,235]{1,0:T(8,128)}', space=vmem, size = 0x12000, scoped, tag = 'scratch operand']
  #allocation3 [shape = 'f32[65,231]{1,0:T(8,128)}', space=vmem, size = 0x12000, scoped, tag = 'scratch operand']
  %s0 = inlined_call_operand.vmem [shape: f32[2,74,56], index: 0, kind: input, shape index: {}]
  %s1 = inlined_call_operand.vmem [shape: f32[10,56,235], index: 1, kind: input, shape index: {}]
  %s2 = inlined_call_operand.vmem [shape: f32[1,235], index: 2, kind: input, shape index: {}]
  %s3 = inlined_call_operand.vmem [shape: f32[21,61], index: 3, kind: input, shape index: {}]
  %s4 = inlined_call_operand.vmem [shape: f32[231,672], index: 4, kind: input, shape index: {}]
  %s5 = inlined_call_operand.vmem [shape: f32[21,672], index: 5, kind: input, shape index: {}]
  %s6 = inlined_call_operand.vmem [shape: f32[672,32], index: 6, kind: input, shape index: {}]
  %s7 = inlined_call_operand.vmem [shape: f32[1,32], index: 7, kind: input, shape index: {}]
  %s8 = inlined_call_operand.vmem [shape: f32[32,4], index: 8, kind: input, shape index: {}]
  %s9 = inlined_call_operand.vmem [shape: f32[1,4], index: 9, kind: input, shape index: {}]
  %s10 = inlined_call_operand.hbm [shape: f32[2,1,4], index: 10, kind: output, shape index: {}]
  %s11 = sld [smem:[#allocation0]]
  $region73: #{net_forward.1} parent=0
    _
  %s13 = ssub.s32 1, %s11
  %s14 = scalar_select 0, %s13, %s11
  $region1: #{net_forward.1} parent=0
    #allocation4 [shape = 'u8[1024]{0}', space=vmem, size = 0x400, scoped, tag = 'output window, operand 0']
    #allocation5 [shape = 's32[2]{0}', space=sflag, size = 0x8, scoped, tag = 'scoped memory for net_forward.1']
    %15 = vsyncpa [#allocation5], 0
    %s16 = scalar_lea.sflag [#allocation5], 1
    %17 = vsyncpa %s16, 0
    loop: start=0, step=1, limit=4
    $region2: #{net_forward.1} parent=1 // loop_pre_header
      _
    $region3: #{net_forward.1} parent=1 // loop_header
      %s19 = sphi 0, %s23
      %p20 = scmp.ge.s32.totalorder %s19, 4
      %s29 = sphi 0, %s31
      %s32 = sphi 0, %s29
      %s33 = sphi 0, %s32
      %s49 = sphi 0, %s33
      %s53 = sphi 0, %s53
      %s55 = sphi 0, %s53
      %s56 = sphi 0, %s55
      %s70 = sphi 0, %s56
      %s74 = sphi 0, %s74
      %s76 = sphi 0, %s74
      %s77 = sphi 0, %s76
      %s91 = sphi 0, %s77
      %s95 = sphi 0, %s95
      %s97 = sphi 0, %s95
      %s98 = sphi 0, %s97
      %s112 = sphi 0, %s98
      %s116 = sphi 0, %s116
      %s118 = sphi 0, %s116
      %s119 = sphi 0, %s118
      %s133 = sphi 0, %s119
      %s137 = sphi 0, %s137
      %s139 = sphi 0, %s137
      %s140 = sphi 0, %s139
      %s154 = sphi 0, %s140
      %s158 = sphi 0, %s158
      %s160 = sphi 0, %s158
      %s161 = sphi 0, %s160
      %s175 = sphi 0, %s161
      %s179 = sphi 0, %s179
      %s181 = sphi 0, %s179
      %s182 = sphi 0, %s181
      %s196 = sphi 0, %s182
      %s200 = sphi 0, %s200
      %s202 = sphi 0, %s200
      %s203 = sphi 0, %s202
      %s217 = sphi 0, %s203
      %s221 = sphi 0, %s221
      %s223 = sphi 0, %s221
      %s224 = sphi 0, %s223
      %s238 = sphi 0, %s224
      %s244 = sphi 0, %s246
      %s247 = sphi 0, %s244
      %s248 = sphi 0, %s247
      %s264 = sphi 0, %s248
    $region4: #{net_forward.1} parent=1 // loop_header_branch
      %22 = sbr.rel (%p20) target = $region8
    $region5: #{net_forward.1} parent=1 // loop_body
      %s24 = ssub.s32 %s19, 1
      %s25 = ssub.s32 %s19, 2
      %s26 = sadd.s32 %s19, 1
      %s27 = ssub.s32 %s19, %s26
      %p28 = scmp.eq.s32.totalorder %s27, 0
      %s30 = sadd.s32 %s29, 1
      %s31 = scalar_select %p28, %s29, %s30
      %p34 = pneg %p28
      %p35 = scmp.eq.s32.totalorder %s19, 1
      %p36 = por %p34, %p35
      %p37 = scmp.ne.s32.totalorder %s29, %s32
      %p38 = scmp.eq.s32.totalorder %s19, 0
      %p39 = por %p37, %p38
      %p40 = scmp.ne.s32.totalorder %s29, %s32
      %p41 = scmp.eq.s32.totalorder %s24, 1
      %p42 = por %p40, %p41
      %p43 = scmp.ne.s32.totalorder %s32, %s33
      %p44 = scmp.eq.s32.totalorder %s24, 0
      %p45 = por %p43, %p44
      %p46 = scmp.ne.s32.totalorder %s32, %s33
      %p47 = scmp.eq.s32.totalorder %s25, 1
      %p48 = por %p46, %p47
      %p50 = scmp.ne.s32.totalorder %s33, %s49
      %p51 = scmp.eq.s32.totalorder %s25, 0
      %p52 = por %p50, %p51
      %s54 = sadd.s32 %s53, 1
      %p57 = scmp.eq.s32.totalorder %s19, 1
      %p58 = scmp.ne.s32.totalorder %s53, %s55
      %p59 = scmp.eq.s32.totalorder %s19, 0
      %p60 = por %p58, %p59
      %p61 = scmp.ne.s32.totalorder %s53, %s55
      %p62 = scmp.eq.s32.totalorder %s24, 1
      %p63 = por %p61, %p62
      %p64 = scmp.ne.s32.totalorder %s55, %s56
      %p65 = scmp.eq.s32.totalorder %s24, 0
      %p66 = por %p64, %p65
      %p67 = scmp.ne.s32.totalorder %s55, %s56
      %p68 = scmp.eq.s32.totalorder %s25, 1
      %p69 = por %p67, %p68
      %p71 = scmp.ne.s32.totalorder %s56, %s70
      %p72 = scmp.eq.s32.totalorder %s25, 0
      %p73 = por %p71, %p72
      %s75 = sadd.s32 %s74, 1
      %p78 = scmp.eq.s32.totalorder %s19, 1
      %p79 = scmp.ne.s32.totalorder %s74, %s76
      %p80 = scmp.eq.s32.totalorder %s19, 0
      %p81 = por %p79, %p80
      %p82 = scmp.ne.s32.totalorder %s74, %s76
      %p83 = scmp.eq.s32.totalorder %s24, 1
      %p84 = por %p82, %p83
      %p85 = scmp.ne.s32.totalorder %s76, %s77
      %p86 = scmp.eq.s32.totalorder %s24, 0
      %p87 = por %p85, %p86
      %p88 = scmp.ne.s32.totalorder %s76, %s77
      %p89 = scmp.eq.s32.totalorder %s25, 1
      %p90 = por %p88, %p89
      %p92 = scmp.ne.s32.totalorder %s77, %s91
      %p93 = scmp.eq.s32.totalorder %s25, 0
      %p94 = por %p92, %p93
      %s96 = sadd.s32 %s95, 1
      %p99 = scmp.eq.s32.totalorder %s19, 1
      %p100 = scmp.ne.s32.totalorder %s95, %s97
      %p101 = scmp.eq.s32.totalorder %s19, 0
      %p102 = por %p100, %p101
      %p103 = scmp.ne.s32.totalorder %s95, %s97
      %p104 = scmp.eq.s32.totalorder %s24, 1
      %p105 = por %p103, %p104
      %p106 = scmp.ne.s32.totalorder %s97, %s98
      %p107 = scmp.eq.s32.totalorder %s24, 0
      %p108 = por %p106, %p107
      %p109 = scmp.ne.s32.totalorder %s97, %s98
      %p110 = scmp.eq.s32.totalorder %s25, 1
      %p111 = por %p109, %p110
      %p113 = scmp.ne.s32.totalorder %s98, %s112
      %p114 = scmp.eq.s32.totalorder %s25, 0
      %p115 = por %p113, %p114
      %s117 = sadd.s32 %s116, 1
      %p120 = scmp.eq.s32.totalorder %s19, 1
      %p121 = scmp.ne.s32.totalorder %s116, %s118
      %p122 = scmp.eq.s32.totalorder %s19, 0
      %p123 = por %p121, %p122
      %p124 = scmp.ne.s32.totalorder %s116, %s118
      %p125 = scmp.eq.s32.totalorder %s24, 1
      %p126 = por %p124, %p125
      %p127 = scmp.ne.s32.totalorder %s118, %s119
      %p128 = scmp.eq.s32.totalorder %s24, 0
      %p129 = por %p127, %p128
      %p130 = scmp.ne.s32.totalorder %s118, %s119
      %p131 = scmp.eq.s32.totalorder %s25, 1
      %p132 = por %p130, %p131
      %p134 = scmp.ne.s32.totalorder %s119, %s133
      %p135 = scmp.eq.s32.totalorder %s25, 0
      %p136 = por %p134, %p135
      %s138 = sadd.s32 %s137, 1
      %p141 = scmp.eq.s32.totalorder %s19, 1
      %p142 = scmp.ne.s32.totalorder %s137, %s139
      %p143 = scmp.eq.s32.totalorder %s19, 0
      %p144 = por %p142, %p143
      %p145 = scmp.ne.s32.totalorder %s137, %s139
      %p146 = scmp.eq.s32.totalorder %s24, 1
      %p147 = por %p145, %p146
      %p148 = scmp.ne.s32.totalorder %s139, %s140
      %p149 = scmp.eq.s32.totalorder %s24, 0
      %p150 = por %p148, %p149
      %p151 = scmp.ne.s32.totalorder %s139, %s140
      %p152 = scmp.eq.s32.totalorder %s25, 1
      %p153 = por %p151, %p152
      %p155 = scmp.ne.s32.totalorder %s140, %s154
      %p156 = scmp.eq.s32.totalorder %s25, 0
      %p157 = por %p155, %p156
      %s159 = sadd.s32 %s158, 1
      %p162 = scmp.eq.s32.totalorder %s19, 1
      %p163 = scmp.ne.s32.totalorder %s158, %s160
      %p164 = scmp.eq.s32.totalorder %s19, 0
      %p165 = por %p163, %p164
      %p166 = scmp.ne.s32.totalorder %s158, %s160
      %p167 = scmp.eq.s32.totalorder %s24, 1
      %p168 = por %p166, %p167
      %p169 = scmp.ne.s32.totalorder %s160, %s161
      %p170 = scmp.eq.s32.totalorder %s24, 0
      %p171 = por %p169, %p170
      %p172 = scmp.ne.s32.totalorder %s160, %s161
      %p173 = scmp.eq.s32.totalorder %s25, 1
      %p174 = por %p172, %p173
      %p176 = scmp.ne.s32.totalorder %s161, %s175
      %p177 = scmp.eq.s32.totalorder %s25, 0
      %p178 = por %p176, %p177
      %s180 = sadd.s32 %s179, 1
      %p183 = scmp.eq.s32.totalorder %s19, 1
      %p184 = scmp.ne.s32.totalorder %s179, %s181
      %p185 = scmp.eq.s32.totalorder %s19, 0
      %p186 = por %p184, %p185
      %p187 = scmp.ne.s32.totalorder %s179, %s181
      %p188 = scmp.eq.s32.totalorder %s24, 1
      %p189 = por %p187, %p188
      %p190 = scmp.ne.s32.totalorder %s181, %s182
      %p191 = scmp.eq.s32.totalorder %s24, 0
      %p192 = por %p190, %p191
      %p193 = scmp.ne.s32.totalorder %s181, %s182
      %p194 = scmp.eq.s32.totalorder %s25, 1
      %p195 = por %p193, %p194
      %p197 = scmp.ne.s32.totalorder %s182, %s196
      %p198 = scmp.eq.s32.totalorder %s25, 0
      %p199 = por %p197, %p198
      %s201 = sadd.s32 %s200, 1
      %p204 = scmp.eq.s32.totalorder %s19, 1
      %p205 = scmp.ne.s32.totalorder %s200, %s202
      %p206 = scmp.eq.s32.totalorder %s19, 0
      %p207 = por %p205, %p206
      %p208 = scmp.ne.s32.totalorder %s200, %s202
      %p209 = scmp.eq.s32.totalorder %s24, 1
      %p210 = por %p208, %p209
      %p211 = scmp.ne.s32.totalorder %s202, %s203
      %p212 = scmp.eq.s32.totalorder %s24, 0
      %p213 = por %p211, %p212
      %p214 = scmp.ne.s32.totalorder %s202, %s203
      %p215 = scmp.eq.s32.totalorder %s25, 1
      %p216 = por %p214, %p215
      %p218 = scmp.ne.s32.totalorder %s203, %s217
      %p219 = scmp.eq.s32.totalorder %s25, 0
      %p220 = por %p218, %p219
      %s222 = sadd.s32 %s221, 1
      %p225 = scmp.eq.s32.totalorder %s19, 1
      %p226 = scmp.ne.s32.totalorder %s221, %s223
      %p227 = scmp.eq.s32.totalorder %s19, 0
      %p228 = por %p226, %p227
      %p229 = scmp.ne.s32.totalorder %s221, %s223
      %p230 = scmp.eq.s32.totalorder %s24, 1
      %p231 = por %p229, %p230
      %p232 = scmp.ne.s32.totalorder %s223, %s224
      %p233 = scmp.eq.s32.totalorder %s24, 0
      %p234 = por %p232, %p233
      %p235 = scmp.ne.s32.totalorder %s223, %s224
      %p236 = scmp.eq.s32.totalorder %s25, 1
      %p237 = por %p235, %p236
      %p239 = scmp.ne.s32.totalorder %s224, %s238
      %p240 = scmp.eq.s32.totalorder %s25, 0
      %p241 = por %p239, %p240
      %s242 = ssub.s32 %s19, %s26
      %p243 = scmp.eq.s32.totalorder %s242, 0
      %s245 = sadd.s32 %s244, 1
      %s246 = scalar_select %p243, %s244, %s245
      %p249 = pneg %p243
      %p250 = scmp.eq.s32.totalorder %s19, 1
      %p251 = por %p249, %p250
      %p252 = scmp.ne.s32.totalorder %s244, %s247
      %p253 = scmp.eq.s32.totalorder %s19, 0
      %p254 = por %p252, %p253
      %p255 = scmp.ne.s32.totalorder %s244, %s247
      %p256 = scmp.eq.s32.totalorder %s24, 1
      %p257 = por %p255, %p256
      %p258 = scmp.ne.s32.totalorder %s247, %s248
      %p259 = scmp.eq.s32.totalorder %s24, 0
      %p260 = por %p258, %p259
      %p261 = scmp.ne.s32.totalorder %s247, %s248
      %p262 = scmp.eq.s32.totalorder %s25, 1
      %p263 = por %p261, %p262
      %p265 = scmp.ne.s32.totalorder %s248, %s264
      %p266 = scmp.eq.s32.totalorder %s25, 0
      %p267 = por %p265, %p266
      %p268 = scmp.le.s32.totalorder 1, %s19
      %p269 = scmp.lt.s32.totalorder %s19, 3
      %p270 = pnand %p268, %p269
      %p271 = pneg %p270
      // Predicated region
      $region9: #{net_forward.1} parent=5 // pred_check
        _
      $region10: #{net_forward.1} parent=5 // pred_check_branch
        %273 = sbr.rel (%p270) target = $region12
      $region11: #{net_forward.1} parent=5 // pred_region
        %s274 = ssub.s32 %s19, 1
        // Predicated region
        $region13: #{net_forward.1} parent=11 // pred_check
          %p275 = pneg %p66
        $region14: #{net_forward.1} parent=11 // pred_check_branch
          %277 = sbr.rel (%p275) target = $region16
        $region15: #{net_forward.1} parent=11 // pred_region
          _
        $region16: #{net_forward.1} parent=11 // pred_fallthru
          _
        // Predicated region
        $region17: #{net_forward.1} parent=11 // pred_check
          %p278 = pneg %p87
        $region18: #{net_forward.1} parent=11 // pred_check_branch
          %280 = sbr.rel (%p278) target = $region20
        $region19: #{net_forward.1} parent=11 // pred_region
          _
        $region20: #{net_forward.1} parent=11 // pred_fallthru
          _
        // Predicated region
        $region21: #{net_forward.1} parent=11 // pred_check
          %p281 = pneg %p108
        $region22: #{net_forward.1} parent=11 // pred_check_branch
          %283 = sbr.rel (%p281) target = $region24
        $region23: #{net_forward.1} parent=11 // pred_region
          _
        $region24: #{net_forward.1} parent=11 // pred_fallthru
          _
        // Predicated region
        $region25: #{net_forward.1} parent=11 // pred_check
          %p284 = pneg %p129
        $region26: #{net_forward.1} parent=11 // pred_check_branch
          %286 = sbr.rel (%p284) target = $region28
        $region27: #{net_forward.1} parent=11 // pred_region
          _
        $region28: #{net_forward.1} parent=11 // pred_fallthru
          _
        // Predicated region
        $region29: #{net_forward.1} parent=11 // pred_check
          %p287 = pneg %p150
        $region30: #{net_forward.1} parent=11 // pred_check_branch
          %289 = sbr.rel (%p287) target = $region32
        $region31: #{net_forward.1} parent=11 // pred_region
          _
        $region32: #{net_forward.1} parent=11 // pred_fallthru
          _
        // Predicated region
        $region33: #{net_forward.1} parent=11 // pred_check
          %p290 = pneg %p171
        $region34: #{net_forward.1} parent=11 // pred_check_branch
          %292 = sbr.rel (%p290) target = $region36
        $region35: #{net_forward.1} parent=11 // pred_region
          _
        $region36: #{net_forward.1} parent=11 // pred_fallthru
          _
        // Predicated region
        $region37: #{net_forward.1} parent=11 // pred_check
          %p293 = pneg %p192
        $region38: #{net_forward.1} parent=11 // pred_check_branch
          %295 = sbr.rel (%p293) target = $region40
        $region39: #{net_forward.1} parent=11 // pred_region
          _
        $region40: #{net_forward.1} parent=11 // pred_fallthru
          _
        // Predicated region
        $region41: #{net_forward.1} parent=11 // pred_check
          %p296 = pneg %p213
        $region42: #{net_forward.1} parent=11 // pred_check_branch
          %298 = sbr.rel (%p296) target = $region44
        $region43: #{net_forward.1} parent=11 // pred_region
          _
        $region44: #{net_forward.1} parent=11 // pred_fallthru
          _
        // Predicated region
        $region45: #{net_forward.1} parent=11 // pred_check
          %p299 = pneg %p234
        $region46: #{net_forward.1} parent=11 // pred_check_branch
          %301 = sbr.rel (%p299) target = $region48
        $region47: #{net_forward.1} parent=11 // pred_region
          _
        $region48: #{net_forward.1} parent=11 // pred_fallthru
          _
      $region12: #{net_forward.1} parent=5 // pred_fallthru
        _
      %p302 = scmp.lt.s32.totalorder %s19, 2
      // Predicated region
      $region49: #{net_forward.1} parent=5 // pred_check
        %p303 = pneg %p302
      $region50: #{net_forward.1} parent=5 // pred_check_branch
        %305 = sbr.rel (%p303) target = $region52
      $region51: #{net_forward.1} parent=5 // pred_region
        // Predicated region
        $region53: #{net_forward.1} parent=51 // pred_check
          %p306 = pneg %p39
        $region54: #{net_forward.1} parent=51 // pred_check_branch
          %308 = sbr.rel (%p306) target = $region56
        $region55: #{net_forward.1} parent=51 // pred_region
          %p309 = scmp.lt.s32.totalorder %s19, 1
          %s310 = scalar_select %p309, %s19, 1
          %s311 = smul.addr %s310, 10
          %s312 = smul.addr %s311, 8
          %s313 = scalar_lea.vmem %s0, %s312
        $region56: #{net_forward.1} parent=51 // pred_fallthru
          _
      $region52: #{net_forward.1} parent=5 // pred_fallthru
        _
      %p314 = scmp.le.s32.totalorder 1, %s19
      %p315 = scmp.lt.s32.totalorder %s19, 3
      %p316 = pnand %p314, %p315
      %p317 = pneg %p316
      // Predicated region
      $region57: #{net_forward.1} parent=5 // pred_check
        _
      $region58: #{net_forward.1} parent=5 // pred_check_branch
        %319 = sbr.rel (%p316) target = $region60
      $region59: #{net_forward.1} parent=5 // pred_region
        %s320 = ssub.s32 %s19, 1
        %p321 = scmp.lt.s32.totalorder %s24, 1
        %s322 = scalar_select %p321, %s24, 1
        %s323 = smul.addr %s322, 10
        %s324 = smul.addr %s323, 8
        %s325 = scalar_lea.vmem %s0, %s324
        %p326 = pneg %p45
        %p327 = pneg %p42
        %p328 = pneg %p66
        %p329 = pneg %p63
        %p330 = pneg %p87
        %p331 = pneg %p84
        %p332 = pneg %p108
        %p333 = pneg %p105
        %p334 = pneg %p129
        %p335 = pneg %p126
        %p336 = pneg %p150
        %p337 = pneg %p147
        %p338 = pneg %p171
        %p339 = pneg %p168
        %p340 = pneg %p192
        %p341 = pneg %p189
        %p342 = pneg %p213
        %p343 = pneg %p210
        %p344 = pneg %p234
        %p345 = pneg %p231
        %p346 = pneg %p260
        %p347 = pneg %p257
        %s348 = sand.u32 %s247, 1
        %s349 = scalar_lea.sflag [#allocation5], %s348
        %s350 = sand.u32 %s247, 1
        %s351 = scalar_lea.vmem [#allocation4], %s350
        %p352 = scmp.lt.s32.totalorder %s24, 1
        %s353 = scalar_select %p352, %s24, 1
        %s354 = smul.addr %s353, 10
        %s355 = smul.addr %s354, 8
        %s356 = scalar_lea.vmem %s0, %s355
        %v357 = vld [vmem:[%s356] sm:$0xff]
        %v358 = vld [vmem:[%s356 + $0x8] sm:$0xff]
        %v359 = vld [vmem:[%s356 + $0x10] sm:$0xff]
        %v360 = vld [vmem:[%s356 + $0x18] sm:$0xff]
        %v361 = vld [vmem:[%s356 + $0x20] sm:$0xff]
        %v362 = vld [vmem:[%s356 + $0x28] sm:$0xff]
        %v363 = vld [vmem:[%s356 + $0x30] sm:$0xff]
        %v364 = vld [vmem:[%s356 + $0x38] sm:$0xff]
        %v365 = vld [vmem:[%s356 + $0x40] sm:$0x1]
        %v366 = vld [vmem:[%s1] sm:$0xff]
        %v367 = vld [vmem:[%s1 + $0x8] sm:$0xff]
        %v368 = vld [vmem:[%s1 + $0x10] sm:$0xff]
        %v369 = vld [vmem:[%s1 + $0x18] sm:$0xff]
        %v370 = vld [vmem:[%s1 + $0x20] sm:$0xff]
        %v371 = vld [vmem:[%s1 + $0x28] sm:$0xff]
        %v372 = vld [vmem:[%s1 + $0x30] sm:$0xff]
        %v373 = vld [vmem:[%s1 + $0x38] sm:$0xff]
        %v374 = vld [vmem:[%s1 + $0x40] sm:$0xff]
        %v375 = vld [vmem:[%s1 + $0x48] sm:$0xff]
        %v376 = vld [vmem:[%s1 + $0x50] sm:$0xff]
        %v377 = vld [vmem:[%s1 + $0x58] sm:$0xff]
        %v378 = vld [vmem:[%s1 + $0x60] sm:$0xff]
        %v379 = vld [vmem:[%s1 + $0x68] sm:$0xff]
        %v380 = vld [vmem:[%s356 + $0x1] sm:$0xff]
        %v381 = vld [vmem:[%s356 + $0x9] sm:$0xff]
        %v382 = vld [vmem:[%s356 + $0x11] sm:$0xff]
        %v383 = vld [vmem:[%s356 + $0x19] sm:$0xff]
        %v384 = vld [vmem:[%s356 + $0x21] sm:$0xff]
        %v385 = vld [vmem:[%s356 + $0x29] sm:$0xff]
        %v386 = vld [vmem:[%s356 + $0x31] sm:$0xff]
        %v387 = vld [vmem:[%s356 + $0x39] sm:$0xff]
        %v388 = vld [vmem:[%s356 + $0x41] sm:$0x1]
        %s389 = scalar_lea.vmem %s1, 112
        %v390 = vld [vmem:[%s389] sm:$0xff]
        %v391 = vld [vmem:[%s389 + $0x8] sm:$0xff]
        %v392 = vld [vmem:[%s389 + $0x10] sm:$0xff]
        %v393 = vld [vmem:[%s389 + $0x18] sm:$0xff]
        %v394 = vld [vmem:[%s389 + $0x20] sm:$0xff]
        %v395 = vld [vmem:[%s389 + $0x28] sm:$0xff]
        %v396 = vld [vmem:[%s389 + $0x30] sm:$0xff]
        %v397 = vld [vmem:[%s389 + $0x38] sm:$0xff]
        %v398 = vld [vmem:[%s389 + $0x40] sm:$0xff]
        %v399 = vld [vmem:[%s389 + $0x48] sm:$0xff]
        %v400 = vld [vmem:[%s389 + $0x50] sm:$0xff]
        %v401 = vld [vmem:[%s389 + $0x58] sm:$0xff]
        %v402 = vld [vmem:[%s389 + $0x60] sm:$0xff]
        %v403 = vld [vmem:[%s389 + $0x68] sm:$0xff]
        %vm404 = vcmask 457728
        %v406 = vsel %vm404, %v380, 0
        %v409 = vsel %vm404, %v381, 0
        %v412 = vsel %vm404, %v382, 0
        %v415 = vsel %vm404, %v383, 0
        %v418 = vsel %vm404, %v384, 0
        %v421 = vsel %vm404, %v385, 0
        %v424 = vsel %vm404, %v386, 0
        %v427 = vsel %vm404, %v387, 0
        %v430 = vsel %vm404, %v388, 0
        %432 = vmatpush.msra.mxu0 0.0
        %433 = vmatpush.msra.mxu0 0.0
        %434 = vmatpush.msra.mxu0 0.0
        %435 = vmatpush.msra.mxu0 0.0
        %436 = vmatpush.msra.mxu0 0.0
        %437 = vmatpush.msra.mxu0 0.0
        %438 = vmatpush.msra.mxu0 0.0
        %439 = vmatpush.msra.mxu0 0.0
        %440 = vmatpush.msra.mxu0 0.0
        %441 = vmatpush.msra.mxu0 %v402
        %442 = vmatpush.msra.mxu0 %v400
        %443 = vmatpush.msra.mxu0 %v398
        %444 = vmatpush.msra.mxu0 %v396
        %445 = vmatpush.msra.mxu0 %v394
        %446 = vmatpush.msra.mxu0 %v392
        %447 = vmatpush.msra.mxu0 %v390
        %448 = vmatmul.f32.gmra.mxu0 %v406
        %v449 = vpop.f32.mrf.mxu0
        %v450 = vadd.f32 0.0, %v449
        %451 = vmatmul.f32.gmra.mxu0 %v409
        %v452 = vpop.f32.mrf.mxu0
        %v453 = vadd.f32 0.0, %v452
        %454 = vmatmul.f32.gmra.mxu0 %v412
        %v455 = vpop.f32.mrf.mxu0
        %v456 = vadd.f32 0.0, %v455
        %457 = vmatmul.f32.gmra.mxu0 %v415
        %v458 = vpop.f32.mrf.mxu0
        %v459 = vadd.f32 0.0, %v458
        %460 = vmatmul.f32.gmra.mxu0 %v418
        %v461 = vpop.f32.mrf.mxu0
        %v462 = vadd.f32 0.0, %v461
        %463 = vmatmul.f32.gmra.mxu0 %v421
        %v464 = vpop.f32.mrf.mxu0
        %v465 = vadd.f32 0.0, %v464
        %466 = vmatmul.f32.gmra.mxu0 %v424
        %v467 = vpop.f32.mrf.mxu0
        %v468 = vadd.f32 0.0, %v467
        %469 = vmatmul.f32.gmra.mxu0 %v427
        %v470 = vpop.f32.mrf.mxu0
        %v471 = vadd.f32 0.0, %v470
        %472 = vmatmul.f32.gmra.mxu0 %v430
        %v473 = vpop.f32.mrf.mxu0
        %v474 = vadd.f32 0.0, %v473
        %475 = vdwg.mxu0
        %476 = vmatpush.msra.mxu0 0.0
        %477 = vmatpush.msra.mxu0 0.0
        %478 = vmatpush.msra.mxu0 0.0
        %479 = vmatpush.msra.mxu0 0.0
        %480 = vmatpush.msra.mxu0 0.0
        %481 = vmatpush.msra.mxu0 0.0
        %482 = vmatpush.msra.mxu0 0.0
        %483 = vmatpush.msra.mxu0 0.0
        %484 = vmatpush.msra.mxu0 0.0
        %485 = vmatpush.msra.mxu0 %v403
        %486 = vmatpush.msra.mxu0 %v401
        %487 = vmatpush.msra.mxu0 %v399
        %488 = vmatpush.msra.mxu0 %v397
        %489 = vmatpush.msra.mxu0 %v395
        %490 = vmatpush.msra.mxu0 %v393
        %491 = vmatpush.msra.mxu0 %v391
        %492 = vmatmul.f32.gmra.mxu0 %v406
        %v493 = vpop.f32.mrf.mxu0
        %v494 = vadd.f32 0.0, %v493
        %495 = vmatmul.f32.gmra.mxu0 %v409
        %v496 = vpop.f32.mrf.mxu0
        %v497 = vadd.f32 0.0, %v496
        %498 = vmatmul.f32.gmra.mxu0 %v412
        %v499 = vpop.f32.mrf.mxu0
        %v500 = vadd.f32 0.0, %v499
        %501 = vmatmul.f32.gmra.mxu0 %v415
        %v502 = vpop.f32.mrf.mxu0
        %v503 = vadd.f32 0.0, %v502
        %504 = vmatmul.f32.gmra.mxu0 %v418
        %v505 = vpop.f32.mrf.mxu0
        %v506 = vadd.f32 0.0, %v505
        %507 = vmatmul.f32.gmra.mxu0 %v421
        %v508 = vpop.f32.mrf.mxu0
        %v509 = vadd.f32 0.0, %v508
        %510 = vmatmul.f32.gmra.mxu0 %v424
        %v511 = vpop.f32.mrf.mxu0
        %v512 = vadd.f32 0.0, %v511
        %513 = vmatmul.f32.gmra.mxu0 %v427
        %v514 = vpop.f32.mrf.mxu0
        %v515 = vadd.f32 0.0, %v514
        %516 = vmatmul.f32.gmra.mxu0 %v430
        %v517 = vpop.f32.mrf.mxu0
        %v518 = vadd.f32 0.0, %v517
        %519 = vdwg.mxu0
        %v521 = vsel %vm404, %v357, 0
        %v524 = vsel %vm404, %v358, 0
        %v527 = vsel %vm404, %v359, 0
        %v530 = vsel %vm404, %v360, 0
        %v533 = vsel %vm404, %v361, 0
        %v536 = vsel %vm404, %v362, 0
        %v539 = vsel %vm404, %v363, 0
        %v542 = vsel %vm404, %v364, 0
        %v545 = vsel %vm404, %v365, 0
        %547 = vmatpush.msra.mxu0 0.0
        %548 = vmatpush.msra.mxu0 0.0
        %549 = vmatpush.msra.mxu0 0.0
        %550 = vmatpush.msra.mxu0 0.0
        %551 = vmatpush.msra.mxu0 0.0
        %552 = vmatpush.msra.mxu0 0.0
        %553 = vmatpush.msra.mxu0 0.0
        %554 = vmatpush.msra.mxu0 0.0
        %555 = vmatpush.msra.mxu0 0.0
        %556 = vmatpush.msra.mxu0 %v378
        %557 = vmatpush.msra.mxu0 %v376
        %558 = vmatpush.msra.mxu0 %v374
        %559 = vmatpush.msra.mxu0 %v372
        %560 = vmatpush.msra.mxu0 %v370
        %561 = vmatpush.msra.mxu0 %v368
        %562 = vmatpush.msra.mxu0 %v366
        %563 = vmatmul.f32.gmra.mxu0 %v521
        %v564 = vpop.f32.mrf.mxu0
        %v565 = vadd.f32 %v450, %v564
        %566 = vmatmul.f32.gmra.mxu0 %v524
        %v567 = vpop.f32.mrf.mxu0
        %v568 = vadd.f32 %v453, %v567
        %569 = vmatmul.f32.gmra.mxu0 %v527
        %v570 = vpop.f32.mrf.mxu0
        %v571 = vadd.f32 %v456, %v570
        %572 = vmatmul.f32.gmra.mxu0 %v530
        %v573 = vpop.f32.mrf.mxu0
        %v574 = vadd.f32 %v459, %v573
        %575 = vmatmul.f32.gmra.mxu0 %v533
        %v576 = vpop.f32.mrf.mxu0
        %v577 = vadd.f32 %v462, %v576
        %578 = vmatmul.f32.gmra.mxu0 %v536
        %v579 = vpop.f32.mrf.mxu0
        %v580 = vadd.f32 %v465, %v579
        %581 = vmatmul.f32.gmra.mxu0 %v539
        %v582 = vpop.f32.mrf.mxu0
        %v583 = vadd.f32 %v468, %v582
        %584 = vmatmul.f32.gmra.mxu0 %v542
        %v585 = vpop.f32.mrf.mxu0
        %v586 = vadd.f32 %v471, %v585
        %587 = vmatmul.f32.gmra.mxu0 %v545
        %v588 = vpop.f32.mrf.mxu0
        %v589 = vadd.f32 %v474, %v588
        %590 = vdwg.mxu0
        %591 = vmatpush.msra.mxu0 0.0
        %592 = vmatpush.msra.mxu0 0.0
        %593 = vmatpush.msra.mxu0 0.0
        %594 = vmatpush.msra.mxu0 0.0
        %595 = vmatpush.msra.mxu0 0.0
        %596 = vmatpush.msra.mxu0 0.0
        %597 = vmatpush.msra.mxu0 0.0
        %598 = vmatpush.msra.mxu0 0.0
        %599 = vmatpush.msra.mxu0 0.0
        %600 = vmatpush.msra.mxu0 %v379
        %601 = vmatpush.msra.mxu0 %v377
        %602 = vmatpush.msra.mxu0 %v375
        %603 = vmatpush.msra.mxu0 %v373
        %604 = vmatpush.msra.mxu0 %v371
        %605 = vmatpush.msra.mxu0 %v369
        %606 = vmatpush.msra.mxu0 %v367
        %607 = vmatmul.f32.gmra.mxu0 %v521
        %v608 = vpop.f32.mrf.mxu0
        %v609 = vadd.f32 %v494, %v608
        %610 = vmatmul.f32.gmra.mxu0 %v524
        %v611 = vpop.f32.mrf.mxu0
        %v612 = vadd.f32 %v497, %v611
        %613 = vmatmul.f32.gmra.mxu0 %v527
        %v614 = vpop.f32.mrf.mxu0
        %v615 = vadd.f32 %v500, %v614
        %616 = vmatmul.f32.gmra.mxu0 %v530
        %v617 = vpop.f32.mrf.mxu0
        %v618 = vadd.f32 %v503, %v617
        %619 = vmatmul.f32.gmra.mxu0 %v533
        %v620 = vpop.f32.mrf.mxu0
        %v621 = vadd.f32 %v506, %v620
        %622 = vmatmul.f32.gmra.mxu0 %v536
        %v623 = vpop.f32.mrf.mxu0
        %v624 = vadd.f32 %v509, %v623
        %625 = vmatmul.f32.gmra.mxu0 %v539
        %v626 = vpop.f32.mrf.mxu0
        %v627 = vadd.f32 %v512, %v626
        %628 = vmatmul.f32.gmra.mxu0 %v542
        %v629 = vpop.f32.mrf.mxu0
        %v630 = vadd.f32 %v515, %v629
        %631 = vmatmul.f32.gmra.mxu0 %v545
        %v632 = vpop.f32.mrf.mxu0
        %v633 = vadd.f32 %v518, %v632
        %634 = vdwg.mxu0
        %v635 = vld [vmem:[%s356 + $0x2] sm:$0xff]
        %v636 = vld [vmem:[%s356 + $0xa] sm:$0xff]
        %v637 = vld [vmem:[%s356 + $0x12] sm:$0xff]
        %v638 = vld [vmem:[%s356 + $0x1a] sm:$0xff]
        %v639 = vld [vmem:[%s356 + $0x22] sm:$0xff]
        %v640 = vld [vmem:[%s356 + $0x2a] sm:$0xff]
        %v641 = vld [vmem:[%s356 + $0x32] sm:$0xff]
        %v642 = vld [vmem:[%s356 + $0x3a] sm:$0xff]
        %v643 = vld [vmem:[%s356 + $0x42] sm:$0x1]
        %s644 = scalar_lea.vmem %s1, 224
        %v645 = vld [vmem:[%s644] sm:$0xff]
        %v646 = vld [vmem:[%s644 + $0x8] sm:$0xff]
        %v647 = vld [vmem:[%s644 + $0x10] sm:$0xff]
        %v648 = vld [vmem:[%s644 + $0x18] sm:$0xff]
        %v649 = vld [vmem:[%s644 + $0x20] sm:$0xff]
        %v650 = vld [vmem:[%s644 + $0x28] sm:$0xff]
        %v651 = vld [vmem:[%s644 + $0x30] sm:$0xff]
        %v652 = vld [vmem:[%s644 + $0x38] sm:$0xff]
        %v653 = vld [vmem:[%s644 + $0x40] sm:$0xff]
        %v654 = vld [vmem:[%s644 + $0x48] sm:$0xff]
        %v655 = vld [vmem:[%s644 + $0x50] sm:$0xff]
        %v656 = vld [vmem:[%s644 + $0x58] sm:$0xff]
        %v657 = vld [vmem:[%s644 + $0x60] sm:$0xff]
        %v658 = vld [vmem:[%s644 + $0x68] sm:$0xff]
        %v660 = vsel %vm404, %v635, 0
        %v663 = vsel %vm404, %v636, 0
        %v666 = vsel %vm404, %v637, 0
        %v669 = vsel %vm404, %v638, 0
        %v672 = vsel %vm404, %v639, 0
        %v675 = vsel %vm404, %v640, 0
        %v678 = vsel %vm404, %v641, 0
        %v681 = vsel %vm404, %v642, 0
        %v684 = vsel %vm404, %v643, 0
        %686 = vmatpush.msra.mxu0 0.0
        %687 = vmatpush.msra.mxu0 0.0
        %688 = vmatpush.msra.mxu0 0.0
        %689 = vmatpush.msra.mxu0 0.0
        %690 = vmatpush.msra.mxu0 0.0
        %691 = vmatpush.msra.mxu0 0.0
        %692 = vmatpush.msra.mxu0 0.0
        %693 = vmatpush.msra.mxu0 0.0
        %694 = vmatpush.msra.mxu0 0.0
        %695 = vmatpush.msra.mxu0 %v657
        %696 = vmatpush.msra.mxu0 %v655
        %697 = vmatpush.msra.mxu0 %v653
        %698 = vmatpush.msra.mxu0 %v651
        %699 = vmatpush.msra.mxu0 %v649
        %700 = vmatpush.msra.mxu0 %v647
        %701 = vmatpush.msra.mxu0 %v645
        %702 = vmatmul.f32.gmra.mxu0 %v660
        %v703 = vpop.f32.mrf.mxu0
        %v704 = vadd.f32 0.0, %v703
        %705 = vmatmul.f32.gmra.mxu0 %v663
        %v706 = vpop.f32.mrf.mxu0
        %v707 = vadd.f32 0.0, %v706
        %708 = vmatmul.f32.gmra.mxu0 %v666
        %v709 = vpop.f32.mrf.mxu0
        %v710 = vadd.f32 0.0, %v709
        %711 = vmatmul.f32.gmra.mxu0 %v669
        %v712 = vpop.f32.mrf.mxu0
        %v713 = vadd.f32 0.0, %v712
        %714 = vmatmul.f32.gmra.mxu0 %v672
        %v715 = vpop.f32.mrf.mxu0
        %v716 = vadd.f32 0.0, %v715
        %717 = vmatmul.f32.gmra.mxu0 %v675
        %v718 = vpop.f32.mrf.mxu0
        %v719 = vadd.f32 0.0, %v718
        %720 = vmatmul.f32.gmra.mxu0 %v678
        %v721 = vpop.f32.mrf.mxu0
        %v722 = vadd.f32 0.0, %v721
        %723 = vmatmul.f32.gmra.mxu0 %v681
        %v724 = vpop.f32.mrf.mxu0
        %v725 = vadd.f32 0.0, %v724
        %726 = vmatmul.f32.gmra.mxu0 %v684
        %v727 = vpop.f32.mrf.mxu0
        %v728 = vadd.f32 0.0, %v727
        %729 = vdwg.mxu0
        %730 = vmatpush.msra.mxu0 0.0
        %731 = vmatpush.msra.mxu0 0.0
        %732 = vmatpush.msra.mxu0 0.0
        %733 = vmatpush.msra.mxu0 0.0
        %734 = vmatpush.msra.mxu0 0.0
        %735 = vmatpush.msra.mxu0 0.0
        %736 = vmatpush.msra.mxu0 0.0
        %737 = vmatpush.msra.mxu0 0.0
        %738 = vmatpush.msra.mxu0 0.0
        %739 = vmatpush.msra.mxu0 %v658
        %740 = vmatpush.msra.mxu0 %v656
        %741 = vmatpush.msra.mxu0 %v654
        %742 = vmatpush.msra.mxu0 %v652
        %743 = vmatpush.msra.mxu0 %v650
        %744 = vmatpush.msra.mxu0 %v648
        %745 = vmatpush.msra.mxu0 %v646
        %746 = vmatmul.f32.gmra.mxu0 %v660
        %v747 = vpop.f32.mrf.mxu0
        %v748 = vadd.f32 0.0, %v747
        %749 = vmatmul.f32.gmra.mxu0 %v663
        %v750 = vpop.f32.mrf.mxu0
        %v751 = vadd.f32 0.0, %v750
        %752 = vmatmul.f32.gmra.mxu0 %v666
        %v753 = vpop.f32.mrf.mxu0
        %v754 = vadd.f32 0.0, %v753
        %755 = vmatmul.f32.gmra.mxu0 %v669
        %v756 = vpop.f32.mrf.mxu0
        %v757 = vadd.f32 0.0, %v756
        %758 = vmatmul.f32.gmra.mxu0 %v672
        %v759 = vpop.f32.mrf.mxu0
        %v760 = vadd.f32 0.0, %v759
        %761 = vmatmul.f32.gmra.mxu0 %v675
        %v762 = vpop.f32.mrf.mxu0
        %v763 = vadd.f32 0.0, %v762
        %764 = vmatmul.f32.gmra.mxu0 %v678
        %v765 = vpop.f32.mrf.mxu0
        %v766 = vadd.f32 0.0, %v765
        %767 = vmatmul.f32.gmra.mxu0 %v681
        %v768 = vpop.f32.mrf.mxu0
        %v769 = vadd.f32 0.0, %v768
        %770 = vmatmul.f32.gmra.mxu0 %v684
        %v771 = vpop.f32.mrf.mxu0
        %v772 = vadd.f32 0.0, %v771
        %773 = vdwg.mxu0
        %v774 = vadd.f32 %v565, %v704
        %v775 = vadd.f32 %v609, %v748
        %v776 = vadd.f32 %v568, %v707
        %v777 = vadd.f32 %v612, %v751
        %v778 = vadd.f32 %v571, %v710
        %v779 = vadd.f32 %v615, %v754
        %v780 = vadd.f32 %v574, %v713
        %v781 = vadd.f32 %v618, %v757
        %v782 = vadd.f32 %v577, %v716
        %v783 = vadd.f32 %v621, %v760
        %v784 = vadd.f32 %v580, %v719
        %v785 = vadd.f32 %v624, %v763
        %v786 = vadd.f32 %v583, %v722
        %v787 = vadd.f32 %v627, %v766
        %v788 = vadd.f32 %v586, %v725
        %v789 = vadd.f32 %v630, %v769
        %v790 = vadd.f32 %v589, %v728
        %v791 = vadd.f32 %v633, %v772
        %v792 = vld [vmem:[%s356 + $0x3] sm:$0xff]
        %v793 = vld [vmem:[%s356 + $0xb] sm:$0xff]
        %v794 = vld [vmem:[%s356 + $0x13] sm:$0xff]
        %v795 = vld [vmem:[%s356 + $0x1b] sm:$0xff]
        %v796 = vld [vmem:[%s356 + $0x23] sm:$0xff]
        %v797 = vld [vmem:[%s356 + $0x2b] sm:$0xff]
        %v798 = vld [vmem:[%s356 + $0x33] sm:$0xff]
        %v799 = vld [vmem:[%s356 + $0x3b] sm:$0xff]
        %v800 = vld [vmem:[%s356 + $0x43] sm:$0x1]
        %s801 = scalar_lea.vmem %s1, 336
        %v802 = vld [vmem:[%s801] sm:$0xff]
        %v803 = vld [vmem:[%s801 + $0x8] sm:$0xff]
        %v804 = vld [vmem:[%s801 + $0x10] sm:$0xff]
        %v805 = vld [vmem:[%s801 + $0x18] sm:$0xff]
        %v806 = vld [vmem:[%s801 + $0x20] sm:$0xff]
        %v807 = vld [vmem:[%s801 + $0x28] sm:$0xff]
        %v808 = vld [vmem:[%s801 + $0x30] sm:$0xff]
        %v809 = vld [vmem:[%s801 + $0x38] sm:$0xff]
        %v810 = vld [vmem:[%s801 + $0x40] sm:$0xff]
        %v811 = vld [vmem:[%s801 + $0x48] sm:$0xff]
        %v812 = vld [vmem:[%s801 + $0x50] sm:$0xff]
        %v813 = vld [vmem:[%s801 + $0x58] sm:$0xff]
        %v814 = vld [vmem:[%s801 + $0x60] sm:$0xff]
        %v815 = vld [vmem:[%s801 + $0x68] sm:$0xff]
        %v817 = vsel %vm404, %v792, 0
        %v820 = vsel %vm404, %v793, 0
        %v823 = vsel %vm404, %v794, 0
        %v826 = vsel %vm404, %v795, 0
        %v829 = vsel %vm404, %v796, 0
        %v832 = vsel %vm404, %v797, 0
        %v835 = vsel %vm404, %v798, 0
        %v838 = vsel %vm404, %v799, 0
        %v841 = vsel %vm404, %v800, 0
        %843 = vmatpush.msra.mxu0 0.0
        %844 = vmatpush.msra.mxu0 0.0
        %845 = vmatpush.msra.mxu0 0.0
        %846 = vmatpush.msra.mxu0 0.0
        %847 = vmatpush.msra.mxu0 0.0
        %848 = vmatpush.msra.mxu0 0.0
        %849 = vmatpush.msra.mxu0 0.0
        %850 = vmatpush.msra.mxu0 0.0
        %851 = vmatpush.msra.mxu0 0.0
        %852 = vmatpush.msra.mxu0 %v814
        %853 = vmatpush.msra.mxu0 %v812
        %854 = vmatpush.msra.mxu0 %v810
        %855 = vmatpush.msra.mxu0 %v808
        %856 = vmatpush.msra.mxu0 %v806
        %857 = vmatpush.msra.mxu0 %v804
        %858 = vmatpush.msra.mxu0 %v802
        %859 = vmatmul.f32.gmra.mxu0 %v817
        %v860 = vpop.f32.mrf.mxu0
        %v861 = vadd.f32 0.0, %v860
        %862 = vmatmul.f32.gmra.mxu0 %v820
        %v863 = vpop.f32.mrf.mxu0
        %v864 = vadd.f32 0.0, %v863
        %865 = vmatmul.f32.gmra.mxu0 %v823
        %v866 = vpop.f32.mrf.mxu0
        %v867 = vadd.f32 0.0, %v866
        %868 = vmatmul.f32.gmra.mxu0 %v826
        %v869 = vpop.f32.mrf.mxu0
        %v870 = vadd.f32 0.0, %v869
        %871 = vmatmul.f32.gmra.mxu0 %v829
        %v872 = vpop.f32.mrf.mxu0
        %v873 = vadd.f32 0.0, %v872
        %874 = vmatmul.f32.gmra.mxu0 %v832
        %v875 = vpop.f32.mrf.mxu0
        %v876 = vadd.f32 0.0, %v875
        %877 = vmatmul.f32.gmra.mxu0 %v835
        %v878 = vpop.f32.mrf.mxu0
        %v879 = vadd.f32 0.0, %v878
        %880 = vmatmul.f32.gmra.mxu0 %v838
        %v881 = vpop.f32.mrf.mxu0
        %v882 = vadd.f32 0.0, %v881
        %883 = vmatmul.f32.gmra.mxu0 %v841
        %v884 = vpop.f32.mrf.mxu0
        %v885 = vadd.f32 0.0, %v884
        %886 = vdwg.mxu0
        %887 = vmatpush.msra.mxu0 0.0
        %888 = vmatpush.msra.mxu0 0.0
        %889 = vmatpush.msra.mxu0 0.0
        %890 = vmatpush.msra.mxu0 0.0
        %891 = vmatpush.msra.mxu0 0.0
        %892 = vmatpush.msra.mxu0 0.0
        %893 = vmatpush.msra.mxu0 0.0
        %894 = vmatpush.msra.mxu0 0.0
        %895 = vmatpush.msra.mxu0 0.0
        %896 = vmatpush.msra.mxu0 %v815
        %897 = vmatpush.msra.mxu0 %v813
        %898 = vmatpush.msra.mxu0 %v811
        %899 = vmatpush.msra.mxu0 %v809
        %900 = vmatpush.msra.mxu0 %v807
        %901 = vmatpush.msra.mxu0 %v805
        %902 = vmatpush.msra.mxu0 %v803
        %903 = vmatmul.f32.gmra.mxu0 %v817
        %v904 = vpop.f32.mrf.mxu0
        %v905 = vadd.f32 0.0, %v904
        %906 = vmatmul.f32.gmra.mxu0 %v820
        %v907 = vpop.f32.mrf.mxu0
        %v908 = vadd.f32 0.0, %v907
        %909 = vmatmul.f32.gmra.mxu0 %v823
        %v910 = vpop.f32.mrf.mxu0
        %v911 = vadd.f32 0.0, %v910
        %912 = vmatmul.f32.gmra.mxu0 %v826
        %v913 = vpop.f32.mrf.mxu0
        %v914 = vadd.f32 0.0, %v913
        %915 = vmatmul.f32.gmra.mxu0 %v829
        %v916 = vpop.f32.mrf.mxu0
        %v917 = vadd.f32 0.0, %v916
        %918 = vmatmul.f32.gmra.mxu0 %v832
        %v919 = vpop.f32.mrf.mxu0
        %v920 = vadd.f32 0.0, %v919
        %921 = vmatmul.f32.gmra.mxu0 %v835
        %v922 = vpop.f32.mrf.mxu0
        %v923 = vadd.f32 0.0, %v922
        %924 = vmatmul.f32.gmra.mxu0 %v838
        %v925 = vpop.f32.mrf.mxu0
        %v926 = vadd.f32 0.0, %v925
        %927 = vmatmul.f32.gmra.mxu0 %v841
        %v928 = vpop.f32.mrf.mxu0
        %v929 = vadd.f32 0.0, %v928
        %930 = vdwg.mxu0
        %v931 = vadd.f32 %v774, %v861
        %v932 = vadd.f32 %v775, %v905
        %v933 = vadd.f32 %v776, %v864
        %v934 = vadd.f32 %v777, %v908
        %v935 = vadd.f32 %v778, %v867
        %v936 = vadd.f32 %v779, %v911
        %v937 = vadd.f32 %v780, %v870
        %v938 = vadd.f32 %v781, %v914
        %v939 = vadd.f32 %v782, %v873
        %v940 = vadd.f32 %v783, %v917
        %v941 = vadd.f32 %v784, %v876
        %v942 = vadd.f32 %v785, %v920
        %v943 = vadd.f32 %v786, %v879
        %v944 = vadd.f32 %v787, %v923
        %v945 = vadd.f32 %v788, %v882
        %v946 = vadd.f32 %v789, %v926
        %v947 = vadd.f32 %v790, %v885
        %v948 = vadd.f32 %v791, %v929
        %v949 = vld [vmem:[%s356 + $0x4] sm:$0xff]
        %v950 = vld [vmem:[%s356 + $0xc] sm:$0xff]
        %v951 = vld [vmem:[%s356 + $0x14] sm:$0xff]
        %v952 = vld [vmem:[%s356 + $0x1c] sm:$0xff]
        %v953 = vld [vmem:[%s356 + $0x24] sm:$0xff]
        %v954 = vld [vmem:[%s356 + $0x2c] sm:$0xff]
        %v955 = vld [vmem:[%s356 + $0x34] sm:$0xff]
        %v956 = vld [vmem:[%s356 + $0x3c] sm:$0xff]
        %v957 = vld [vmem:[%s356 + $0x44] sm:$0x1]
        %s958 = scalar_lea.vmem %s1, 448
        %v959 = vld [vmem:[%s958] sm:$0xff]
        %v960 = vld [vmem:[%s958 + $0x8] sm:$0xff]
        %v961 = vld [vmem:[%s958 + $0x10] sm:$0xff]
        %v962 = vld [vmem:[%s958 + $0x18] sm:$0xff]
        %v963 = vld [vmem:[%s958 + $0x20] sm:$0xff]
        %v964 = vld [vmem:[%s958 + $0x28] sm:$0xff]
        %v965 = vld [vmem:[%s958 + $0x30] sm:$0xff]
        %v966 = vld [vmem:[%s958 + $0x38] sm:$0xff]
        %v967 = vld [vmem:[%s958 + $0x40] sm:$0xff]
        %v968 = vld [vmem:[%s958 + $0x48] sm:$0xff]
        %v969 = vld [vmem:[%s958 + $0x50] sm:$0xff]
        %v970 = vld [vmem:[%s958 + $0x58] sm:$0xff]
        %v971 = vld [vmem:[%s958 + $0x60] sm:$0xff]
        %v972 = vld [vmem:[%s958 + $0x68] sm:$0xff]
        %v974 = vsel %vm404, %v949, 0
        %v977 = vsel %vm404, %v950, 0
        %v980 = vsel %vm404, %v951, 0
        %v983 = vsel %vm404, %v952, 0
        %v986 = vsel %vm404, %v953, 0
        %v989 = vsel %vm404, %v954, 0
        %v992 = vsel %vm404, %v955, 0
        %v995 = vsel %vm404, %v956, 0
        %v998 = vsel %vm404, %v957, 0
        %1000 = vmatpush.msra.mxu0 0.0
        %1001 = vmatpush.msra.mxu0 0.0
        %1002 = vmatpush.msra.mxu0 0.0
        %1003 = vmatpush.msra.mxu0 0.0
        %1004 = vmatpush.msra.mxu0 0.0
        %1005 = vmatpush.msra.mxu0 0.0
        %1006 = vmatpush.msra.mxu0 0.0
        %1007 = vmatpush.msra.mxu0 0.0
        %1008 = vmatpush.msra.mxu0 0.0
        %1009 = vmatpush.msra.mxu0 %v971
        %1010 = vmatpush.msra.mxu0 %v969
        %1011 = vmatpush.msra.mxu0 %v967
        %1012 = vmatpush.msra.mxu0 %v965
        %1013 = vmatpush.msra.mxu0 %v963
        %1014 = vmatpush.msra.mxu0 %v961
        %1015 = vmatpush.msra.mxu0 %v959
        %1016 = vmatmul.f32.gmra.mxu0 %v974
        %v1017 = vpop.f32.mrf.mxu0
        %v1018 = vadd.f32 0.0, %v1017
        %1019 = vmatmul.f32.gmra.mxu0 %v977
        %v1020 = vpop.f32.mrf.mxu0
        %v1021 = vadd.f32 0.0, %v1020
        %1022 = vmatmul.f32.gmra.mxu0 %v980
        %v1023 = vpop.f32.mrf.mxu0
        %v1024 = vadd.f32 0.0, %v1023
        %1025 = vmatmul.f32.gmra.mxu0 %v983
        %v1026 = vpop.f32.mrf.mxu0
        %v1027 = vadd.f32 0.0, %v1026
        %1028 = vmatmul.f32.gmra.mxu0 %v986
        %v1029 = vpop.f32.mrf.mxu0
        %v1030 = vadd.f32 0.0, %v1029
        %1031 = vmatmul.f32.gmra.mxu0 %v989
        %v1032 = vpop.f32.mrf.mxu0
        %v1033 = vadd.f32 0.0, %v1032
        %1034 = vmatmul.f32.gmra.mxu0 %v992
        %v1035 = vpop.f32.mrf.mxu0
        %v1036 = vadd.f32 0.0, %v1035
        %1037 = vmatmul.f32.gmra.mxu0 %v995
        %v1038 = vpop.f32.mrf.mxu0
        %v1039 = vadd.f32 0.0, %v1038
        %1040 = vmatmul.f32.gmra.mxu0 %v998
        %v1041 = vpop.f32.mrf.mxu0
        %v1042 = vadd.f32 0.0, %v1041
        %1043 = vdwg.mxu0
        %1044 = vmatpush.msra.mxu0 0.0
        %1045 = vmatpush.msra.mxu0 0.0
        %1046 = vmatpush.msra.mxu0 0.0
        %1047 = vmatpush.msra.mxu0 0.0
        %1048 = vmatpush.msra.mxu0 0.0
        %1049 = vmatpush.msra.mxu0 0.0
        %1050 = vmatpush.msra.mxu0 0.0
        %1051 = vmatpush.msra.mxu0 0.0
        %1052 = vmatpush.msra.mxu0 0.0
        %1053 = vmatpush.msra.mxu0 %v972
        %1054 = vmatpush.msra.mxu0 %v970
        %1055 = vmatpush.msra.mxu0 %v968
        %1056 = vmatpush.msra.mxu0 %v966
        %1057 = vmatpush.msra.mxu0 %v964
        %1058 = vmatpush.msra.mxu0 %v962
        %1059 = vmatpush.msra.mxu0 %v960
        %1060 = vmatmul.f32.gmra.mxu0 %v974
        %v1061 = vpop.f32.mrf.mxu0
        %v1062 = vadd.f32 0.0, %v1061
        %1063 = vmatmul.f32.gmra.mxu0 %v977
        %v1064 = vpop.f32.mrf.mxu0
        %v1065 = vadd.f32 0.0, %v1064
        %1066 = vmatmul.f32.gmra.mxu0 %v980
        %v1067 = vpop.f32.mrf.mxu0
        %v1068 = vadd.f32 0.0, %v1067
        %1069 = vmatmul.f32.gmra.mxu0 %v983
        %v1070 = vpop.f32.mrf.mxu0
        %v1071 = vadd.f32 0.0, %v1070
        %1072 = vmatmul.f32.gmra.mxu0 %v986
        %v1073 = vpop.f32.mrf.mxu0
        %v1074 = vadd.f32 0.0, %v1073
        %1075 = vmatmul.f32.gmra.mxu0 %v989
        %v1076 = vpop.f32.mrf.mxu0
        %v1077 = vadd.f32 0.0, %v1076
        %1078 = vmatmul.f32.gmra.mxu0 %v992
        %v1079 = vpop.f32.mrf.mxu0
        %v1080 = vadd.f32 0.0, %v1079
        %1081 = vmatmul.f32.gmra.mxu0 %v995
        %v1082 = vpop.f32.mrf.mxu0
        %v1083 = vadd.f32 0.0, %v1082
        %1084 = vmatmul.f32.gmra.mxu0 %v998
        %v1085 = vpop.f32.mrf.mxu0
        %v1086 = vadd.f32 0.0, %v1085
        %1087 = vdwg.mxu0
        %v1088 = vadd.f32 %v931, %v1018
        %v1089 = vadd.f32 %v932, %v1062
        %v1090 = vadd.f32 %v933, %v1021
        %v1091 = vadd.f32 %v934, %v1065
        %v1092 = vadd.f32 %v935, %v1024
        %v1093 = vadd.f32 %v936, %v1068
        %v1094 = vadd.f32 %v937, %v1027
        %v1095 = vadd.f32 %v938, %v1071
        %v1096 = vadd.f32 %v939, %v1030
        %v1097 = vadd.f32 %v940, %v1074
        %v1098 = vadd.f32 %v941, %v1033
        %v1099 = vadd.f32 %v942, %v1077
        %v1100 = vadd.f32 %v943, %v1036
        %v1101 = vadd.f32 %v944, %v1080
        %v1102 = vadd.f32 %v945, %v1039
        %v1103 = vadd.f32 %v946, %v1083
        %v1104 = vadd.f32 %v947, %v1042
        %v1105 = vadd.f32 %v948, %v1086
        %v1106 = vld [vmem:[%s356 + $0x5] sm:$0xff]
        %v1107 = vld [vmem:[%s356 + $0xd] sm:$0xff]
        %v1108 = vld [vmem:[%s356 + $0x15] sm:$0xff]
        %v1109 = vld [vmem:[%s356 + $0x1d] sm:$0xff]
        %v1110 = vld [vmem:[%s356 + $0x25] sm:$0xff]
        %v1111 = vld [vmem:[%s356 + $0x2d] sm:$0xff]
        %v1112 = vld [vmem:[%s356 + $0x35] sm:$0xff]
        %v1113 = vld [vmem:[%s356 + $0x3d] sm:$0xff]
        %v1114 = vld [vmem:[%s356 + $0x45] sm:$0x1]
        %s1115 = scalar_lea.vmem %s1, 560
        %v1116 = vld [vmem:[%s1115] sm:$0xff]
        %v1117 = vld [vmem:[%s1115 + $0x8] sm:$0xff]
        %v1118 = vld [vmem:[%s1115 + $0x10] sm:$0xff]
        %v1119 = vld [vmem:[%s1115 + $0x18] sm:$0xff]
        %v1120 = vld [vmem:[%s1115 + $0x20] sm:$0xff]
        %v1121 = vld [vmem:[%s1115 + $0x28] sm:$0xff]
        %v1122 = vld [vmem:[%s1115 + $0x30] sm:$0xff]
        %v1123 = vld [vmem:[%s1115 + $0x38] sm:$0xff]
        %v1124 = vld [vmem:[%s1115 + $0x40] sm:$0xff]
        %v1125 = vld [vmem:[%s1115 + $0x48] sm:$0xff]
        %v1126 = vld [vmem:[%s1115 + $0x50] sm:$0xff]
        %v1127 = vld [vmem:[%s1115 + $0x58] sm:$0xff]
        %v1128 = vld [vmem:[%s1115 + $0x60] sm:$0xff]
        %v1129 = vld [vmem:[%s1115 + $0x68] sm:$0xff]
        %v1131 = vsel %vm404, %v1106, 0
        %v1134 = vsel %vm404, %v1107, 0
        %v1137 = vsel %vm404, %v1108, 0
        %v1140 = vsel %vm404, %v1109, 0
        %v1143 = vsel %vm404, %v1110, 0
        %v1146 = vsel %vm404, %v1111, 0
        %v1149 = vsel %vm404, %v1112, 0
        %v1152 = vsel %vm404, %v1113, 0
        %v1155 = vsel %vm404, %v1114, 0
        %1157 = vmatpush.msra.mxu0 0.0
        %1158 = vmatpush.msra.mxu0 0.0
        %1159 = vmatpush.msra.mxu0 0.0
        %1160 = vmatpush.msra.mxu0 0.0
        %1161 = vmatpush.msra.mxu0 0.0
        %1162 = vmatpush.msra.mxu0 0.0
        %1163 = vmatpush.msra.mxu0 0.0
        %1164 = vmatpush.msra.mxu0 0.0
        %1165 = vmatpush.msra.mxu0 0.0
        %1166 = vmatpush.msra.mxu0 %v1128
        %1167 = vmatpush.msra.mxu0 %v1126
        %1168 = vmatpush.msra.mxu0 %v1124
        %1169 = vmatpush.msra.mxu0 %v1122
        %1170 = vmatpush.msra.mxu0 %v1120
        %1171 = vmatpush.msra.mxu0 %v1118
        %1172 = vmatpush.msra.mxu0 %v1116
        %1173 = vmatmul.f32.gmra.mxu0 %v1131
        %v1174 = vpop.f32.mrf.mxu0
        %v1175 = vadd.f32 0.0, %v1174
        %1176 = vmatmul.f32.gmra.mxu0 %v1134
        %v1177 = vpop.f32.mrf.mxu0
        %v1178 = vadd.f32 0.0, %v1177
        %1179 = vmatmul.f32.gmra.mxu0 %v1137
        %v1180 = vpop.f32.mrf.mxu0
        %v1181 = vadd.f32 0.0, %v1180
        %1182 = vmatmul.f32.gmra.mxu0 %v1140
        %v1183 = vpop.f32.mrf.mxu0
        %v1184 = vadd.f32 0.0, %v1183
        %1185 = vmatmul.f32.gmra.mxu0 %v1143
        %v1186 = vpop.f32.mrf.mxu0
        %v1187 = vadd.f32 0.0, %v1186
        %1188 = vmatmul.f32.gmra.mxu0 %v1146
        %v1189 = vpop.f32.mrf.mxu0
        %v1190 = vadd.f32 0.0, %v1189
        %1191 = vmatmul.f32.gmra.mxu0 %v1149
        %v1192 = vpop.f32.mrf.mxu0
        %v1193 = vadd.f32 0.0, %v1192
        %1194 = vmatmul.f32.gmra.mxu0 %v1152
        %v1195 = vpop.f32.mrf.mxu0
        %v1196 = vadd.f32 0.0, %v1195
        %1197 = vmatmul.f32.gmra.mxu0 %v1155
        %v1198 = vpop.f32.mrf.mxu0
        %v1199 = vadd.f32 0.0, %v1198
        %1200 = vdwg.mxu0
        %1201 = vmatpush.msra.mxu0 0.0
        %1202 = vmatpush.msra.mxu0 0.0
        %1203 = vmatpush.msra.mxu0 0.0
        %1204 = vmatpush.msra.mxu0 0.0
        %1205 = vmatpush.msra.mxu0 0.0
        %1206 = vmatpush.msra.mxu0 0.0
        %1207 = vmatpush.msra.mxu0 0.0
        %1208 = vmatpush.msra.mxu0 0.0
        %1209 = vmatpush.msra.mxu0 0.0
        %1210 = vmatpush.msra.mxu0 %v1129
        %1211 = vmatpush.msra.mxu0 %v1127
        %1212 = vmatpush.msra.mxu0 %v1125
        %1213 = vmatpush.msra.mxu0 %v1123
        %1214 = vmatpush.msra.mxu0 %v1121
        %1215 = vmatpush.msra.mxu0 %v1119
        %1216 = vmatpush.msra.mxu0 %v1117
        %1217 = vmatmul.f32.gmra.mxu0 %v1131
        %v1218 = vpop.f32.mrf.mxu0
        %v1219 = vadd.f32 0.0, %v1218
        %1220 = vmatmul.f32.gmra.mxu0 %v1134
        %v1221 = vpop.f32.mrf.mxu0
        %v1222 = vadd.f32 0.0, %v1221
        %1223 = vmatmul.f32.gmra.mxu0 %v1137
        %v1224 = vpop.f32.mrf.mxu0
        %v1225 = vadd.f32 0.0, %v1224
        %1226 = vmatmul.f32.gmra.mxu0 %v1140
        %v1227 = vpop.f32.mrf.mxu0
        %v1228 = vadd.f32 0.0, %v1227
        %1229 = vmatmul.f32.gmra.mxu0 %v1143
        %v1230 = vpop.f32.mrf.mxu0
        %v1231 = vadd.f32 0.0, %v1230
        %1232 = vmatmul.f32.gmra.mxu0 %v1146
        %v1233 = vpop.f32.mrf.mxu0
        %v1234 = vadd.f32 0.0, %v1233
        %1235 = vmatmul.f32.gmra.mxu0 %v1149
        %v1236 = vpop.f32.mrf.mxu0
        %v1237 = vadd.f32 0.0, %v1236
        %1238 = vmatmul.f32.gmra.mxu0 %v1152
        %v1239 = vpop.f32.mrf.mxu0
        %v1240 = vadd.f32 0.0, %v1239
        %1241 = vmatmul.f32.gmra.mxu0 %v1155
        %v1242 = vpop.f32.mrf.mxu0
        %v1243 = vadd.f32 0.0, %v1242
        %1244 = vdwg.mxu0
        %v1245 = vadd.f32 %v1088, %v1175
        %v1246 = vadd.f32 %v1089, %v1219
        %v1247 = vadd.f32 %v1090, %v1178
        %v1248 = vadd.f32 %v1091, %v1222
        %v1249 = vadd.f32 %v1092, %v1181
        %v1250 = vadd.f32 %v1093, %v1225
        %v1251 = vadd.f32 %v1094, %v1184
        %v1252 = vadd.f32 %v1095, %v1228
        %v1253 = vadd.f32 %v1096, %v1187
        %v1254 = vadd.f32 %v1097, %v1231
        %v1255 = vadd.f32 %v1098, %v1190
        %v1256 = vadd.f32 %v1099, %v1234
        %v1257 = vadd.f32 %v1100, %v1193
        %v1258 = vadd.f32 %v1101, %v1237
        %v1259 = vadd.f32 %v1102, %v1196
        %v1260 = vadd.f32 %v1103, %v1240
        %v1261 = vadd.f32 %v1104, %v1199
        %v1262 = vadd.f32 %v1105, %v1243
        %v1263 = vld [vmem:[%s356 + $0x6] sm:$0xff]
        %v1264 = vld [vmem:[%s356 + $0xe] sm:$0xff]
        %v1265 = vld [vmem:[%s356 + $0x16] sm:$0xff]
        %v1266 = vld [vmem:[%s356 + $0x1e] sm:$0xff]
        %v1267 = vld [vmem:[%s356 + $0x26] sm:$0xff]
        %v1268 = vld [vmem:[%s356 + $0x2e] sm:$0xff]
        %v1269 = vld [vmem:[%s356 + $0x36] sm:$0xff]
        %v1270 = vld [vmem:[%s356 + $0x3e] sm:$0xff]
        %v1271 = vld [vmem:[%s356 + $0x46] sm:$0x1]
        %s1272 = scalar_lea.vmem %s1, 672
        %v1273 = vld [vmem:[%s1272] sm:$0xff]
        %v1274 = vld [vmem:[%s1272 + $0x8] sm:$0xff]
        %v1275 = vld [vmem:[%s1272 + $0x10] sm:$0xff]
        %v1276 = vld [vmem:[%s1272 + $0x18] sm:$0xff]
        %v1277 = vld [vmem:[%s1272 + $0x20] sm:$0xff]
        %v1278 = vld [vmem:[%s1272 + $0x28] sm:$0xff]
        %v1279 = vld [vmem:[%s1272 + $0x30] sm:$0xff]
        %v1280 = vld [vmem:[%s1272 + $0x38] sm:$0xff]
        %v1281 = vld [vmem:[%s1272 + $0x40] sm:$0xff]
        %v1282 = vld [vmem:[%s1272 + $0x48] sm:$0xff]
        %v1283 = vld [vmem:[%s1272 + $0x50] sm:$0xff]
        %v1284 = vld [vmem:[%s1272 + $0x58] sm:$0xff]
        %v1285 = vld [vmem:[%s1272 + $0x60] sm:$0xff]
        %v1286 = vld [vmem:[%s1272 + $0x68] sm:$0xff]
        %v1288 = vsel %vm404, %v1263, 0
        %v1291 = vsel %vm404, %v1264, 0
        %v1294 = vsel %vm404, %v1265, 0
        %v1297 = vsel %vm404, %v1266, 0
        %v1300 = vsel %vm404, %v1267, 0
        %v1303 = vsel %vm404, %v1268, 0
        %v1306 = vsel %vm404, %v1269, 0
        %v1309 = vsel %vm404, %v1270, 0
        %v1312 = vsel %vm404, %v1271, 0
        %1314 = vmatpush.msra.mxu0 0.0
        %1315 = vmatpush.msra.mxu0 0.0
        %1316 = vmatpush.msra.mxu0 0.0
        %1317 = vmatpush.msra.mxu0 0.0
        %1318 = vmatpush.msra.mxu0 0.0
        %1319 = vmatpush.msra.mxu0 0.0
        %1320 = vmatpush.msra.mxu0 0.0
        %1321 = vmatpush.msra.mxu0 0.0
        %1322 = vmatpush.msra.mxu0 0.0
        %1323 = vmatpush.msra.mxu0 %v1285
        %1324 = vmatpush.msra.mxu0 %v1283
        %1325 = vmatpush.msra.mxu0 %v1281
        %1326 = vmatpush.msra.mxu0 %v1279
        %1327 = vmatpush.msra.mxu0 %v1277
        %1328 = vmatpush.msra.mxu0 %v1275
        %1329 = vmatpush.msra.mxu0 %v1273
        %1330 = vmatmul.f32.gmra.mxu0 %v1288
        %v1331 = vpop.f32.mrf.mxu0
        %v1332 = vadd.f32 0.0, %v1331
        %1333 = vmatmul.f32.gmra.mxu0 %v1291
        %v1334 = vpop.f32.mrf.mxu0
        %v1335 = vadd.f32 0.0, %v1334
        %1336 = vmatmul.f32.gmra.mxu0 %v1294
        %v1337 = vpop.f32.mrf.mxu0
        %v1338 = vadd.f32 0.0, %v1337
        %1339 = vmatmul.f32.gmra.mxu0 %v1297
        %v1340 = vpop.f32.mrf.mxu0
        %v1341 = vadd.f32 0.0, %v1340
        %1342 = vmatmul.f32.gmra.mxu0 %v1300
        %v1343 = vpop.f32.mrf.mxu0
        %v1344 = vadd.f32 0.0, %v1343
        %1345 = vmatmul.f32.gmra.mxu0 %v1303
        %v1346 = vpop.f32.mrf.mxu0
        %v1347 = vadd.f32 0.0, %v1346
        %1348 = vmatmul.f32.gmra.mxu0 %v1306
        %v1349 = vpop.f32.mrf.mxu0
        %v1350 = vadd.f32 0.0, %v1349
        %1351 = vmatmul.f32.gmra.mxu0 %v1309
        %v1352 = vpop.f32.mrf.mxu0
        %v1353 = vadd.f32 0.0, %v1352
        %1354 = vmatmul.f32.gmra.mxu0 %v1312
        %v1355 = vpop.f32.mrf.mxu0
        %v1356 = vadd.f32 0.0, %v1355
        %1357 = vdwg.mxu0
        %1358 = vmatpush.msra.mxu0 0.0
        %1359 = vmatpush.msra.mxu0 0.0
        %1360 = vmatpush.msra.mxu0 0.0
        %1361 = vmatpush.msra.mxu0 0.0
        %1362 = vmatpush.msra.mxu0 0.0
        %1363 = vmatpush.msra.mxu0 0.0
        %1364 = vmatpush.msra.mxu0 0.0
        %1365 = vmatpush.msra.mxu0 0.0
        %1366 = vmatpush.msra.mxu0 0.0
        %1367 = vmatpush.msra.mxu0 %v1286
        %1368 = vmatpush.msra.mxu0 %v1284
        %1369 = vmatpush.msra.mxu0 %v1282
        %1370 = vmatpush.msra.mxu0 %v1280
        %1371 = vmatpush.msra.mxu0 %v1278
        %1372 = vmatpush.msra.mxu0 %v1276
        %1373 = vmatpush.msra.mxu0 %v1274
        %1374 = vmatmul.f32.gmra.mxu0 %v1288
        %v1375 = vpop.f32.mrf.mxu0
        %v1376 = vadd.f32 0.0, %v1375
        %1377 = vmatmul.f32.gmra.mxu0 %v1291
        %v1378 = vpop.f32.mrf.mxu0
        %v1379 = vadd.f32 0.0, %v1378
        %1380 = vmatmul.f32.gmra.mxu0 %v1294
        %v1381 = vpop.f32.mrf.mxu0
        %v1382 = vadd.f32 0.0, %v1381
        %1383 = vmatmul.f32.gmra.mxu0 %v1297
        %v1384 = vpop.f32.mrf.mxu0
        %v1385 = vadd.f32 0.0, %v1384
        %1386 = vmatmul.f32.gmra.mxu0 %v1300
        %v1387 = vpop.f32.mrf.mxu0
        %v1388 = vadd.f32 0.0, %v1387
        %1389 = vmatmul.f32.gmra.mxu0 %v1303
        %v1390 = vpop.f32.mrf.mxu0
        %v1391 = vadd.f32 0.0, %v1390
        %1392 = vmatmul.f32.gmra.mxu0 %v1306
        %v1393 = vpop.f32.mrf.mxu0
        %v1394 = vadd.f32 0.0, %v1393
        %1395 = vmatmul.f32.gmra.mxu0 %v1309
        %v1396 = vpop.f32.mrf.mxu0
        %v1397 = vadd.f32 0.0, %v1396
        %1398 = vmatmul.f32.gmra.mxu0 %v1312
        %v1399 = vpop.f32.mrf.mxu0
        %v1400 = vadd.f32 0.0, %v1399
        %1401 = vdwg.mxu0
        %v1402 = vadd.f32 %v1245, %v1332
        %v1403 = vadd.f32 %v1246, %v1376
        %v1404 = vadd.f32 %v1247, %v1335
        %v1405 = vadd.f32 %v1248, %v1379
        %v1406 = vadd.f32 %v1249, %v1338
        %v1407 = vadd.f32 %v1250, %v1382
        %v1408 = vadd.f32 %v1251, %v1341
        %v1409 = vadd.f32 %v1252, %v1385
        %v1410 = vadd.f32 %v1253, %v1344
        %v1411 = vadd.f32 %v1254, %v1388
        %v1412 = vadd.f32 %v1255, %v1347
        %v1413 = vadd.f32 %v1256, %v1391
        %v1414 = vadd.f32 %v1257, %v1350
        %v1415 = vadd.f32 %v1258, %v1394
        %v1416 = vadd.f32 %v1259, %v1353
        %v1417 = vadd.f32 %v1260, %v1397
        %v1418 = vadd.f32 %v1261, %v1356
        %v1419 = vadd.f32 %v1262, %v1400
        %v1420 = vld [vmem:[%s356 + $0x7] sm:$0xff]
        %v1421 = vld [vmem:[%s356 + $0xf] sm:$0xff]
        %v1422 = vld [vmem:[%s356 + $0x17] sm:$0xff]
        %v1423 = vld [vmem:[%s356 + $0x1f] sm:$0xff]
        %v1424 = vld [vmem:[%s356 + $0x27] sm:$0xff]
        %v1425 = vld [vmem:[%s356 + $0x2f] sm:$0xff]
        %v1426 = vld [vmem:[%s356 + $0x37] sm:$0xff]
        %v1427 = vld [vmem:[%s356 + $0x3f] sm:$0xff]
        %v1428 = vld [vmem:[%s356 + $0x47] sm:$0x1]
        %s1429 = scalar_lea.vmem %s1, 784
        %v1430 = vld [vmem:[%s1429] sm:$0xff]
        %v1431 = vld [vmem:[%s1429 + $0x8] sm:$0xff]
        %v1432 = vld [vmem:[%s1429 + $0x10] sm:$0xff]
        %v1433 = vld [vmem:[%s1429 + $0x18] sm:$0xff]
        %v1434 = vld [vmem:[%s1429 + $0x20] sm:$0xff]
        %v1435 = vld [vmem:[%s1429 + $0x28] sm:$0xff]
        %v1436 = vld [vmem:[%s1429 + $0x30] sm:$0xff]
        %v1437 = vld [vmem:[%s1429 + $0x38] sm:$0xff]
        %v1438 = vld [vmem:[%s1429 + $0x40] sm:$0xff]
        %v1439 = vld [vmem:[%s1429 + $0x48] sm:$0xff]
        %v1440 = vld [vmem:[%s1429 + $0x50] sm:$0xff]
        %v1441 = vld [vmem:[%s1429 + $0x58] sm:$0xff]
        %v1442 = vld [vmem:[%s1429 + $0x60] sm:$0xff]
        %v1443 = vld [vmem:[%s1429 + $0x68] sm:$0xff]
        %v1445 = vsel %vm404, %v1420, 0
        %v1448 = vsel %vm404, %v1421, 0
        %v1451 = vsel %vm404, %v1422, 0
        %v1454 = vsel %vm404, %v1423, 0
        %v1457 = vsel %vm404, %v1424, 0
        %v1460 = vsel %vm404, %v1425, 0
        %v1463 = vsel %vm404, %v1426, 0
        %v1466 = vsel %vm404, %v1427, 0
        %v1469 = vsel %vm404, %v1428, 0
        %1471 = vmatpush.msra.mxu0 0.0
        %1472 = vmatpush.msra.mxu0 0.0
        %1473 = vmatpush.msra.mxu0 0.0
        %1474 = vmatpush.msra.mxu0 0.0
        %1475 = vmatpush.msra.mxu0 0.0
        %1476 = vmatpush.msra.mxu0 0.0
        %1477 = vmatpush.msra.mxu0 0.0
        %1478 = vmatpush.msra.mxu0 0.0
        %1479 = vmatpush.msra.mxu0 0.0
        %1480 = vmatpush.msra.mxu0 %v1442
        %1481 = vmatpush.msra.mxu0 %v1440
        %1482 = vmatpush.msra.mxu0 %v1438
        %1483 = vmatpush.msra.mxu0 %v1436
        %1484 = vmatpush.msra.mxu0 %v1434
        %1485 = vmatpush.msra.mxu0 %v1432
        %1486 = vmatpush.msra.mxu0 %v1430
        %1487 = vmatmul.f32.gmra.mxu0 %v1445
        %v1488 = vpop.f32.mrf.mxu0
        %v1489 = vadd.f32 0.0, %v1488
        %1490 = vmatmul.f32.gmra.mxu0 %v1448
        %v1491 = vpop.f32.mrf.mxu0
        %v1492 = vadd.f32 0.0, %v1491
        %1493 = vmatmul.f32.gmra.mxu0 %v1451
        %v1494 = vpop.f32.mrf.mxu0
        %v1495 = vadd.f32 0.0, %v1494
        %1496 = vmatmul.f32.gmra.mxu0 %v1454
        %v1497 = vpop.f32.mrf.mxu0
        %v1498 = vadd.f32 0.0, %v1497
        %1499 = vmatmul.f32.gmra.mxu0 %v1457
        %v1500 = vpop.f32.mrf.mxu0
        %v1501 = vadd.f32 0.0, %v1500
        %1502 = vmatmul.f32.gmra.mxu0 %v1460
        %v1503 = vpop.f32.mrf.mxu0
        %v1504 = vadd.f32 0.0, %v1503
        %1505 = vmatmul.f32.gmra.mxu0 %v1463
        %v1506 = vpop.f32.mrf.mxu0
        %v1507 = vadd.f32 0.0, %v1506
        %1508 = vmatmul.f32.gmra.mxu0 %v1466
        %v1509 = vpop.f32.mrf.mxu0
        %v1510 = vadd.f32 0.0, %v1509
        %1511 = vmatmul.f32.gmra.mxu0 %v1469
        %v1512 = vpop.f32.mrf.mxu0
        %v1513 = vadd.f32 0.0, %v1512
        %1514 = vdwg.mxu0
        %1515 = vmatpush.msra.mxu0 0.0
        %1516 = vmatpush.msra.mxu0 0.0
        %1517 = vmatpush.msra.mxu0 0.0
        %1518 = vmatpush.msra.mxu0 0.0
        %1519 = vmatpush.msra.mxu0 0.0
        %1520 = vmatpush.msra.mxu0 0.0
        %1521 = vmatpush.msra.mxu0 0.0
        %1522 = vmatpush.msra.mxu0 0.0
        %1523 = vmatpush.msra.mxu0 0.0
        %1524 = vmatpush.msra.mxu0 %v1443
        %1525 = vmatpush.msra.mxu0 %v1441
        %1526 = vmatpush.msra.mxu0 %v1439
        %1527 = vmatpush.msra.mxu0 %v1437
        %1528 = vmatpush.msra.mxu0 %v1435
        %1529 = vmatpush.msra.mxu0 %v1433
        %1530 = vmatpush.msra.mxu0 %v1431
        %1531 = vmatmul.f32.gmra.mxu0 %v1445
        %v1532 = vpop.f32.mrf.mxu0
        %v1533 = vadd.f32 0.0, %v1532
        %1534 = vmatmul.f32.gmra.mxu0 %v1448
        %v1535 = vpop.f32.mrf.mxu0
        %v1536 = vadd.f32 0.0, %v1535
        %1537 = vmatmul.f32.gmra.mxu0 %v1451
        %v1538 = vpop.f32.mrf.mxu0
        %v1539 = vadd.f32 0.0, %v1538
        %1540 = vmatmul.f32.gmra.mxu0 %v1454
        %v1541 = vpop.f32.mrf.mxu0
        %v1542 = vadd.f32 0.0, %v1541
        %1543 = vmatmul.f32.gmra.mxu0 %v1457
        %v1544 = vpop.f32.mrf.mxu0
        %v1545 = vadd.f32 0.0, %v1544
        %1546 = vmatmul.f32.gmra.mxu0 %v1460
        %v1547 = vpop.f32.mrf.mxu0
        %v1548 = vadd.f32 0.0, %v1547
        %1549 = vmatmul.f32.gmra.mxu0 %v1463
        %v1550 = vpop.f32.mrf.mxu0
        %v1551 = vadd.f32 0.0, %v1550
        %1552 = vmatmul.f32.gmra.mxu0 %v1466
        %v1553 = vpop.f32.mrf.mxu0
        %v1554 = vadd.f32 0.0, %v1553
        %1555 = vmatmul.f32.gmra.mxu0 %v1469
        %v1556 = vpop.f32.mrf.mxu0
        %v1557 = vadd.f32 0.0, %v1556
        %1558 = vdwg.mxu0
        %v1559 = vadd.f32 %v1402, %v1489
        %v1560 = vadd.f32 %v1403, %v1533
        %v1561 = vadd.f32 %v1404, %v1492
        %v1562 = vadd.f32 %v1405, %v1536
        %v1563 = vadd.f32 %v1406, %v1495
        %v1564 = vadd.f32 %v1407, %v1539
        %v1565 = vadd.f32 %v1408, %v1498
        %v1566 = vadd.f32 %v1409, %v1542
        %v1567 = vadd.f32 %v1410, %v1501
        %v1568 = vadd.f32 %v1411, %v1545
        %v1569 = vadd.f32 %v1412, %v1504
        %v1570 = vadd.f32 %v1413, %v1548
        %v1571 = vadd.f32 %v1414, %v1507
        %v1572 = vadd.f32 %v1415, %v1551
        %v1573 = vadd.f32 %v1416, %v1510
        %v1574 = vadd.f32 %v1417, %v1554
        %v1575 = vadd.f32 %v1418, %v1513
        %v1576 = vadd.f32 %v1419, %v1557
        %v1577 = vld [vmem:[%s356 + $0x8] sm:$0xff]
        %v1578 = vld [vmem:[%s356 + $0x10] sm:$0xff]
        %v1579 = vld [vmem:[%s356 + $0x18] sm:$0xff]
        %v1580 = vld [vmem:[%s356 + $0x20] sm:$0xff]
        %v1581 = vld [vmem:[%s356 + $0x28] sm:$0xff]
        %v1582 = vld [vmem:[%s356 + $0x30] sm:$0xff]
        %v1583 = vld [vmem:[%s356 + $0x38] sm:$0xff]
        %v1584 = vld [vmem:[%s356 + $0x40] sm:$0xff]
        %v1585 = vld [vmem:[%s356 + $0x48] sm:$0x1]
        %s1586 = scalar_lea.vmem %s1, 896
        %v1587 = vld [vmem:[%s1586] sm:$0xff]
        %v1588 = vld [vmem:[%s1586 + $0x8] sm:$0xff]
        %v1589 = vld [vmem:[%s1586 + $0x10] sm:$0xff]
        %v1590 = vld [vmem:[%s1586 + $0x18] sm:$0xff]
        %v1591 = vld [vmem:[%s1586 + $0x20] sm:$0xff]
        %v1592 = vld [vmem:[%s1586 + $0x28] sm:$0xff]
        %v1593 = vld [vmem:[%s1586 + $0x30] sm:$0xff]
        %v1594 = vld [vmem:[%s1586 + $0x38] sm:$0xff]
        %v1595 = vld [vmem:[%s1586 + $0x40] sm:$0xff]
        %v1596 = vld [vmem:[%s1586 + $0x48] sm:$0xff]
        %v1597 = vld [vmem:[%s1586 + $0x50] sm:$0xff]
        %v1598 = vld [vmem:[%s1586 + $0x58] sm:$0xff]
        %v1599 = vld [vmem:[%s1586 + $0x60] sm:$0xff]
        %v1600 = vld [vmem:[%s1586 + $0x68] sm:$0xff]
        %v1602 = vsel %vm404, %v1577, 0
        %v1605 = vsel %vm404, %v1578, 0
        %v1608 = vsel %vm404, %v1579, 0
        %v1611 = vsel %vm404, %v1580, 0
        %v1614 = vsel %vm404, %v1581, 0
        %v1617 = vsel %vm404, %v1582, 0
        %v1620 = vsel %vm404, %v1583, 0
        %v1623 = vsel %vm404, %v1584, 0
        %v1626 = vsel %vm404, %v1585, 0
        %1628 = vmatpush.msra.mxu0 0.0
        %1629 = vmatpush.msra.mxu0 0.0
        %1630 = vmatpush.msra.mxu0 0.0
        %1631 = vmatpush.msra.mxu0 0.0
        %1632 = vmatpush.msra.mxu0 0.0
        %1633 = vmatpush.msra.mxu0 0.0
        %1634 = vmatpush.msra.mxu0 0.0
        %1635 = vmatpush.msra.mxu0 0.0
        %1636 = vmatpush.msra.mxu0 0.0
        %1637 = vmatpush.msra.mxu0 %v1599
        %1638 = vmatpush.msra.mxu0 %v1597
        %1639 = vmatpush.msra.mxu0 %v1595
        %1640 = vmatpush.msra.mxu0 %v1593
        %1641 = vmatpush.msra.mxu0 %v1591
        %1642 = vmatpush.msra.mxu0 %v1589
        %1643 = vmatpush.msra.mxu0 %v1587
        %1644 = vmatmul.f32.gmra.mxu0 %v1602
        %v1645 = vpop.f32.mrf.mxu0
        %v1646 = vadd.f32 0.0, %v1645
        %1647 = vmatmul.f32.gmra.mxu0 %v1605
        %v1648 = vpop.f32.mrf.mxu0
        %v1649 = vadd.f32 0.0, %v1648
        %1650 = vmatmul.f32.gmra.mxu0 %v1608
        %v1651 = vpop.f32.mrf.mxu0
        %v1652 = vadd.f32 0.0, %v1651
        %1653 = vmatmul.f32.gmra.mxu0 %v1611
        %v1654 = vpop.f32.mrf.mxu0
        %v1655 = vadd.f32 0.0, %v1654
        %1656 = vmatmul.f32.gmra.mxu0 %v1614
        %v1657 = vpop.f32.mrf.mxu0
        %v1658 = vadd.f32 0.0, %v1657
        %1659 = vmatmul.f32.gmra.mxu0 %v1617
        %v1660 = vpop.f32.mrf.mxu0
        %v1661 = vadd.f32 0.0, %v1660
        %1662 = vmatmul.f32.gmra.mxu0 %v1620
        %v1663 = vpop.f32.mrf.mxu0
        %v1664 = vadd.f32 0.0, %v1663
        %1665 = vmatmul.f32.gmra.mxu0 %v1623
        %v1666 = vpop.f32.mrf.mxu0
        %v1667 = vadd.f32 0.0, %v1666
        %1668 = vmatmul.f32.gmra.mxu0 %v1626
        %v1669 = vpop.f32.mrf.mxu0
        %v1670 = vadd.f32 0.0, %v1669
        %1671 = vdwg.mxu0
        %1672 = vmatpush.msra.mxu0 0.0
        %1673 = vmatpush.msra.mxu0 0.0
        %1674 = vmatpush.msra.mxu0 0.0
        %1675 = vmatpush.msra.mxu0 0.0
        %1676 = vmatpush.msra.mxu0 0.0
        %1677 = vmatpush.msra.mxu0 0.0
        %1678 = vmatpush.msra.mxu0 0.0
        %1679 = vmatpush.msra.mxu0 0.0
        %1680 = vmatpush.msra.mxu0 0.0
        %1681 = vmatpush.msra.mxu0 %v1600
        %1682 = vmatpush.msra.mxu0 %v1598
        %1683 = vmatpush.msra.mxu0 %v1596
        %1684 = vmatpush.msra.mxu0 %v1594
        %1685 = vmatpush.msra.mxu0 %v1592
        %1686 = vmatpush.msra.mxu0 %v1590
        %1687 = vmatpush.msra.mxu0 %v1588
        %1688 = vmatmul.f32.gmra.mxu0 %v1602
        %v1689 = vpop.f32.mrf.mxu0
        %v1690 = vadd.f32 0.0, %v1689
        %1691 = vmatmul.f32.gmra.mxu0 %v1605
        %v1692 = vpop.f32.mrf.mxu0
        %v1693 = vadd.f32 0.0, %v1692
        %1694 = vmatmul.f32.gmra.mxu0 %v1608
        %v1695 = vpop.f32.mrf.mxu0
        %v1696 = vadd.f32 0.0, %v1695
        %1697 = vmatmul.f32.gmra.mxu0 %v1611
        %v1698 = vpop.f32.mrf.mxu0
        %v1699 = vadd.f32 0.0, %v1698
        %1700 = vmatmul.f32.gmra.mxu0 %v1614
        %v1701 = vpop.f32.mrf.mxu0
        %v1702 = vadd.f32 0.0, %v1701
        %1703 = vmatmul.f32.gmra.mxu0 %v1617
        %v1704 = vpop.f32.mrf.mxu0
        %v1705 = vadd.f32 0.0, %v1704
        %1706 = vmatmul.f32.gmra.mxu0 %v1620
        %v1707 = vpop.f32.mrf.mxu0
        %v1708 = vadd.f32 0.0, %v1707
        %1709 = vmatmul.f32.gmra.mxu0 %v1623
        %v1710 = vpop.f32.mrf.mxu0
        %v1711 = vadd.f32 0.0, %v1710
        %1712 = vmatmul.f32.gmra.mxu0 %v1626
        %v1713 = vpop.f32.mrf.mxu0
        %v1714 = vadd.f32 0.0, %v1713
        %1715 = vdwg.mxu0
        %v1716 = vadd.f32 %v1559, %v1646
        %v1717 = vadd.f32 %v1560, %v1690
        %v1718 = vadd.f32 %v1561, %v1649
        %v1719 = vadd.f32 %v1562, %v1693
        %v1720 = vadd.f32 %v1563, %v1652
        %v1721 = vadd.f32 %v1564, %v1696
        %v1722 = vadd.f32 %v1565, %v1655
        %v1723 = vadd.f32 %v1566, %v1699
        %v1724 = vadd.f32 %v1567, %v1658
        %v1725 = vadd.f32 %v1568, %v1702
        %v1726 = vadd.f32 %v1569, %v1661
        %v1727 = vadd.f32 %v1570, %v1705
        %v1728 = vadd.f32 %v1571, %v1664
        %v1729 = vadd.f32 %v1572, %v1708
        %v1730 = vadd.f32 %v1573, %v1667
        %v1731 = vadd.f32 %v1574, %v1711
        %v1732 = vadd.f32 %v1575, %v1670
        %v1733 = vadd.f32 %v1576, %v1714
        %v1734 = vld [vmem:[%s356 + $0x9] sm:$0xff]
        %v1735 = vld [vmem:[%s356 + $0x11] sm:$0xff]
        %v1736 = vld [vmem:[%s356 + $0x19] sm:$0xff]
        %v1737 = vld [vmem:[%s356 + $0x21] sm:$0xff]
        %v1738 = vld [vmem:[%s356 + $0x29] sm:$0xff]
        %v1739 = vld [vmem:[%s356 + $0x31] sm:$0xff]
        %v1740 = vld [vmem:[%s356 + $0x39] sm:$0xff]
        %v1741 = vld [vmem:[%s356 + $0x41] sm:$0xff]
        %v1742 = vld [vmem:[%s356 + $0x49] sm:$0x1]
        %s1743 = scalar_lea.vmem %s1, 1008
        %v1744 = vld [vmem:[%s1743] sm:$0xff]
        %v1745 = vld [vmem:[%s1743 + $0x8] sm:$0xff]
        %v1746 = vld [vmem:[%s1743 + $0x10] sm:$0xff]
        %v1747 = vld [vmem:[%s1743 + $0x18] sm:$0xff]
        %v1748 = vld [vmem:[%s1743 + $0x20] sm:$0xff]
        %v1749 = vld [vmem:[%s1743 + $0x28] sm:$0xff]
        %v1750 = vld [vmem:[%s1743 + $0x30] sm:$0xff]
        %v1751 = vld [vmem:[%s1743 + $0x38] sm:$0xff]
        %v1752 = vld [vmem:[%s1743 + $0x40] sm:$0xff]
        %v1753 = vld [vmem:[%s1743 + $0x48] sm:$0xff]
        %v1754 = vld [vmem:[%s1743 + $0x50] sm:$0xff]
        %v1755 = vld [vmem:[%s1743 + $0x58] sm:$0xff]
        %v1756 = vld [vmem:[%s1743 + $0x60] sm:$0xff]
        %v1757 = vld [vmem:[%s1743 + $0x68] sm:$0xff]
        %v1759 = vsel %vm404, %v1734, 0
        %v1762 = vsel %vm404, %v1735, 0
        %v1765 = vsel %vm404, %v1736, 0
        %v1768 = vsel %vm404, %v1737, 0
        %v1771 = vsel %vm404, %v1738, 0
        %v1774 = vsel %vm404, %v1739, 0
        %v1777 = vsel %vm404, %v1740, 0
        %v1780 = vsel %vm404, %v1741, 0
        %v1783 = vsel %vm404, %v1742, 0
        %1785 = vmatpush.msra.mxu0 0.0
        %1786 = vmatpush.msra.mxu0 0.0
        %1787 = vmatpush.msra.mxu0 0.0
        %1788 = vmatpush.msra.mxu0 0.0
        %1789 = vmatpush.msra.mxu0 0.0
        %1790 = vmatpush.msra.mxu0 0.0
        %1791 = vmatpush.msra.mxu0 0.0
        %1792 = vmatpush.msra.mxu0 0.0
        %1793 = vmatpush.msra.mxu0 0.0
        %1794 = vmatpush.msra.mxu0 %v1756
        %1795 = vmatpush.msra.mxu0 %v1754
        %1796 = vmatpush.msra.mxu0 %v1752
        %1797 = vmatpush.msra.mxu0 %v1750
        %1798 = vmatpush.msra.mxu0 %v1748
        %1799 = vmatpush.msra.mxu0 %v1746
        %1800 = vmatpush.msra.mxu0 %v1744
        %1801 = vmatmul.f32.gmra.mxu0 %v1759
        %v1802 = vpop.f32.mrf.mxu0
        %v1803 = vadd.f32 0.0, %v1802
        %1804 = vmatmul.f32.gmra.mxu0 %v1762
        %v1805 = vpop.f32.mrf.mxu0
        %v1806 = vadd.f32 0.0, %v1805
        %1807 = vmatmul.f32.gmra.mxu0 %v1765
        %v1808 = vpop.f32.mrf.mxu0
        %v1809 = vadd.f32 0.0, %v1808
        %1810 = vmatmul.f32.gmra.mxu0 %v1768
        %v1811 = vpop.f32.mrf.mxu0
        %v1812 = vadd.f32 0.0, %v1811
        %1813 = vmatmul.f32.gmra.mxu0 %v1771
        %v1814 = vpop.f32.mrf.mxu0
        %v1815 = vadd.f32 0.0, %v1814
        %1816 = vmatmul.f32.gmra.mxu0 %v1774
        %v1817 = vpop.f32.mrf.mxu0
        %v1818 = vadd.f32 0.0, %v1817
        %1819 = vmatmul.f32.gmra.mxu0 %v1777
        %v1820 = vpop.f32.mrf.mxu0
        %v1821 = vadd.f32 0.0, %v1820
        %1822 = vmatmul.f32.gmra.mxu0 %v1780
        %v1823 = vpop.f32.mrf.mxu0
        %v1824 = vadd.f32 0.0, %v1823
        %1825 = vmatmul.f32.gmra.mxu0 %v1783
        %v1826 = vpop.f32.mrf.mxu0
        %v1827 = vadd.f32 0.0, %v1826
        %1828 = vdwg.mxu0
        %1829 = vmatpush.msra.mxu0 0.0
        %1830 = vmatpush.msra.mxu0 0.0
        %1831 = vmatpush.msra.mxu0 0.0
        %1832 = vmatpush.msra.mxu0 0.0
        %1833 = vmatpush.msra.mxu0 0.0
        %1834 = vmatpush.msra.mxu0 0.0
        %1835 = vmatpush.msra.mxu0 0.0
        %1836 = vmatpush.msra.mxu0 0.0
        %1837 = vmatpush.msra.mxu0 0.0
        %1838 = vmatpush.msra.mxu0 %v1757
        %1839 = vmatpush.msra.mxu0 %v1755
        %1840 = vmatpush.msra.mxu0 %v1753
        %1841 = vmatpush.msra.mxu0 %v1751
        %1842 = vmatpush.msra.mxu0 %v1749
        %1843 = vmatpush.msra.mxu0 %v1747
        %1844 = vmatpush.msra.mxu0 %v1745
        %1845 = vmatmul.f32.gmra.mxu0 %v1759
        %v1846 = vpop.f32.mrf.mxu0
        %v1847 = vadd.f32 0.0, %v1846
        %1848 = vmatmul.f32.gmra.mxu0 %v1762
        %v1849 = vpop.f32.mrf.mxu0
        %v1850 = vadd.f32 0.0, %v1849
        %1851 = vmatmul.f32.gmra.mxu0 %v1765
        %v1852 = vpop.f32.mrf.mxu0
        %v1853 = vadd.f32 0.0, %v1852
        %1854 = vmatmul.f32.gmra.mxu0 %v1768
        %v1855 = vpop.f32.mrf.mxu0
        %v1856 = vadd.f32 0.0, %v1855
        %1857 = vmatmul.f32.gmra.mxu0 %v1771
        %v1858 = vpop.f32.mrf.mxu0
        %v1859 = vadd.f32 0.0, %v1858
        %1860 = vmatmul.f32.gmra.mxu0 %v1774
        %v1861 = vpop.f32.mrf.mxu0
        %v1862 = vadd.f32 0.0, %v1861
        %1863 = vmatmul.f32.gmra.mxu0 %v1777
        %v1864 = vpop.f32.mrf.mxu0
        %v1865 = vadd.f32 0.0, %v1864
        %1866 = vmatmul.f32.gmra.mxu0 %v1780
        %v1867 = vpop.f32.mrf.mxu0
        %v1868 = vadd.f32 0.0, %v1867
        %1869 = vmatmul.f32.gmra.mxu0 %v1783
        %v1870 = vpop.f32.mrf.mxu0
        %v1871 = vadd.f32 0.0, %v1870
        %1872 = vdwg.mxu0
        %v1873 = vadd.f32 %v1716, %v1803
        %v1874 = vadd.f32 %v1717, %v1847
        %v1875 = vadd.f32 %v1718, %v1806
        %v1876 = vadd.f32 %v1719, %v1850
        %v1877 = vadd.f32 %v1720, %v1809
        %v1878 = vadd.f32 %v1721, %v1853
        %v1879 = vadd.f32 %v1722, %v1812
        %v1880 = vadd.f32 %v1723, %v1856
        %v1881 = vadd.f32 %v1724, %v1815
        %v1882 = vadd.f32 %v1725, %v1859
        %v1883 = vadd.f32 %v1726, %v1818
        %v1884 = vadd.f32 %v1727, %v1862
        %v1885 = vadd.f32 %v1728, %v1821
        %v1886 = vadd.f32 %v1729, %v1865
        %v1887 = vadd.f32 %v1730, %v1824
        %v1888 = vadd.f32 %v1731, %v1868
        %v1889 = vadd.f32 %v1732, %v1827
        %v1890 = vadd.f32 %v1733, %v1871
        %v1891 = vld [vmem:[%s2] sm:$0x3]
        %v1893 = vperm.slane %v1891, 0
        %v1894 = vperm.slane %v1891, 1
        %v1897 = vadd.f32 %v1873, %v1893
        %v1898 = vadd.f32 %v1874, %v1894
        %v1899 = vadd.f32 %v1875, %v1893
        %v1900 = vadd.f32 %v1876, %v1894
        %v1901 = vadd.f32 %v1877, %v1893
        %v1902 = vadd.f32 %v1878, %v1894
        %v1903 = vadd.f32 %v1879, %v1893
        %v1904 = vadd.f32 %v1880, %v1894
        %v1905 = vadd.f32 %v1881, %v1893
        %v1906 = vadd.f32 %v1882, %v1894
        %v1907 = vadd.f32 %v1883, %v1893
        %v1908 = vadd.f32 %v1884, %v1894
        %v1909 = vadd.f32 %v1885, %v1893
        %v1910 = vadd.f32 %v1886, %v1894
        %v1911 = vadd.f32 %v1887, %v1893
        %v1912 = vadd.f32 %v1888, %v1894
        %v1913 = vadd.f32 %v1889, %v1893
        %v1914 = vadd.f32 %v1890, %v1894
        %v1915 = vmax.f32 %v1897, 0.0
        %v1916 = vmax.f32 %v1898, 0.0
        %v1917 = vmax.f32 %v1899, 0.0
        %v1918 = vmax.f32 %v1900, 0.0
        %v1919 = vmax.f32 %v1901, 0.0
        %v1920 = vmax.f32 %v1902, 0.0
        %v1921 = vmax.f32 %v1903, 0.0
        %v1922 = vmax.f32 %v1904, 0.0
        %v1923 = vmax.f32 %v1905, 0.0
        %v1924 = vmax.f32 %v1906, 0.0
        %v1925 = vmax.f32 %v1907, 0.0
        %v1926 = vmax.f32 %v1908, 0.0
        %v1927 = vmax.f32 %v1909, 0.0
        %v1928 = vmax.f32 %v1910, 0.0
        %v1929 = vmax.f32 %v1911, 0.0
        %v1930 = vmax.f32 %v1912, 0.0
        %v1931 = vmax.f32 %v1913, 0.0
        %v1932 = vmax.f32 %v1914, 0.0
        %1933 = vst [vmem:[#allocation2] sm:$0xff] %v1915
        %vm1934 = vcmask 875520
        %1935 = vst.msk [vmem:[#allocation2 + $0x8] sm:$0xff] %vm1934, %v1916
        %1936 = vst [vmem:[#allocation2 + $0x10] sm:$0xff] %v1917
        %1937 = vst.msk [vmem:[#allocation2 + $0x18] sm:$0xff] %vm1934, %v1918
        %1938 = vst [vmem:[#allocation2 + $0x20] sm:$0xff] %v1919
        %1939 = vst.msk [vmem:[#allocation2 + $0x28] sm:$0xff] %vm1934, %v1920
        %1940 = vst [vmem:[#allocation2 + $0x30] sm:$0xff] %v1921
        %1941 = vst.msk [vmem:[#allocation2 + $0x38] sm:$0xff] %vm1934, %v1922
        %1942 = vst [vmem:[#allocation2 + $0x40] sm:$0xff] %v1923
        %1943 = vst.msk [vmem:[#allocation2 + $0x48] sm:$0xff] %vm1934, %v1924
        %1944 = vst [vmem:[#allocation2 + $0x50] sm:$0xff] %v1925
        %1945 = vst.msk [vmem:[#allocation2 + $0x58] sm:$0xff] %vm1934, %v1926
        %1946 = vst [vmem:[#allocation2 + $0x60] sm:$0xff] %v1927
        %1947 = vst.msk [vmem:[#allocation2 + $0x68] sm:$0xff] %vm1934, %v1928
        %1948 = vst [vmem:[#allocation2 + $0x70] sm:$0xff] %v1929
        %1949 = vst.msk [vmem:[#allocation2 + $0x78] sm:$0xff] %vm1934, %v1930
        %1950 = vst [vmem:[#allocation2 + $0x80] sm:$0x1] %v1931
        %vm1951 = vcmask 868352
        %1952 = vst.msk [vmem:[#allocation2 + $0x88] sm:$0x1] %vm1951, %v1932
        %v1953 = vld [vmem:[#allocation2] sm:$0xff]
        %v1954 = vld [vmem:[#allocation2 + $0x8] sm:$0xff]
        %v1955 = vld [vmem:[#allocation2 + $0x10] sm:$0xff]
        %v1956 = vld [vmem:[#allocation2 + $0x18] sm:$0xff]
        %v1957 = vld [vmem:[#allocation2 + $0x20] sm:$0xff]
        %v1958 = vld [vmem:[#allocation2 + $0x28] sm:$0xff]
        %v1959 = vld [vmem:[#allocation2 + $0x30] sm:$0xff]
        %v1960 = vld [vmem:[#allocation2 + $0x38] sm:$0xff]
        %v1961 = vld [vmem:[#allocation2 + $0x40] sm:$0xff]
        %v1962 = vld [vmem:[#allocation2 + $0x48] sm:$0xff]
        %v1963 = vld [vmem:[#allocation2 + $0x50] sm:$0xff]
        %v1964 = vld [vmem:[#allocation2 + $0x58] sm:$0xff]
        %v1965 = vld [vmem:[#allocation2 + $0x60] sm:$0xff]
        %v1966 = vld [vmem:[#allocation2 + $0x68] sm:$0xff]
        %v1967 = vld [vmem:[#allocation2 + $0x70] sm:$0xff]
        %v1968 = vld [vmem:[#allocation2 + $0x78] sm:$0xff]
        %v1969 = vld [vmem:[#allocation2 + $0x80] sm:$0x1]
        %v1970 = vld [vmem:[#allocation2 + $0x88] sm:$0x1]
        %1989 = vrot.lane.b32.xlu0 %v1953, 127
        %v1990 = vpop.permute.xlu0 %1989
        %1991 = vrot.lane.b32.xlu0 %v1954, 127
        %v1992 = vpop.permute.xlu0 %1991
        %1993 = vrot.lane.b32.xlu0 %v1955, 127
        %v1994 = vpop.permute.xlu0 %1993
        %1995 = vrot.lane.b32.xlu0 %v1956, 127
        %v1996 = vpop.permute.xlu0 %1995
        %1997 = vrot.lane.b32.xlu0 %v1957, 127
        %v1998 = vpop.permute.xlu0 %1997
        %1999 = vrot.lane.b32.xlu0 %v1958, 127
        %v2000 = vpop.permute.xlu0 %1999
        %2001 = vrot.lane.b32.xlu0 %v1959, 127
        %v2002 = vpop.permute.xlu0 %2001
        %2003 = vrot.lane.b32.xlu0 %v1960, 127
        %v2004 = vpop.permute.xlu0 %2003
        %2005 = vrot.lane.b32.xlu0 %v1961, 127
        %v2006 = vpop.permute.xlu0 %2005
        %2007 = vrot.lane.b32.xlu0 %v1962, 127
        %v2008 = vpop.permute.xlu0 %2007
        %2009 = vrot.lane.b32.xlu0 %v1963, 127
        %v2010 = vpop.permute.xlu0 %2009
        %2011 = vrot.lane.b32.xlu0 %v1964, 127
        %v2012 = vpop.permute.xlu0 %2011
        %2013 = vrot.lane.b32.xlu0 %v1965, 127
        %v2014 = vpop.permute.xlu0 %2013
        %2015 = vrot.lane.b32.xlu0 %v1966, 127
        %v2016 = vpop.permute.xlu0 %2015
        %2017 = vrot.lane.b32.xlu0 %v1967, 127
        %v2018 = vpop.permute.xlu0 %2017
        %2019 = vrot.lane.b32.xlu0 %v1968, 127
        %v2020 = vpop.permute.xlu0 %2019
        %2021 = vrot.lane.b32.xlu0 %v1969, 127
        %v2022 = vpop.permute.xlu0 %2021
        %2023 = vrot.lane.b32.xlu0 %v1970, 127
        %v2024 = vpop.permute.xlu0 %2023
        %vm2025 = vcmask 1039360
        %v2026 = vsel %vm2025, %v1990, %v1992
        %v2027 = vsel %vm2025, %v1994, %v1996
        %v2028 = vsel %vm2025, %v1998, %v2000
        %v2029 = vsel %vm2025, %v2002, %v2004
        %v2030 = vsel %vm2025, %v2006, %v2008
        %v2031 = vsel %vm2025, %v2010, %v2012
        %v2032 = vsel %vm2025, %v2014, %v2016
        %v2033 = vsel %vm2025, %v2018, %v2020
        %v2034 = vsel %vm2025, %v2022, %v2024
        %v2053 = vmax.f32 %v1953, %v2026
        %v2054 = vmax.f32 %v1954, %v1992
        %v2055 = vmax.f32 %v1955, %v2027
        %v2056 = vmax.f32 %v1956, %v1996
        %v2057 = vmax.f32 %v1957, %v2028
        %v2058 = vmax.f32 %v1958, %v2000
        %v2059 = vmax.f32 %v1959, %v2029
        %v2060 = vmax.f32 %v1960, %v2004
        %v2061 = vmax.f32 %v1961, %v2030
        %v2062 = vmax.f32 %v1962, %v2008
        %v2063 = vmax.f32 %v1963, %v2031
        %v2064 = vmax.f32 %v1964, %v2012
        %v2065 = vmax.f32 %v1965, %v2032
        %v2066 = vmax.f32 %v1966, %v2016
        %v2067 = vmax.f32 %v1967, %v2033
        %v2068 = vmax.f32 %v1968, %v2020
        %v2069 = vmax.f32 %v1969, %v2034
        %v2070 = vmax.f32 %v1970, %v2024
        %2071 = vrot.lane.b32.xlu0 %v1953, 126
        %v2072 = vpop.permute.xlu0 %2071
        %2073 = vrot.lane.b32.xlu0 %v1954, 126
        %v2074 = vpop.permute.xlu0 %2073
        %2075 = vrot.lane.b32.xlu0 %v1955, 126
        %v2076 = vpop.permute.xlu0 %2075
        %2077 = vrot.lane.b32.xlu0 %v1956, 126
        %v2078 = vpop.permute.xlu0 %2077
        %2079 = vrot.lane.b32.xlu0 %v1957, 126
        %v2080 = vpop.permute.xlu0 %2079
        %2081 = vrot.lane.b32.xlu0 %v1958, 126
        %v2082 = vpop.permute.xlu0 %2081
        %2083 = vrot.lane.b32.xlu0 %v1959, 126
        %v2084 = vpop.permute.xlu0 %2083
        %2085 = vrot.lane.b32.xlu0 %v1960, 126
        %v2086 = vpop.permute.xlu0 %2085
        %2087 = vrot.lane.b32.xlu0 %v1961, 126
        %v2088 = vpop.permute.xlu0 %2087
        %2089 = vrot.lane.b32.xlu0 %v1962, 126
        %v2090 = vpop.permute.xlu0 %2089
        %2091 = vrot.lane.b32.xlu0 %v1963, 126
        %v2092 = vpop.permute.xlu0 %2091
        %2093 = vrot.lane.b32.xlu0 %v1964, 126
        %v2094 = vpop.permute.xlu0 %2093
        %2095 = vrot.lane.b32.xlu0 %v1965, 126
        %v2096 = vpop.permute.xlu0 %2095
        %2097 = vrot.lane.b32.xlu0 %v1966, 126
        %v2098 = vpop.permute.xlu0 %2097
        %2099 = vrot.lane.b32.xlu0 %v1967, 126
        %v2100 = vpop.permute.xlu0 %2099
        %2101 = vrot.lane.b32.xlu0 %v1968, 126
        %v2102 = vpop.permute.xlu0 %2101
        %2103 = vrot.lane.b32.xlu0 %v1969, 126
        %v2104 = vpop.permute.xlu0 %2103
        %2105 = vrot.lane.b32.xlu0 %v1970, 126
        %v2106 = vpop.permute.xlu0 %2105
        %vm2107 = vcmask 1031168
        %v2108 = vsel %vm2107, %v2072, %v2074
        %v2109 = vsel %vm2107, %v2076, %v2078
        %v2110 = vsel %vm2107, %v2080, %v2082
        %v2111 = vsel %vm2107, %v2084, %v2086
        %v2112 = vsel %vm2107, %v2088, %v2090
        %v2113 = vsel %vm2107, %v2092, %v2094
        %v2114 = vsel %vm2107, %v2096, %v2098
        %v2115 = vsel %vm2107, %v2100, %v2102
        %v2116 = vsel %vm2107, %v2104, %v2106
        %v2135 = vmax.f32 %v2053, %v2108
        %v2136 = vmax.f32 %v2054, %v2074
        %v2137 = vmax.f32 %v2055, %v2109
        %v2138 = vmax.f32 %v2056, %v2078
        %v2139 = vmax.f32 %v2057, %v2110
        %v2140 = vmax.f32 %v2058, %v2082
        %v2141 = vmax.f32 %v2059, %v2111
        %v2142 = vmax.f32 %v2060, %v2086
        %v2143 = vmax.f32 %v2061, %v2112
        %v2144 = vmax.f32 %v2062, %v2090
        %v2145 = vmax.f32 %v2063, %v2113
        %v2146 = vmax.f32 %v2064, %v2094
        %v2147 = vmax.f32 %v2065, %v2114
        %v2148 = vmax.f32 %v2066, %v2098
        %v2149 = vmax.f32 %v2067, %v2115
        %v2150 = vmax.f32 %v2068, %v2102
        %v2151 = vmax.f32 %v2069, %v2116
        %v2152 = vmax.f32 %v2070, %v2106
        %2153 = vrot.lane.b32.xlu0 %v1953, 125
        %v2154 = vpop.permute.xlu0 %2153
        %2155 = vrot.lane.b32.xlu0 %v1954, 125
        %v2156 = vpop.permute.xlu0 %2155
        %2157 = vrot.lane.b32.xlu0 %v1955, 125
        %v2158 = vpop.permute.xlu0 %2157
        %2159 = vrot.lane.b32.xlu0 %v1956, 125
        %v2160 = vpop.permute.xlu0 %2159
        %2161 = vrot.lane.b32.xlu0 %v1957, 125
        %v2162 = vpop.permute.xlu0 %2161
        %2163 = vrot.lane.b32.xlu0 %v1958, 125
        %v2164 = vpop.permute.xlu0 %2163
        %2165 = vrot.lane.b32.xlu0 %v1959, 125
        %v2166 = vpop.permute.xlu0 %2165
        %2167 = vrot.lane.b32.xlu0 %v1960, 125
        %v2168 = vpop.permute.xlu0 %2167
        %2169 = vrot.lane.b32.xlu0 %v1961, 125
        %v2170 = vpop.permute.xlu0 %2169
        %2171 = vrot.lane.b32.xlu0 %v1962, 125
        %v2172 = vpop.permute.xlu0 %2171
        %2173 = vrot.lane.b32.xlu0 %v1963, 125
        %v2174 = vpop.permute.xlu0 %2173
        %2175 = vrot.lane.b32.xlu0 %v1964, 125
        %v2176 = vpop.permute.xlu0 %2175
        %2177 = vrot.lane.b32.xlu0 %v1965, 125
        %v2178 = vpop.permute.xlu0 %2177
        %2179 = vrot.lane.b32.xlu0 %v1966, 125
        %v2180 = vpop.permute.xlu0 %2179
        %2181 = vrot.lane.b32.xlu0 %v1967, 125
        %v2182 = vpop.permute.xlu0 %2181
        %2183 = vrot.lane.b32.xlu0 %v1968, 125
        %v2184 = vpop.permute.xlu0 %2183
        %2185 = vrot.lane.b32.xlu0 %v1969, 125
        %v2186 = vpop.permute.xlu0 %2185
        %2187 = vrot.lane.b32.xlu0 %v1970, 125
        %v2188 = vpop.permute.xlu0 %2187
        %vm2189 = vcmask 1022976
        %v2190 = vsel %vm2189, %v2154, %v2156
        %v2191 = vsel %vm2189, %v2158, %v2160
        %v2192 = vsel %vm2189, %v2162, %v2164
        %v2193 = vsel %vm2189, %v2166, %v2168
        %v2194 = vsel %vm2189, %v2170, %v2172
        %v2195 = vsel %vm2189, %v2174, %v2176
        %v2196 = vsel %vm2189, %v2178, %v2180
        %v2197 = vsel %vm2189, %v2182, %v2184
        %v2198 = vsel %vm2189, %v2186, %v2188
        %v2217 = vmax.f32 %v2135, %v2190
        %v2218 = vmax.f32 %v2136, %v2156
        %v2219 = vmax.f32 %v2137, %v2191
        %v2220 = vmax.f32 %v2138, %v2160
        %v2221 = vmax.f32 %v2139, %v2192
        %v2222 = vmax.f32 %v2140, %v2164
        %v2223 = vmax.f32 %v2141, %v2193
        %v2224 = vmax.f32 %v2142, %v2168
        %v2225 = vmax.f32 %v2143, %v2194
        %v2226 = vmax.f32 %v2144, %v2172
        %v2227 = vmax.f32 %v2145, %v2195
        %v2228 = vmax.f32 %v2146, %v2176
        %v2229 = vmax.f32 %v2147, %v2196
        %v2230 = vmax.f32 %v2148, %v2180
        %v2231 = vmax.f32 %v2149, %v2197
        %v2232 = vmax.f32 %v2150, %v2184
        %v2233 = vmax.f32 %v2151, %v2198
        %v2234 = vmax.f32 %v2152, %v2188
        %2235 = vrot.lane.b32.xlu0 %v1953, 124
        %v2236 = vpop.permute.xlu0 %2235
        %2237 = vrot.lane.b32.xlu0 %v1954, 124
        %v2238 = vpop.permute.xlu0 %2237
        %2239 = vrot.lane.b32.xlu0 %v1955, 124
        %v2240 = vpop.permute.xlu0 %2239
        %2241 = vrot.lane.b32.xlu0 %v1956, 124
        %v2242 = vpop.permute.xlu0 %2241
        %2243 = vrot.lane.b32.xlu0 %v1957, 124
        %v2244 = vpop.permute.xlu0 %2243
        %2245 = vrot.lane.b32.xlu0 %v1958, 124
        %v2246 = vpop.permute.xlu0 %2245
        %2247 = vrot.lane.b32.xlu0 %v1959, 124
        %v2248 = vpop.permute.xlu0 %2247
        %2249 = vrot.lane.b32.xlu0 %v1960, 124
        %v2250 = vpop.permute.xlu0 %2249
        %2251 = vrot.lane.b32.xlu0 %v1961, 124
        %v2252 = vpop.permute.xlu0 %2251
        %2253 = vrot.lane.b32.xlu0 %v1962, 124
        %v2254 = vpop.permute.xlu0 %2253
        %2255 = vrot.lane.b32.xlu0 %v1963, 124
        %v2256 = vpop.permute.xlu0 %2255
        %2257 = vrot.lane.b32.xlu0 %v1964, 124
        %v2258 = vpop.permute.xlu0 %2257
        %2259 = vrot.lane.b32.xlu0 %v1965, 124
        %v2260 = vpop.permute.xlu0 %2259
        %2261 = vrot.lane.b32.xlu0 %v1966, 124
        %v2262 = vpop.permute.xlu0 %2261
        %2263 = vrot.lane.b32.xlu0 %v1967, 124
        %v2264 = vpop.permute.xlu0 %2263
        %2265 = vrot.lane.b32.xlu0 %v1968, 124
        %v2266 = vpop.permute.xlu0 %2265
        %2267 = vrot.lane.b32.xlu0 %v1969, 124
        %v2268 = vpop.permute.xlu0 %2267
        %2269 = vrot.lane.b32.xlu0 %v1970, 124
        %v2270 = vpop.permute.xlu0 %2269
        %vm2271 = vcmask 1014784
        %v2272 = vsel %vm2271, %v2236, %v2238
        %v2273 = vsel %vm2271, %v2240, %v2242
        %v2274 = vsel %vm2271, %v2244, %v2246
        %v2275 = vsel %vm2271, %v2248, %v2250
        %v2276 = vsel %vm2271, %v2252, %v2254
        %v2277 = vsel %vm2271, %v2256, %v2258
        %v2278 = vsel %vm2271, %v2260, %v2262
        %v2279 = vsel %vm2271, %v2264, %v2266
        %v2280 = vsel %vm2271, %v2268, %v2270
        %v2299 = vmax.f32 %v2217, %v2272
        %v2300 = vmax.f32 %v2218, %v2238
        %v2301 = vmax.f32 %v2219, %v2273
        %v2302 = vmax.f32 %v2220, %v2242
        %v2303 = vmax.f32 %v2221, %v2274
        %v2304 = vmax.f32 %v2222, %v2246
        %v2305 = vmax.f32 %v2223, %v2275
        %v2306 = vmax.f32 %v2224, %v2250
        %v2307 = vmax.f32 %v2225, %v2276
        %v2308 = vmax.f32 %v2226, %v2254
        %v2309 = vmax.f32 %v2227, %v2277
        %v2310 = vmax.f32 %v2228, %v2258
        %v2311 = vmax.f32 %v2229, %v2278
        %v2312 = vmax.f32 %v2230, %v2262
        %v2313 = vmax.f32 %v2231, %v2279
        %v2314 = vmax.f32 %v2232, %v2266
        %v2315 = vmax.f32 %v2233, %v2280
        %v2316 = vmax.f32 %v2234, %v2270
        %2317 = vst [vmem:[#allocation3] sm:$0xff] %v2299
        %vm2318 = vcmask 842752
        %2319 = vst.msk [vmem:[#allocation3 + $0x8] sm:$0xff] %vm2318, %v2300
        %2320 = vst [vmem:[#allocation3 + $0x10] sm:$0xff] %v2301
        %2321 = vst.msk [vmem:[#allocation3 + $0x18] sm:$0xff] %vm2318, %v2302
        %2322 = vst [vmem:[#allocation3 + $0x20] sm:$0xff] %v2303
        %2323 = vst.msk [vmem:[#allocation3 + $0x28] sm:$0xff] %vm2318, %v2304
        %2324 = vst [vmem:[#allocation3 + $0x30] sm:$0xff] %v2305
        %2325 = vst.msk [vmem:[#allocation3 + $0x38] sm:$0xff] %vm2318, %v2306
        %2326 = vst [vmem:[#allocation3 + $0x40] sm:$0xff] %v2307
        %2327 = vst.msk [vmem:[#allocation3 + $0x48] sm:$0xff] %vm2318, %v2308
        %2328 = vst [vmem:[#allocation3 + $0x50] sm:$0xff] %v2309
        %2329 = vst.msk [vmem:[#allocation3 + $0x58] sm:$0xff] %vm2318, %v2310
        %2330 = vst [vmem:[#allocation3 + $0x60] sm:$0xff] %v2311
        %2331 = vst.msk [vmem:[#allocation3 + $0x68] sm:$0xff] %vm2318, %v2312
        %2332 = vst [vmem:[#allocation3 + $0x70] sm:$0xff] %v2313
        %2333 = vst.msk [vmem:[#allocation3 + $0x78] sm:$0xff] %vm2318, %v2314
        %2334 = vst [vmem:[#allocation3 + $0x80] sm:$0x1] %v2315
        %vm2335 = vcmask 835584
        %2336 = vst.msk [vmem:[#allocation3 + $0x88] sm:$0x1] %vm2335, %v2316
        %v2337 = vld [vmem:[#allocation3] sm:$0xff]
        %v2338 = vld [vmem:[#allocation3 + $0x8] sm:$0xff]
        %v2339 = vld [vmem:[#allocation3 + $0x10] sm:$0xff]
        %v2340 = vld [vmem:[#allocation3 + $0x18] sm:$0xff]
        %v2341 = vld [vmem:[#allocation3 + $0x20] sm:$0xff]
        %v2342 = vld [vmem:[#allocation3 + $0x28] sm:$0xff]
        %v2343 = vld [vmem:[#allocation3 + $0x30] sm:$0xff]
        %v2344 = vld [vmem:[#allocation3 + $0x38] sm:$0xff]
        %v2345 = vld [vmem:[#allocation3 + $0x40] sm:$0xff]
        %v2346 = vld [vmem:[#allocation3 + $0x48] sm:$0xff]
        %v2347 = vld [vmem:[#allocation3 + $0x50] sm:$0xff]
        %v2348 = vld [vmem:[#allocation3 + $0x58] sm:$0xff]
        %v2349 = vld [vmem:[#allocation3 + $0x60] sm:$0xff]
        %v2350 = vld [vmem:[#allocation3 + $0x68] sm:$0xff]
        %v2351 = vld [vmem:[#allocation3 + $0x70] sm:$0x1f]
        %v2352 = vld [vmem:[#allocation3 + $0x78] sm:$0x1f]
        %v2353 = vld [vmem:[#allocation3] sm:$0xfe]
        %v2354 = vld [vmem:[#allocation3 + $0x8] sm:$0xfe]
        %v2355 = vld [vmem:[#allocation3 + $0x70] sm:$0x3f]
        %v2356 = vld [vmem:[#allocation3 + $0x78] sm:$0x3f]
        %vm2373 = vcmask 1046528
        %v2374 = vrot.slane %v2353, 1
        %v2375 = vrot.slane %v2339, 1
        %v2376 = vsel %vm2373, %v2374, %v2375
        %v2377 = vrot.slane %v2354, 1
        %v2378 = vrot.slane %v2340, 1
        %v2379 = vsel %vm2373, %v2377, %v2378
        %v2380 = vrot.slane %v2341, 1
        %v2381 = vsel %vm2373, %v2375, %v2380
        %v2382 = vrot.slane %v2342, 1
        %v2383 = vsel %vm2373, %v2378, %v2382
        %v2384 = vrot.slane %v2343, 1
        %v2385 = vsel %vm2373, %v2380, %v2384
        %v2386 = vrot.slane %v2344, 1
        %v2387 = vsel %vm2373, %v2382, %v2386
        %v2388 = vrot.slane %v2345, 1
        %v2389 = vsel %vm2373, %v2384, %v2388
        %v2390 = vrot.slane %v2346, 1
        %v2391 = vsel %vm2373, %v2386, %v2390
        %v2392 = vrot.slane %v2347, 1
        %v2393 = vsel %vm2373, %v2388, %v2392
        %v2394 = vrot.slane %v2348, 1
        %v2395 = vsel %vm2373, %v2390, %v2394
        %v2396 = vrot.slane %v2349, 1
        %v2397 = vsel %vm2373, %v2392, %v2396
        %v2398 = vrot.slane %v2350, 1
        %v2399 = vsel %vm2373, %v2394, %v2398
        %v2400 = vrot.slane %v2355, 1
        %v2401 = vsel %vm2373, %v2396, %v2400
        %v2402 = vrot.slane %v2356, 1
        %v2403 = vsel %vm2373, %v2398, %v2402
        %v2420 = vmax.f32 %v2337, %v2376
        %v2421 = vmax.f32 %v2338, %v2379
        %v2422 = vmax.f32 %v2339, %v2381
        %v2423 = vmax.f32 %v2340, %v2383
        %v2424 = vmax.f32 %v2341, %v2385
        %v2425 = vmax.f32 %v2342, %v2387
        %v2426 = vmax.f32 %v2343, %v2389
        %v2427 = vmax.f32 %v2344, %v2391
        %v2428 = vmax.f32 %v2345, %v2393
        %v2429 = vmax.f32 %v2346, %v2395
        %v2430 = vmax.f32 %v2347, %v2397
        %v2431 = vmax.f32 %v2348, %v2399
        %v2432 = vmax.f32 %v2349, %v2401
        %v2433 = vmax.f32 %v2350, %v2403
        %v2434 = vmax.f32 %v2351, %v2400
        %v2435 = vmax.f32 %v2352, %v2402
        %v2436 = vld [vmem:[#allocation3] sm:$0xfc]
        %v2437 = vld [vmem:[#allocation3 + $0x8] sm:$0xfc]
        %v2438 = vld [vmem:[#allocation3 + $0x70] sm:$0x7f]
        %v2439 = vld [vmem:[#allocation3 + $0x78] sm:$0x7f]
        %vm2444 = vcmask 1045504
        %v2445 = vrot.slane %v2436, 2
        %v2446 = vrot.slane %v2339, 2
        %v2447 = vsel %vm2444, %v2445, %v2446
        %v2448 = vrot.slane %v2437, 2
        %v2449 = vrot.slane %v2340, 2
        %v2450 = vsel %vm2444, %v2448, %v2449
        %v2451 = vrot.slane %v2341, 2
        %v2452 = vsel %vm2444, %v2446, %v2451
        %v2453 = vrot.slane %v2342, 2
        %v2454 = vsel %vm2444, %v2449, %v2453
        %v2455 = vrot.slane %v2343, 2
        %v2456 = vsel %vm2444, %v2451, %v2455
        %v2457 = vrot.slane %v2344, 2
        %v2458 = vsel %vm2444, %v2453, %v2457
        %v2459 = vrot.slane %v2345, 2
        %v2460 = vsel %vm2444, %v2455, %v2459
        %v2461 = vrot.slane %v2346, 2
        %v2462 = vsel %vm2444, %v2457, %v2461
        %v2463 = vrot.slane %v2347, 2
        %v2464 = vsel %vm2444, %v2459, %v2463
        %v2465 = vrot.slane %v2348, 2
        %v2466 = vsel %vm2444, %v2461, %v2465
        %v2467 = vrot.slane %v2349, 2
        %v2468 = vsel %vm2444, %v2463, %v2467
        %v2469 = vrot.slane %v2350, 2
        %v2470 = vsel %vm2444, %v2465, %v2469
        %v2471 = vrot.slane %v2438, 2
        %v2472 = vsel %vm2444, %v2467, %v2471
        %v2473 = vrot.slane %v2439, 2
        %v2474 = vsel %vm2444, %v2469, %v2473
        %v2491 = vmax.f32 %v2420, %v2447
        %v2492 = vmax.f32 %v2421, %v2450
        %v2493 = vmax.f32 %v2422, %v2452
        %v2494 = vmax.f32 %v2423, %v2454
        %v2495 = vmax.f32 %v2424, %v2456
        %v2496 = vmax.f32 %v2425, %v2458
        %v2497 = vmax.f32 %v2426, %v2460
        %v2498 = vmax.f32 %v2427, %v2462
        %v2499 = vmax.f32 %v2428, %v2464
        %v2500 = vmax.f32 %v2429, %v2466
        %v2501 = vmax.f32 %v2430, %v2468
        %v2502 = vmax.f32 %v2431, %v2470
        %v2503 = vmax.f32 %v2432, %v2472
        %v2504 = vmax.f32 %v2433, %v2474
        %v2505 = vmax.f32 %v2434, %v2471
        %v2506 = vmax.f32 %v2435, %v2473
        %v2507 = vld [vmem:[#allocation3] sm:$0xf8]
        %v2508 = vld [vmem:[#allocation3 + $0x8] sm:$0xf8]
        %v2509 = vld [vmem:[#allocation3 + $0x70] sm:$0xff]
        %v2510 = vld [vmem:[#allocation3 + $0x78] sm:$0xff]
        %vm2515 = vcmask 1044480
        %v2516 = vrot.slane %v2507, 3
        %v2517 = vrot.slane %v2339, 3
        %v2518 = vsel %vm2515, %v2516, %v2517
        %v2519 = vrot.slane %v2508, 3
        %v2520 = vrot.slane %v2340, 3
        %v2521 = vsel %vm2515, %v2519, %v2520
        %v2522 = vrot.slane %v2341, 3
        %v2523 = vsel %vm2515, %v2517, %v2522
        %v2524 = vrot.slane %v2342, 3
        %v2525 = vsel %vm2515, %v2520, %v2524
        %v2526 = vrot.slane %v2343, 3
        %v2527 = vsel %vm2515, %v2522, %v2526
        %v2528 = vrot.slane %v2344, 3
        %v2529 = vsel %vm2515, %v2524, %v2528
        %v2530 = vrot.slane %v2345, 3
        %v2531 = vsel %vm2515, %v2526, %v2530
        %v2532 = vrot.slane %v2346, 3
        %v2533 = vsel %vm2515, %v2528, %v2532
        %v2534 = vrot.slane %v2347, 3
        %v2535 = vsel %vm2515, %v2530, %v2534
        %v2536 = vrot.slane %v2348, 3
        %v2537 = vsel %vm2515, %v2532, %v2536
        %v2538 = vrot.slane %v2349, 3
        %v2539 = vsel %vm2515, %v2534, %v2538
        %v2540 = vrot.slane %v2350, 3
        %v2541 = vsel %vm2515, %v2536, %v2540
        %v2542 = vrot.slane %v2509, 3
        %v2543 = vsel %vm2515, %v2538, %v2542
        %v2544 = vrot.slane %v2510, 3
        %v2545 = vsel %vm2515, %v2540, %v2544
        %v2562 = vmax.f32 %v2491, %v2518
        %v2563 = vmax.f32 %v2492, %v2521
        %v2564 = vmax.f32 %v2493, %v2523
        %v2565 = vmax.f32 %v2494, %v2525
        %v2566 = vmax.f32 %v2495, %v2527
        %v2567 = vmax.f32 %v2496, %v2529
        %v2568 = vmax.f32 %v2497, %v2531
        %v2569 = vmax.f32 %v2498, %v2533
        %v2570 = vmax.f32 %v2499, %v2535
        %v2571 = vmax.f32 %v2500, %v2537
        %v2572 = vmax.f32 %v2501, %v2539
        %v2573 = vmax.f32 %v2502, %v2541
        %v2574 = vmax.f32 %v2503, %v2543
        %v2575 = vmax.f32 %v2504, %v2545
        %v2576 = vmax.f32 %v2505, %v2542
        %v2577 = vmax.f32 %v2506, %v2544
        %v2578 = vld [vmem:[#allocation3] sm:$0xf0]
        %v2579 = vld [vmem:[#allocation3 + $0x8] sm:$0xf0]
        %v2580 = vld [vmem:[#allocation3 + $0x80] sm:$0x1]
        %v2581 = vld [vmem:[#allocation3 + $0x88] sm:$0x1]
        %vm2586 = vcmask 1043456
        %v2587 = vrot.slane %v2578, 4
        %v2588 = vrot.slane %v2339, 4
        %v2589 = vsel %vm2586, %v2587, %v2588
        %v2590 = vrot.slane %v2579, 4
        %v2591 = vrot.slane %v2340, 4
        %v2592 = vsel %vm2586, %v2590, %v2591
        %v2593 = vrot.slane %v2341, 4
        %v2594 = vsel %vm2586, %v2588, %v2593
        %v2595 = vrot.slane %v2342, 4
        %v2596 = vsel %vm2586, %v2591, %v2595
        %v2597 = vrot.slane %v2343, 4
        %v2598 = vsel %vm2586, %v2593, %v2597
        %v2599 = vrot.slane %v2344, 4
        %v2600 = vsel %vm2586, %v2595, %v2599
        %v2601 = vrot.slane %v2345, 4
        %v2602 = vsel %vm2586, %v2597, %v2601
        %v2603 = vrot.slane %v2346, 4
        %v2604 = vsel %vm2586, %v2599, %v2603
        %v2605 = vrot.slane %v2347, 4
        %v2606 = vsel %vm2586, %v2601, %v2605
        %v2607 = vrot.slane %v2348, 4
        %v2608 = vsel %vm2586, %v2603, %v2607
        %v2609 = vrot.slane %v2349, 4
        %v2610 = vsel %vm2586, %v2605, %v2609
        %v2611 = vrot.slane %v2350, 4
        %v2612 = vsel %vm2586, %v2607, %v2611
        %v2613 = vrot.slane %v2509, 4
        %v2614 = vsel %vm2586, %v2609, %v2613
        %v2615 = vrot.slane %v2510, 4
        %v2616 = vsel %vm2586, %v2611, %v2615
        %v2617 = vrot.slane %v2580, 4
        %v2618 = vsel %vm2586, %v2613, %v2617
        %v2619 = vrot.slane %v2581, 4
        %v2620 = vsel %vm2586, %v2615, %v2619
        %v2637 = vmax.f32 %v2562, %v2589
        %v2638 = vmax.f32 %v2563, %v2592
        %v2639 = vmax.f32 %v2564, %v2594
        %v2640 = vmax.f32 %v2565, %v2596
        %v2641 = vmax.f32 %v2566, %v2598
        %v2642 = vmax.f32 %v2567, %v2600
        %v2643 = vmax.f32 %v2568, %v2602
        %v2644 = vmax.f32 %v2569, %v2604
        %v2645 = vmax.f32 %v2570, %v2606
        %v2646 = vmax.f32 %v2571, %v2608
        %v2647 = vmax.f32 %v2572, %v2610
        %v2648 = vmax.f32 %v2573, %v2612
        %v2649 = vmax.f32 %v2574, %v2614
        %v2650 = vmax.f32 %v2575, %v2616
        %v2651 = vmax.f32 %v2576, %v2618
        %v2652 = vmax.f32 %v2577, %v2620
        %v2653 = vld [vmem:[%s3] sm:$0xff]
        %v2654 = vld [vmem:[%s3 + $0x8] sm:$0xff]
        %v2655 = vld [vmem:[%s3 + $0x10] sm:$0x1f]
        %vm2656 = vcmask 498688
        %v2658 = vsel %vm2656, %v2653, 0
        %v2661 = vsel %vm2656, %v2654, 0
        %v2664 = vsel %vm2656, %v2655, 0
        %v2667 = vsel %vm2515, %v2651, 0
        %v2670 = vsel %vm2515, %v2652, 0
        %2672 = vmatpush.msra.mxu0 0.0
        %2673 = vmatpush.msra.mxu0 0.0
        %2674 = vmatpush.msra.mxu0 0.0
        %2675 = vmatpush.msra.mxu0 0.0
        %2676 = vmatpush.msra.mxu0 0.0
        %2677 = vmatpush.msra.mxu0 0.0
        %2678 = vmatpush.msra.mxu0 0.0
        %2679 = vmatpush.msra.mxu0 0.0
        %2680 = vmatpush.msra.mxu0 %v2667
        %2681 = vmatpush.msra.mxu0 %v2649
        %2682 = vmatpush.msra.mxu0 %v2647
        %2683 = vmatpush.msra.mxu0 %v2645
        %2684 = vmatpush.msra.mxu0 %v2643
        %2685 = vmatpush.msra.mxu0 %v2641
        %2686 = vmatpush.msra.mxu0 %v2639
        %2687 = vmatpush.msra.mxu0 %v2637
        %2688 = vmatmul.f32.gmra.mxu0 %v2658
        %v2689 = vpop.f32.mrf.mxu0
        %v2690 = vadd.f32 0.0, %v2689
        %2691 = vmatmul.f32.gmra.mxu0 %v2661
        %v2692 = vpop.f32.mrf.mxu0
        %v2693 = vadd.f32 0.0, %v2692
        %2694 = vmatmul.f32.gmra.mxu0 %v2664
        %v2695 = vpop.f32.mrf.mxu0
        %v2696 = vadd.f32 0.0, %v2695
        %2697 = vdwg.mxu0
        %2698 = vmatpush.msra.mxu0 0.0
        %2699 = vmatpush.msra.mxu0 0.0
        %2700 = vmatpush.msra.mxu0 0.0
        %2701 = vmatpush.msra.mxu0 0.0
        %2702 = vmatpush.msra.mxu0 0.0
        %2703 = vmatpush.msra.mxu0 0.0
        %2704 = vmatpush.msra.mxu0 0.0
        %2705 = vmatpush.msra.mxu0 0.0
        %2706 = vmatpush.msra.mxu0 %v2670
        %2707 = vmatpush.msra.mxu0 %v2650
        %2708 = vmatpush.msra.mxu0 %v2648
        %2709 = vmatpush.msra.mxu0 %v2646
        %2710 = vmatpush.msra.mxu0 %v2644
        %2711 = vmatpush.msra.mxu0 %v2642
        %2712 = vmatpush.msra.mxu0 %v2640
        %2713 = vmatpush.msra.mxu0 %v2638
        %2714 = vmatmul.f32.gmra.mxu0 %v2658
        %v2715 = vpop.f32.mrf.mxu0
        %v2716 = vadd.f32 0.0, %v2715
        %2717 = vmatmul.f32.gmra.mxu0 %v2661
        %v2718 = vpop.f32.mrf.mxu0
        %v2719 = vadd.f32 0.0, %v2718
        %2720 = vmatmul.f32.gmra.mxu0 %v2664
        %v2721 = vpop.f32.mrf.mxu0
        %v2722 = vadd.f32 0.0, %v2721
        %2723 = vdwg.mxu0
        %v2724 = vld [vmem:[%s4] sm:$0xff]
        %v2725 = vld [vmem:[%s4 + $0x8] sm:$0xff]
        %v2726 = vld [vmem:[%s4 + $0x10] sm:$0xff]
        %v2727 = vld [vmem:[%s4 + $0x18] sm:$0xff]
        %v2728 = vld [vmem:[%s4 + $0x20] sm:$0xff]
        %v2729 = vld [vmem:[%s4 + $0x28] sm:$0xff]
        %v2730 = vld [vmem:[%s4 + $0x30] sm:$0xff]
        %v2731 = vld [vmem:[%s4 + $0x38] sm:$0xff]
        %v2732 = vld [vmem:[%s4 + $0x40] sm:$0xff]
        %v2733 = vld [vmem:[%s4 + $0x48] sm:$0xff]
        %v2734 = vld [vmem:[%s4 + $0x50] sm:$0xff]
        %v2735 = vld [vmem:[%s4 + $0x58] sm:$0xff]
        %v2736 = vld [vmem:[%s4 + $0x60] sm:$0xff]
        %v2737 = vld [vmem:[%s4 + $0x68] sm:$0xff]
        %v2738 = vld [vmem:[%s4 + $0x70] sm:$0xff]
        %v2739 = vld [vmem:[%s4 + $0x78] sm:$0xff]
        %v2740 = vld [vmem:[%s4 + $0x80] sm:$0xff]
        %v2741 = vld [vmem:[%s4 + $0x88] sm:$0xff]
        %v2742 = vld [vmem:[%s4 + $0x90] sm:$0xff]
        %v2743 = vld [vmem:[%s4 + $0x98] sm:$0xff]
        %v2744 = vld [vmem:[%s4 + $0xa0] sm:$0xff]
        %v2745 = vld [vmem:[%s4 + $0xa8] sm:$0xff]
        %v2746 = vld [vmem:[%s4 + $0xb0] sm:$0xff]
        %v2747 = vld [vmem:[%s4 + $0xb8] sm:$0xff]
        %v2748 = vld [vmem:[%s4 + $0xc0] sm:$0xff]
        %v2749 = vld [vmem:[%s4 + $0xc8] sm:$0xff]
        %v2750 = vld [vmem:[%s4 + $0xd0] sm:$0xff]
        %v2751 = vld [vmem:[%s4 + $0xd8] sm:$0xff]
        %v2752 = vld [vmem:[%s4 + $0xe0] sm:$0xff]
        %v2753 = vld [vmem:[%s4 + $0xe8] sm:$0xff]
        %v2754 = vld [vmem:[%s4 + $0xf0] sm:$0xff]
        %v2755 = vld [vmem:[%s4 + $0xf8] sm:$0xff]
        %v2756 = vld [vmem:[%s4 + $0x100] sm:$0xff]
        %v2757 = vld [vmem:[%s4 + $0x108] sm:$0xff]
        %v2758 = vld [vmem:[%s4 + $0x110] sm:$0xff]
        %v2759 = vld [vmem:[%s4 + $0x118] sm:$0xff]
        %v2760 = vld [vmem:[%s4 + $0x120] sm:$0xff]
        %v2761 = vld [vmem:[%s4 + $0x128] sm:$0xff]
        %v2762 = vld [vmem:[%s4 + $0x130] sm:$0xff]
        %v2763 = vld [vmem:[%s4 + $0x138] sm:$0xff]
        %v2764 = vld [vmem:[%s4 + $0x140] sm:$0xff]
        %v2765 = vld [vmem:[%s4 + $0x148] sm:$0xff]
        %v2766 = vld [vmem:[%s4 + $0x150] sm:$0xff]
        %v2767 = vld [vmem:[%s4 + $0x158] sm:$0xff]
        %v2768 = vld [vmem:[%s4 + $0x160] sm:$0xff]
        %v2769 = vld [vmem:[%s4 + $0x168] sm:$0xff]
        %v2770 = vld [vmem:[%s4 + $0x170] sm:$0xff]
        %v2771 = vld [vmem:[%s4 + $0x178] sm:$0xff]
        %v2772 = vld [vmem:[%s4 + $0x180] sm:$0xff]
        %v2773 = vld [vmem:[%s4 + $0x188] sm:$0xff]
        %v2774 = vld [vmem:[%s4 + $0x190] sm:$0xff]
        %v2775 = vld [vmem:[%s4 + $0x198] sm:$0xff]
        %v2776 = vld [vmem:[%s4 + $0x1a0] sm:$0xff]
        %v2777 = vld [vmem:[%s4 + $0x1a8] sm:$0xff]
        %v2778 = vld [vmem:[%s4 + $0x1b0] sm:$0xff]
        %v2779 = vld [vmem:[%s4 + $0x1b8] sm:$0xff]
        %v2780 = vld [vmem:[%s4 + $0x1c0] sm:$0xff]
        %v2781 = vld [vmem:[%s4 + $0x1c8] sm:$0xff]
        %v2782 = vld [vmem:[%s4 + $0x1d0] sm:$0xff]
        %v2783 = vld [vmem:[%s4 + $0x1d8] sm:$0xff]
        %v2784 = vld [vmem:[%s4 + $0x1e0] sm:$0xff]
        %v2785 = vld [vmem:[%s4 + $0x1e8] sm:$0xff]
        %v2786 = vld [vmem:[%s4 + $0x1f0] sm:$0xff]
        %v2787 = vld [vmem:[%s4 + $0x1f8] sm:$0xff]
        %v2788 = vld [vmem:[%s4 + $0x200] sm:$0xff]
        %v2789 = vld [vmem:[%s4 + $0x208] sm:$0xff]
        %v2790 = vld [vmem:[%s4 + $0x210] sm:$0xff]
        %v2791 = vld [vmem:[%s4 + $0x218] sm:$0xff]
        %v2792 = vld [vmem:[%s4 + $0x220] sm:$0xff]
        %v2793 = vld [vmem:[%s4 + $0x228] sm:$0xff]
        %v2794 = vld [vmem:[%s4 + $0x230] sm:$0xff]
        %v2795 = vld [vmem:[%s4 + $0x238] sm:$0xff]
        %v2796 = vld [vmem:[%s4 + $0x240] sm:$0xff]
        %v2797 = vld [vmem:[%s4 + $0x248] sm:$0xff]
        %v2798 = vld [vmem:[%s4 + $0x250] sm:$0xff]
        %v2799 = vld [vmem:[%s4 + $0x258] sm:$0xff]
        %v2800 = vld [vmem:[%s4 + $0x260] sm:$0xff]
        %v2801 = vld [vmem:[%s4 + $0x268] sm:$0xff]
        %v2802 = vld [vmem:[%s4 + $0x270] sm:$0xff]
        %v2803 = vld [vmem:[%s4 + $0x278] sm:$0xff]
        %v2804 = vld [vmem:[%s4 + $0x280] sm:$0xff]
        %v2805 = vld [vmem:[%s4 + $0x288] sm:$0xff]
        %v2806 = vld [vmem:[%s4 + $0x290] sm:$0xff]
        %v2807 = vld [vmem:[%s4 + $0x298] sm:$0xff]
        %v2808 = vld [vmem:[%s4 + $0x2a0] sm:$0xff]
        %v2809 = vld [vmem:[%s4 + $0x2a8] sm:$0xff]
        %v2810 = vld [vmem:[%s4 + $0x2b0] sm:$0xff]
        %v2811 = vld [vmem:[%s4 + $0x2b8] sm:$0xff]
        %v2812 = vld [vmem:[%s4 + $0x2c0] sm:$0xff]
        %v2813 = vld [vmem:[%s4 + $0x2c8] sm:$0xff]
        %v2814 = vld [vmem:[%s4 + $0x2d0] sm:$0xff]
        %v2815 = vld [vmem:[%s4 + $0x2d8] sm:$0xff]
        %v2816 = vld [vmem:[%s4 + $0x2e0] sm:$0xff]
        %v2817 = vld [vmem:[%s4 + $0x2e8] sm:$0xff]
        %v2818 = vld [vmem:[%s4 + $0x2f0] sm:$0xff]
        %v2819 = vld [vmem:[%s4 + $0x2f8] sm:$0xff]
        %v2820 = vld [vmem:[%s4 + $0x300] sm:$0xff]
        %v2821 = vld [vmem:[%s4 + $0x308] sm:$0xff]
        %v2822 = vld [vmem:[%s4 + $0x310] sm:$0xff]
        %v2823 = vld [vmem:[%s4 + $0x318] sm:$0xff]
        %v2824 = vld [vmem:[%s4 + $0x320] sm:$0xff]
        %v2825 = vld [vmem:[%s4 + $0x328] sm:$0xff]
        %v2826 = vld [vmem:[%s4 + $0x330] sm:$0xff]
        %v2827 = vld [vmem:[%s4 + $0x338] sm:$0xff]
        %v2828 = vld [vmem:[%s4 + $0x340] sm:$0xff]
        %v2829 = vld [vmem:[%s4 + $0x348] sm:$0xff]
        %v2830 = vld [vmem:[%s4 + $0x350] sm:$0xff]
        %v2831 = vld [vmem:[%s4 + $0x358] sm:$0xff]
        %v2832 = vld [vmem:[%s4 + $0x360] sm:$0xff]
        %v2833 = vld [vmem:[%s4 + $0x368] sm:$0xff]
        %v2834 = vld [vmem:[%s4 + $0x370] sm:$0xff]
        %v2835 = vld [vmem:[%s4 + $0x378] sm:$0xff]
        %v2836 = vld [vmem:[%s4 + $0x380] sm:$0xff]
        %v2837 = vld [vmem:[%s4 + $0x388] sm:$0xff]
        %v2838 = vld [vmem:[%s4 + $0x390] sm:$0xff]
        %v2839 = vld [vmem:[%s4 + $0x398] sm:$0xff]
        %v2840 = vld [vmem:[%s4 + $0x3a0] sm:$0xff]
        %v2841 = vld [vmem:[%s4 + $0x3a8] sm:$0xff]
        %v2842 = vld [vmem:[%s4 + $0x3b0] sm:$0xff]
        %v2843 = vld [vmem:[%s4 + $0x3b8] sm:$0xff]
        %v2844 = vld [vmem:[%s4 + $0x3c0] sm:$0xff]
        %v2845 = vld [vmem:[%s4 + $0x3c8] sm:$0xff]
        %v2846 = vld [vmem:[%s4 + $0x3d0] sm:$0xff]
        %v2847 = vld [vmem:[%s4 + $0x3d8] sm:$0xff]
        %v2848 = vld [vmem:[%s4 + $0x3e0] sm:$0xff]
        %v2849 = vld [vmem:[%s4 + $0x3e8] sm:$0xff]
        %v2850 = vld [vmem:[%s4 + $0x3f0] sm:$0xff]
        %v2851 = vld [vmem:[%s4 + $0x3f8] sm:$0xff]
        %v2852 = vld [vmem:[%s4 + $0x400] sm:$0xff]
        %v2853 = vld [vmem:[%s4 + $0x408] sm:$0xff]
        %v2854 = vld [vmem:[%s4 + $0x410] sm:$0xff]
        %v2855 = vld [vmem:[%s4 + $0x418] sm:$0xff]
        %v2856 = vld [vmem:[%s4 + $0x420] sm:$0xff]
        %v2857 = vld [vmem:[%s4 + $0x428] sm:$0xff]
        %v2858 = vld [vmem:[%s4 + $0x430] sm:$0xff]
        %v2859 = vld [vmem:[%s4 + $0x438] sm:$0xff]
        %v2860 = vld [vmem:[%s4 + $0x440] sm:$0xff]
        %v2861 = vld [vmem:[%s4 + $0x448] sm:$0xff]
        %v2862 = vld [vmem:[%s4 + $0x450] sm:$0xff]
        %v2863 = vld [vmem:[%s4 + $0x458] sm:$0xff]
        %v2864 = vld [vmem:[%s4 + $0x460] sm:$0xff]
        %v2865 = vld [vmem:[%s4 + $0x468] sm:$0xff]
        %v2866 = vld [vmem:[%s4 + $0x470] sm:$0xff]
        %v2867 = vld [vmem:[%s4 + $0x478] sm:$0xff]
        %v2868 = vld [vmem:[%s4 + $0x480] sm:$0xff]
        %v2869 = vld [vmem:[%s4 + $0x488] sm:$0xff]
        %v2870 = vld [vmem:[%s4 + $0x490] sm:$0xff]
        %v2871 = vld [vmem:[%s4 + $0x498] sm:$0xff]
        %v2872 = vld [vmem:[%s4 + $0x4a0] sm:$0xff]
        %v2873 = vld [vmem:[%s4 + $0x4a8] sm:$0xff]
        %v2874 = vld [vmem:[%s4 + $0x4b0] sm:$0xff]
        %v2875 = vld [vmem:[%s4 + $0x4b8] sm:$0xff]
        %v2876 = vld [vmem:[%s4 + $0x4c0] sm:$0xff]
        %v2877 = vld [vmem:[%s4 + $0x4c8] sm:$0xff]
        %v2878 = vld [vmem:[%s4 + $0x4d0] sm:$0xff]
        %v2879 = vld [vmem:[%s4 + $0x4d8] sm:$0xff]
        %v2880 = vld [vmem:[%s4 + $0x4e0] sm:$0xff]
        %v2881 = vld [vmem:[%s4 + $0x4e8] sm:$0xff]
        %v2882 = vld [vmem:[%s4 + $0x4f0] sm:$0xff]
        %v2883 = vld [vmem:[%s4 + $0x4f8] sm:$0xff]
        %v2884 = vld [vmem:[%s4 + $0x500] sm:$0xff]
        %v2885 = vld [vmem:[%s4 + $0x508] sm:$0xff]
        %v2886 = vld [vmem:[%s4 + $0x510] sm:$0xff]
        %v2887 = vld [vmem:[%s4 + $0x518] sm:$0xff]
        %v2888 = vld [vmem:[%s4 + $0x520] sm:$0xff]
        %v2889 = vld [vmem:[%s4 + $0x528] sm:$0xff]
        %v2890 = vld [vmem:[%s4 + $0x530] sm:$0xff]
        %v2891 = vld [vmem:[%s4 + $0x538] sm:$0xff]
        %v2892 = vld [vmem:[%s4 + $0x540] sm:$0x7f]
        %v2893 = vld [vmem:[%s4 + $0x548] sm:$0x7f]
        %v2894 = vld [vmem:[%s4 + $0x550] sm:$0x7f]
        %v2895 = vld [vmem:[%s4 + $0x558] sm:$0x7f]
        %v2896 = vld [vmem:[%s4 + $0x560] sm:$0x7f]
        %v2897 = vld [vmem:[%s4 + $0x568] sm:$0x7f]
        %v2899 = vsel %vm2318, %v2716, 0
        %v2902 = vsel %vm2318, %v2719, 0
        %v2905 = vsel %vm2318, %v2722, 0
        %v2908 = vsel %vm2373, %v2892, 0
        %v2911 = vsel %vm2373, %v2893, 0
        %v2914 = vsel %vm2373, %v2894, 0
        %v2917 = vsel %vm2373, %v2895, 0
        %v2920 = vsel %vm2373, %v2896, 0
        %v2923 = vsel %vm2373, %v2897, 0
        %2925 = vmatpush.msra.mxu0 %v2814
        %2926 = vmatpush.msra.mxu0 %v2808
        %2927 = vmatpush.msra.mxu0 %v2802
        %2928 = vmatpush.msra.mxu0 %v2796
        %2929 = vmatpush.msra.mxu0 %v2790
        %2930 = vmatpush.msra.mxu0 %v2784
        %2931 = vmatpush.msra.mxu0 %v2778
        %2932 = vmatpush.msra.mxu0 %v2772
        %2933 = vmatpush.msra.mxu0 %v2766
        %2934 = vmatpush.msra.mxu0 %v2760
        %2935 = vmatpush.msra.mxu0 %v2754
        %2936 = vmatpush.msra.mxu0 %v2748
        %2937 = vmatpush.msra.mxu0 %v2742
        %2938 = vmatpush.msra.mxu0 %v2736
        %2939 = vmatpush.msra.mxu0 %v2730
        %2940 = vmatpush.msra.mxu0 %v2724
        %2941 = vmatmul.f32.gmra.mxu0 %v2690
        %v2942 = vpop.f32.mrf.mxu0
        %v2943 = vadd.f32 0.0, %v2942
        %2944 = vmatmul.f32.gmra.mxu0 %v2693
        %v2945 = vpop.f32.mrf.mxu0
        %v2946 = vadd.f32 0.0, %v2945
        %2947 = vmatmul.f32.gmra.mxu0 %v2696
        %v2948 = vpop.f32.mrf.mxu0
        %v2949 = vadd.f32 0.0, %v2948
        %2950 = vdwg.mxu0
        %2951 = vmatpush.msra.mxu0 0.0
        %2952 = vmatpush.msra.mxu0 0.0
        %2953 = vmatpush.msra.mxu0 0.0
        %2954 = vmatpush.msra.mxu0 %v2908
        %2955 = vmatpush.msra.mxu0 %v2886
        %2956 = vmatpush.msra.mxu0 %v2880
        %2957 = vmatpush.msra.mxu0 %v2874
        %2958 = vmatpush.msra.mxu0 %v2868
        %2959 = vmatpush.msra.mxu0 %v2862
        %2960 = vmatpush.msra.mxu0 %v2856
        %2961 = vmatpush.msra.mxu0 %v2850
        %2962 = vmatpush.msra.mxu0 %v2844
        %2963 = vmatpush.msra.mxu0 %v2838
        %2964 = vmatpush.msra.mxu0 %v2832
        %2965 = vmatpush.msra.mxu0 %v2826
        %2966 = vmatpush.msra.mxu0 %v2820
        %2967 = vmatmul.f32.gmra.mxu0 %v2899
        %v2968 = vpop.f32.mrf.mxu0
        %v2969 = vadd.f32 %v2943, %v2968
        %2970 = vmatmul.f32.gmra.mxu0 %v2902
        %v2971 = vpop.f32.mrf.mxu0
        %v2972 = vadd.f32 %v2946, %v2971
        %2973 = vmatmul.f32.gmra.mxu0 %v2905
        %v2974 = vpop.f32.mrf.mxu0
        %v2975 = vadd.f32 %v2949, %v2974
        %2976 = vdwg.mxu0
        %2977 = vmatpush.msra.mxu0 %v2815
        %2978 = vmatpush.msra.mxu0 %v2809
        %2979 = vmatpush.msra.mxu0 %v2803
        %2980 = vmatpush.msra.mxu0 %v2797
        %2981 = vmatpush.msra.mxu0 %v2791
        %2982 = vmatpush.msra.mxu0 %v2785
        %2983 = vmatpush.msra.mxu0 %v2779
        %2984 = vmatpush.msra.mxu0 %v2773
        %2985 = vmatpush.msra.mxu0 %v2767
        %2986 = vmatpush.msra.mxu0 %v2761
        %2987 = vmatpush.msra.mxu0 %v2755
        %2988 = vmatpush.msra.mxu0 %v2749
        %2989 = vmatpush.msra.mxu0 %v2743
        %2990 = vmatpush.msra.mxu0 %v2737
        %2991 = vmatpush.msra.mxu0 %v2731
        %2992 = vmatpush.msra.mxu0 %v2725
        %2993 = vmatmul.f32.gmra.mxu0 %v2690
        %v2994 = vpop.f32.mrf.mxu0
        %v2995 = vadd.f32 0.0, %v2994
        %2996 = vmatmul.f32.gmra.mxu0 %v2693
        %v2997 = vpop.f32.mrf.mxu0
        %v2998 = vadd.f32 0.0, %v2997
        %2999 = vmatmul.f32.gmra.mxu0 %v2696
        %v3000 = vpop.f32.mrf.mxu0
        %v3001 = vadd.f32 0.0, %v3000
        %3002 = vdwg.mxu0
        %3003 = vmatpush.msra.mxu0 0.0
        %3004 = vmatpush.msra.mxu0 0.0
        %3005 = vmatpush.msra.mxu0 0.0
        %3006 = vmatpush.msra.mxu0 %v2911
        %3007 = vmatpush.msra.mxu0 %v2887
        %3008 = vmatpush.msra.mxu0 %v2881
        %3009 = vmatpush.msra.mxu0 %v2875
        %3010 = vmatpush.msra.mxu0 %v2869
        %3011 = vmatpush.msra.mxu0 %v2863
        %3012 = vmatpush.msra.mxu0 %v2857
        %3013 = vmatpush.msra.mxu0 %v2851
        %3014 = vmatpush.msra.mxu0 %v2845
        %3015 = vmatpush.msra.mxu0 %v2839
        %3016 = vmatpush.msra.mxu0 %v2833
        %3017 = vmatpush.msra.mxu0 %v2827
        %3018 = vmatpush.msra.mxu0 %v2821
        %3019 = vmatmul.f32.gmra.mxu0 %v2899
        %v3020 = vpop.f32.mrf.mxu0
        %v3021 = vadd.f32 %v2995, %v3020
        %3022 = vmatmul.f32.gmra.mxu0 %v2902
        %v3023 = vpop.f32.mrf.mxu0
        %v3024 = vadd.f32 %v2998, %v3023
        %3025 = vmatmul.f32.gmra.mxu0 %v2905
        %v3026 = vpop.f32.mrf.mxu0
        %v3027 = vadd.f32 %v3001, %v3026
        %3028 = vdwg.mxu0
        %3029 = vmatpush.msra.mxu0 %v2816
        %3030 = vmatpush.msra.mxu0 %v2810
        %3031 = vmatpush.msra.mxu0 %v2804
        %3032 = vmatpush.msra.mxu0 %v2798
        %3033 = vmatpush.msra.mxu0 %v2792
        %3034 = vmatpush.msra.mxu0 %v2786
        %3035 = vmatpush.msra.mxu0 %v2780
        %3036 = vmatpush.msra.mxu0 %v2774
        %3037 = vmatpush.msra.mxu0 %v2768
        %3038 = vmatpush.msra.mxu0 %v2762
        %3039 = vmatpush.msra.mxu0 %v2756
        %3040 = vmatpush.msra.mxu0 %v2750
        %3041 = vmatpush.msra.mxu0 %v2744
        %3042 = vmatpush.msra.mxu0 %v2738
        %3043 = vmatpush.msra.mxu0 %v2732
        %3044 = vmatpush.msra.mxu0 %v2726
        %3045 = vmatmul.f32.gmra.mxu0 %v2690
        %v3046 = vpop.f32.mrf.mxu0
        %v3047 = vadd.f32 0.0, %v3046
        %3048 = vmatmul.f32.gmra.mxu0 %v2693
        %v3049 = vpop.f32.mrf.mxu0
        %v3050 = vadd.f32 0.0, %v3049
        %3051 = vmatmul.f32.gmra.mxu0 %v2696
        %v3052 = vpop.f32.mrf.mxu0
        %v3053 = vadd.f32 0.0, %v3052
        %3054 = vdwg.mxu0
        %3055 = vmatpush.msra.mxu0 0.0
        %3056 = vmatpush.msra.mxu0 0.0
        %3057 = vmatpush.msra.mxu0 0.0
        %3058 = vmatpush.msra.mxu0 %v2914
        %3059 = vmatpush.msra.mxu0 %v2888
        %3060 = vmatpush.msra.mxu0 %v2882
        %3061 = vmatpush.msra.mxu0 %v2876
        %3062 = vmatpush.msra.mxu0 %v2870
        %3063 = vmatpush.msra.mxu0 %v2864
        %3064 = vmatpush.msra.mxu0 %v2858
        %3065 = vmatpush.msra.mxu0 %v2852
        %3066 = vmatpush.msra.mxu0 %v2846
        %3067 = vmatpush.msra.mxu0 %v2840
        %3068 = vmatpush.msra.mxu0 %v2834
        %3069 = vmatpush.msra.mxu0 %v2828
        %3070 = vmatpush.msra.mxu0 %v2822
        %3071 = vmatmul.f32.gmra.mxu0 %v2899
        %v3072 = vpop.f32.mrf.mxu0
        %v3073 = vadd.f32 %v3047, %v3072
        %3074 = vmatmul.f32.gmra.mxu0 %v2902
        %v3075 = vpop.f32.mrf.mxu0
        %v3076 = vadd.f32 %v3050, %v3075
        %3077 = vmatmul.f32.gmra.mxu0 %v2905
        %v3078 = vpop.f32.mrf.mxu0
        %v3079 = vadd.f32 %v3053, %v3078
        %3080 = vdwg.mxu0
        %3081 = vmatpush.msra.mxu0 %v2817
        %3082 = vmatpush.msra.mxu0 %v2811
        %3083 = vmatpush.msra.mxu0 %v2805
        %3084 = vmatpush.msra.mxu0 %v2799
        %3085 = vmatpush.msra.mxu0 %v2793
        %3086 = vmatpush.msra.mxu0 %v2787
        %3087 = vmatpush.msra.mxu0 %v2781
        %3088 = vmatpush.msra.mxu0 %v2775
        %3089 = vmatpush.msra.mxu0 %v2769
        %3090 = vmatpush.msra.mxu0 %v2763
        %3091 = vmatpush.msra.mxu0 %v2757
        %3092 = vmatpush.msra.mxu0 %v2751
        %3093 = vmatpush.msra.mxu0 %v2745
        %3094 = vmatpush.msra.mxu0 %v2739
        %3095 = vmatpush.msra.mxu0 %v2733
        %3096 = vmatpush.msra.mxu0 %v2727
        %3097 = vmatmul.f32.gmra.mxu0 %v2690
        %v3098 = vpop.f32.mrf.mxu0
        %v3099 = vadd.f32 0.0, %v3098
        %3100 = vmatmul.f32.gmra.mxu0 %v2693
        %v3101 = vpop.f32.mrf.mxu0
        %v3102 = vadd.f32 0.0, %v3101
        %3103 = vmatmul.f32.gmra.mxu0 %v2696
        %v3104 = vpop.f32.mrf.mxu0
        %v3105 = vadd.f32 0.0, %v3104
        %3106 = vdwg.mxu0
        %3107 = vmatpush.msra.mxu0 0.0
        %3108 = vmatpush.msra.mxu0 0.0
        %3109 = vmatpush.msra.mxu0 0.0
        %3110 = vmatpush.msra.mxu0 %v2917
        %3111 = vmatpush.msra.mxu0 %v2889
        %3112 = vmatpush.msra.mxu0 %v2883
        %3113 = vmatpush.msra.mxu0 %v2877
        %3114 = vmatpush.msra.mxu0 %v2871
        %3115 = vmatpush.msra.mxu0 %v2865
        %3116 = vmatpush.msra.mxu0 %v2859
        %3117 = vmatpush.msra.mxu0 %v2853
        %3118 = vmatpush.msra.mxu0 %v2847
        %3119 = vmatpush.msra.mxu0 %v2841
        %3120 = vmatpush.msra.mxu0 %v2835
        %3121 = vmatpush.msra.mxu0 %v2829
        %3122 = vmatpush.msra.mxu0 %v2823
        %3123 = vmatmul.f32.gmra.mxu0 %v2899
        %v3124 = vpop.f32.mrf.mxu0
        %v3125 = vadd.f32 %v3099, %v3124
        %3126 = vmatmul.f32.gmra.mxu0 %v2902
        %v3127 = vpop.f32.mrf.mxu0
        %v3128 = vadd.f32 %v3102, %v3127
        %3129 = vmatmul.f32.gmra.mxu0 %v2905
        %v3130 = vpop.f32.mrf.mxu0
        %v3131 = vadd.f32 %v3105, %v3130
        %3132 = vdwg.mxu0
        %3133 = vmatpush.msra.mxu0 %v2818
        %3134 = vmatpush.msra.mxu0 %v2812
        %3135 = vmatpush.msra.mxu0 %v2806
        %3136 = vmatpush.msra.mxu0 %v2800
        %3137 = vmatpush.msra.mxu0 %v2794
        %3138 = vmatpush.msra.mxu0 %v2788
        %3139 = vmatpush.msra.mxu0 %v2782
        %3140 = vmatpush.msra.mxu0 %v2776
        %3141 = vmatpush.msra.mxu0 %v2770
        %3142 = vmatpush.msra.mxu0 %v2764
        %3143 = vmatpush.msra.mxu0 %v2758
        %3144 = vmatpush.msra.mxu0 %v2752
        %3145 = vmatpush.msra.mxu0 %v2746
        %3146 = vmatpush.msra.mxu0 %v2740
        %3147 = vmatpush.msra.mxu0 %v2734
        %3148 = vmatpush.msra.mxu0 %v2728
        %3149 = vmatmul.f32.gmra.mxu0 %v2690
        %v3150 = vpop.f32.mrf.mxu0
        %v3151 = vadd.f32 0.0, %v3150
        %3152 = vmatmul.f32.gmra.mxu0 %v2693
        %v3153 = vpop.f32.mrf.mxu0
        %v3154 = vadd.f32 0.0, %v3153
        %3155 = vmatmul.f32.gmra.mxu0 %v2696
        %v3156 = vpop.f32.mrf.mxu0
        %v3157 = vadd.f32 0.0, %v3156
        %3158 = vdwg.mxu0
        %3159 = vmatpush.msra.mxu0 0.0
        %3160 = vmatpush.msra.mxu0 0.0
        %3161 = vmatpush.msra.mxu0 0.0
        %3162 = vmatpush.msra.mxu0 %v2920
        %3163 = vmatpush.msra.mxu0 %v2890
        %3164 = vmatpush.msra.mxu0 %v2884
        %3165 = vmatpush.msra.mxu0 %v2878
        %3166 = vmatpush.msra.mxu0 %v2872
        %3167 = vmatpush.msra.mxu0 %v2866
        %3168 = vmatpush.msra.mxu0 %v2860
        %3169 = vmatpush.msra.mxu0 %v2854
        %3170 = vmatpush.msra.mxu0 %v2848
        %3171 = vmatpush.msra.mxu0 %v2842
        %3172 = vmatpush.msra.mxu0 %v2836
        %3173 = vmatpush.msra.mxu0 %v2830
        %3174 = vmatpush.msra.mxu0 %v2824
        %3175 = vmatmul.f32.gmra.mxu0 %v2899
        %v3176 = vpop.f32.mrf.mxu0
        %v3177 = vadd.f32 %v3151, %v3176
        %3178 = vmatmul.f32.gmra.mxu0 %v2902
        %v3179 = vpop.f32.mrf.mxu0
        %v3180 = vadd.f32 %v3154, %v3179
        %3181 = vmatmul.f32.gmra.mxu0 %v2905
        %v3182 = vpop.f32.mrf.mxu0
        %v3183 = vadd.f32 %v3157, %v3182
        %3184 = vdwg.mxu0
        %3185 = vmatpush.msra.mxu0 %v2819
        %3186 = vmatpush.msra.mxu0 %v2813
        %3187 = vmatpush.msra.mxu0 %v2807
        %3188 = vmatpush.msra.mxu0 %v2801
        %3189 = vmatpush.msra.mxu0 %v2795
        %3190 = vmatpush.msra.mxu0 %v2789
        %3191 = vmatpush.msra.mxu0 %v2783
        %3192 = vmatpush.msra.mxu0 %v2777
        %3193 = vmatpush.msra.mxu0 %v2771
        %3194 = vmatpush.msra.mxu0 %v2765
        %3195 = vmatpush.msra.mxu0 %v2759
        %3196 = vmatpush.msra.mxu0 %v2753
        %3197 = vmatpush.msra.mxu0 %v2747
        %3198 = vmatpush.msra.mxu0 %v2741
        %3199 = vmatpush.msra.mxu0 %v2735
        %3200 = vmatpush.msra.mxu0 %v2729
        %3201 = vmatmul.f32.gmra.mxu0 %v2690
        %v3202 = vpop.f32.mrf.mxu0
        %v3203 = vadd.f32 0.0, %v3202
        %3204 = vmatmul.f32.gmra.mxu0 %v2693
        %v3205 = vpop.f32.mrf.mxu0
        %v3206 = vadd.f32 0.0, %v3205
        %3207 = vmatmul.f32.gmra.mxu0 %v2696
        %v3208 = vpop.f32.mrf.mxu0
        %v3209 = vadd.f32 0.0, %v3208
        %3210 = vdwg.mxu0
        %3211 = vmatpush.msra.mxu0 0.0
        %3212 = vmatpush.msra.mxu0 0.0
        %3213 = vmatpush.msra.mxu0 0.0
        %3214 = vmatpush.msra.mxu0 %v2923
        %3215 = vmatpush.msra.mxu0 %v2891
        %3216 = vmatpush.msra.mxu0 %v2885
        %3217 = vmatpush.msra.mxu0 %v2879
        %3218 = vmatpush.msra.mxu0 %v2873
        %3219 = vmatpush.msra.mxu0 %v2867
        %3220 = vmatpush.msra.mxu0 %v2861
        %3221 = vmatpush.msra.mxu0 %v2855
        %3222 = vmatpush.msra.mxu0 %v2849
        %3223 = vmatpush.msra.mxu0 %v2843
        %3224 = vmatpush.msra.mxu0 %v2837
        %3225 = vmatpush.msra.mxu0 %v2831
        %3226 = vmatpush.msra.mxu0 %v2825
        %3227 = vmatmul.f32.gmra.mxu0 %v2899
        %v3228 = vpop.f32.mrf.mxu0
        %v3229 = vadd.f32 %v3203, %v3228
        %3230 = vmatmul.f32.gmra.mxu0 %v2902
        %v3231 = vpop.f32.mrf.mxu0
        %v3232 = vadd.f32 %v3206, %v3231
        %3233 = vmatmul.f32.gmra.mxu0 %v2905
        %v3234 = vpop.f32.mrf.mxu0
        %v3235 = vadd.f32 %v3209, %v3234
        %3236 = vdwg.mxu0
        %v3237 = vld [vmem:[%s5] sm:$0xff]
        %v3238 = vld [vmem:[%s5 + $0x8] sm:$0xff]
        %v3239 = vld [vmem:[%s5 + $0x10] sm:$0xff]
        %v3240 = vld [vmem:[%s5 + $0x18] sm:$0xff]
        %v3241 = vld [vmem:[%s5 + $0x20] sm:$0xff]
        %v3242 = vld [vmem:[%s5 + $0x28] sm:$0xff]
        %v3243 = vld [vmem:[%s5 + $0x30] sm:$0xff]
        %v3244 = vld [vmem:[%s5 + $0x38] sm:$0xff]
        %v3245 = vld [vmem:[%s5 + $0x40] sm:$0xff]
        %v3246 = vld [vmem:[%s5 + $0x48] sm:$0xff]
        %v3247 = vld [vmem:[%s5 + $0x50] sm:$0xff]
        %v3248 = vld [vmem:[%s5 + $0x58] sm:$0xff]
        %v3249 = vld [vmem:[%s5 + $0x60] sm:$0x1f]
        %v3250 = vld [vmem:[%s5 + $0x68] sm:$0x1f]
        %v3251 = vld [vmem:[%s5 + $0x70] sm:$0x1f]
        %v3252 = vld [vmem:[%s5 + $0x78] sm:$0x1f]
        %v3253 = vld [vmem:[%s5 + $0x80] sm:$0x1f]
        %v3254 = vld [vmem:[%s5 + $0x88] sm:$0x1f]
        %v3255 = vmul.f32 %v2969, %v3237
        %v3256 = vmul.f32 %v3021, %v3238
        %v3257 = vmul.f32 %v3073, %v3239
        %v3258 = vmul.f32 %v3125, %v3240
        %v3259 = vmul.f32 %v3177, %v3241
        %v3260 = vmul.f32 %v3229, %v3242
        %v3261 = vmul.f32 %v2972, %v3243
        %v3262 = vmul.f32 %v3024, %v3244
        %v3263 = vmul.f32 %v3076, %v3245
        %v3264 = vmul.f32 %v3128, %v3246
        %v3265 = vmul.f32 %v3180, %v3247
        %v3266 = vmul.f32 %v3232, %v3248
        %v3267 = vmul.f32 %v2975, %v3249
        %v3268 = vmul.f32 %v3027, %v3250
        %v3269 = vmul.f32 %v3079, %v3251
        %v3270 = vmul.f32 %v3131, %v3252
        %v3271 = vmul.f32 %v3183, %v3253
        %v3272 = vmul.f32 %v3235, %v3254
        %v3273 = vadd.f32 %v3255, %v3261
        %v3274 = vsel %vm2515, %v3267, 0.0
        %v3275 = vadd.f32 %v3273, %v3274
        %v3276 = vrot.slane %v3275, 4
        %v3277 = vadd.f32 %v3275, %v3276
        %v3278 = vrot.slane %v3277, 2
        %v3279 = vadd.f32 %v3277, %v3278
        %v3280 = vrot.slane %v3279, 1
        %v3281 = vadd.f32 %v3279, %v3280
        %v3282 = vadd.f32 %v3256, %v3262
        %v3283 = vsel %vm2515, %v3268, 0.0
        %v3284 = vadd.f32 %v3282, %v3283
        %v3285 = vrot.slane %v3284, 4
        %v3286 = vadd.f32 %v3284, %v3285
        %v3287 = vrot.slane %v3286, 2
        %v3288 = vadd.f32 %v3286, %v3287
        %v3289 = vrot.slane %v3288, 1
        %v3290 = vadd.f32 %v3288, %v3289
        %v3291 = vadd.f32 %v3257, %v3263
        %v3292 = vsel %vm2515, %v3269, 0.0
        %v3293 = vadd.f32 %v3291, %v3292
        %v3294 = vrot.slane %v3293, 4
        %v3295 = vadd.f32 %v3293, %v3294
        %v3296 = vrot.slane %v3295, 2
        %v3297 = vadd.f32 %v3295, %v3296
        %v3298 = vrot.slane %v3297, 1
        %v3299 = vadd.f32 %v3297, %v3298
        %v3300 = vadd.f32 %v3258, %v3264
        %v3301 = vsel %vm2515, %v3270, 0.0
        %v3302 = vadd.f32 %v3300, %v3301
        %v3303 = vrot.slane %v3302, 4
        %v3304 = vadd.f32 %v3302, %v3303
        %v3305 = vrot.slane %v3304, 2
        %v3306 = vadd.f32 %v3304, %v3305
        %v3307 = vrot.slane %v3306, 1
        %v3308 = vadd.f32 %v3306, %v3307
        %v3309 = vadd.f32 %v3259, %v3265
        %v3310 = vsel %vm2515, %v3271, 0.0
        %v3311 = vadd.f32 %v3309, %v3310
        %v3312 = vrot.slane %v3311, 4
        %v3313 = vadd.f32 %v3311, %v3312
        %v3314 = vrot.slane %v3313, 2
        %v3315 = vadd.f32 %v3313, %v3314
        %v3316 = vrot.slane %v3315, 1
        %v3317 = vadd.f32 %v3315, %v3316
        %vm3318 = vcmask 261120
        %v3319 = vsel %vm3318, %v3260, 0.0
        %v3320 = vsel %vm3318, %v3266, 0.0
        %v3321 = vadd.f32 %v3319, %v3320
        %vm3322 = vcmask 258048
        %v3323 = vsel %vm3322, %v3272, 0.0
        %v3324 = vadd.f32 %v3321, %v3323
        %v3325 = vrot.slane %v3324, 4
        %v3326 = vadd.f32 %v3324, %v3325
        %v3327 = vrot.slane %v3326, 2
        %v3328 = vadd.f32 %v3326, %v3327
        %v3329 = vrot.slane %v3328, 1
        %v3330 = vadd.f32 %v3328, %v3329
        %v3331 = vld [vmem:[%s6] sm:$0xff]
        %v3332 = vld [vmem:[%s6 + $0x8] sm:$0xff]
        %v3333 = vld [vmem:[%s6 + $0x10] sm:$0xff]
        %v3334 = vld [vmem:[%s6 + $0x18] sm:$0xff]
        %v3335 = vld [vmem:[%s6 + $0x20] sm:$0xff]
        %v3336 = vld [vmem:[%s6 + $0x28] sm:$0xff]
        %v3337 = vld [vmem:[%s6 + $0x30] sm:$0xff]
        %v3338 = vld [vmem:[%s6 + $0x38] sm:$0xff]
        %v3339 = vld [vmem:[%s6 + $0x40] sm:$0xff]
        %v3340 = vld [vmem:[%s6 + $0x48] sm:$0xff]
        %v3341 = vld [vmem:[%s6 + $0x50] sm:$0xff]
        %v3342 = vld [vmem:[%s6 + $0x58] sm:$0xff]
        %v3343 = vld [vmem:[%s6 + $0x60] sm:$0xff]
        %v3344 = vld [vmem:[%s6 + $0x68] sm:$0xff]
        %v3345 = vld [vmem:[%s6 + $0x70] sm:$0xff]
        %v3346 = vld [vmem:[%s6 + $0x78] sm:$0xff]
        %v3347 = vld [vmem:[%s6 + $0x80] sm:$0xff]
        %v3348 = vld [vmem:[%s6 + $0x88] sm:$0xff]
        %v3349 = vld [vmem:[%s6 + $0x90] sm:$0xff]
        %v3350 = vld [vmem:[%s6 + $0x98] sm:$0xff]
        %v3351 = vld [vmem:[%s6 + $0xa0] sm:$0xff]
        %v3352 = vld [vmem:[%s6 + $0xa8] sm:$0xff]
        %v3353 = vld [vmem:[%s6 + $0xb0] sm:$0xff]
        %v3354 = vld [vmem:[%s6 + $0xb8] sm:$0xff]
        %v3355 = vld [vmem:[%s6 + $0xc0] sm:$0xff]
        %v3356 = vld [vmem:[%s6 + $0xc8] sm:$0xff]
        %v3357 = vld [vmem:[%s6 + $0xd0] sm:$0xff]
        %v3358 = vld [vmem:[%s6 + $0xd8] sm:$0xff]
        %v3359 = vld [vmem:[%s6 + $0xe0] sm:$0xff]
        %v3360 = vld [vmem:[%s6 + $0xe8] sm:$0xff]
        %v3361 = vld [vmem:[%s6 + $0xf0] sm:$0xff]
        %v3362 = vld [vmem:[%s6 + $0xf8] sm:$0xff]
        %v3363 = vld [vmem:[%s6 + $0x100] sm:$0xff]
        %v3364 = vld [vmem:[%s6 + $0x108] sm:$0xff]
        %v3365 = vld [vmem:[%s6 + $0x110] sm:$0xff]
        %v3366 = vld [vmem:[%s6 + $0x118] sm:$0xff]
        %v3367 = vld [vmem:[%s6 + $0x120] sm:$0xff]
        %v3368 = vld [vmem:[%s6 + $0x128] sm:$0xff]
        %v3369 = vld [vmem:[%s6 + $0x130] sm:$0xff]
        %v3370 = vld [vmem:[%s6 + $0x138] sm:$0xff]
        %v3371 = vld [vmem:[%s6 + $0x140] sm:$0xff]
        %v3372 = vld [vmem:[%s6 + $0x148] sm:$0xff]
        %v3373 = vld [vmem:[%s6 + $0x150] sm:$0xff]
        %v3374 = vld [vmem:[%s6 + $0x158] sm:$0xff]
        %v3375 = vld [vmem:[%s6 + $0x160] sm:$0xff]
        %v3376 = vld [vmem:[%s6 + $0x168] sm:$0xff]
        %v3377 = vld [vmem:[%s6 + $0x170] sm:$0xff]
        %v3378 = vld [vmem:[%s6 + $0x178] sm:$0xff]
        %v3379 = vld [vmem:[%s6 + $0x180] sm:$0xff]
        %v3380 = vld [vmem:[%s6 + $0x188] sm:$0xff]
        %v3381 = vld [vmem:[%s6 + $0x190] sm:$0xff]
        %v3382 = vld [vmem:[%s6 + $0x198] sm:$0xff]
        %v3383 = vld [vmem:[%s6 + $0x1a0] sm:$0xff]
        %v3384 = vld [vmem:[%s6 + $0x1a8] sm:$0xff]
        %v3385 = vld [vmem:[%s6 + $0x1b0] sm:$0xff]
        %v3386 = vld [vmem:[%s6 + $0x1b8] sm:$0xff]
        %v3387 = vld [vmem:[%s6 + $0x1c0] sm:$0xff]
        %v3388 = vld [vmem:[%s6 + $0x1c8] sm:$0xff]
        %v3389 = vld [vmem:[%s6 + $0x1d0] sm:$0xff]
        %v3390 = vld [vmem:[%s6 + $0x1d8] sm:$0xff]
        %v3391 = vld [vmem:[%s6 + $0x1e0] sm:$0xff]
        %v3392 = vld [vmem:[%s6 + $0x1e8] sm:$0xff]
        %v3393 = vld [vmem:[%s6 + $0x1f0] sm:$0xff]
        %v3394 = vld [vmem:[%s6 + $0x1f8] sm:$0xff]
        %v3395 = vld [vmem:[%s6 + $0x200] sm:$0xff]
        %v3396 = vld [vmem:[%s6 + $0x208] sm:$0xff]
        %v3397 = vld [vmem:[%s6 + $0x210] sm:$0xff]
        %v3398 = vld [vmem:[%s6 + $0x218] sm:$0xff]
        %v3399 = vld [vmem:[%s6 + $0x220] sm:$0xff]
        %v3400 = vld [vmem:[%s6 + $0x228] sm:$0xff]
        %v3401 = vld [vmem:[%s6 + $0x230] sm:$0xff]
        %v3402 = vld [vmem:[%s6 + $0x238] sm:$0xff]
        %v3403 = vld [vmem:[%s6 + $0x240] sm:$0xff]
        %v3404 = vld [vmem:[%s6 + $0x248] sm:$0xff]
        %v3405 = vld [vmem:[%s6 + $0x250] sm:$0xff]
        %v3406 = vld [vmem:[%s6 + $0x258] sm:$0xff]
        %v3407 = vld [vmem:[%s6 + $0x260] sm:$0xff]
        %v3408 = vld [vmem:[%s6 + $0x268] sm:$0xff]
        %v3409 = vld [vmem:[%s6 + $0x270] sm:$0xff]
        %v3410 = vld [vmem:[%s6 + $0x278] sm:$0xff]
        %v3411 = vld [vmem:[%s6 + $0x280] sm:$0xff]
        %v3412 = vld [vmem:[%s6 + $0x288] sm:$0xff]
        %v3413 = vld [vmem:[%s6 + $0x290] sm:$0xff]
        %v3414 = vld [vmem:[%s6 + $0x298] sm:$0xff]
        %v3415 = vld [vmem:[%s7] sm:$0x1]
        %v3417 = vsel %vm3318, %v3330, 0
        %3419 = vmatpush.msra.mxu0 %v3346
        %3420 = vmatpush.msra.mxu0 %v3345
        %3421 = vmatpush.msra.mxu0 %v3344
        %3422 = vmatpush.msra.mxu0 %v3343
        %3423 = vmatpush.msra.mxu0 %v3342
        %3424 = vmatpush.msra.mxu0 %v3341
        %3425 = vmatpush.msra.mxu0 %v3340
        %3426 = vmatpush.msra.mxu0 %v3339
        %3427 = vmatpush.msra.mxu0 %v3338
        %3428 = vmatpush.msra.mxu0 %v3337
        %3429 = vmatpush.msra.mxu0 %v3336
        %3430 = vmatpush.msra.mxu0 %v3335
        %3431 = vmatpush.msra.mxu0 %v3334
        %3432 = vmatpush.msra.mxu0 %v3333
        %3433 = vmatpush.msra.mxu0 %v3332
        %3434 = vmatpush.msra.mxu0 %v3331
        %3435 = vmatmul.f32.gmra.mxu0 %v3281
        %v3436 = vpop.f32.mrf.mxu0
        %v3437 = vadd.f32 %v3415, %v3436
        %3438 = vdwg.mxu0
        %3439 = vmatpush.msra.mxu0 %v3362
        %3440 = vmatpush.msra.mxu0 %v3361
        %3441 = vmatpush.msra.mxu0 %v3360
        %3442 = vmatpush.msra.mxu0 %v3359
        %3443 = vmatpush.msra.mxu0 %v3358
        %3444 = vmatpush.msra.mxu0 %v3357
        %3445 = vmatpush.msra.mxu0 %v3356
        %3446 = vmatpush.msra.mxu0 %v3355
        %3447 = vmatpush.msra.mxu0 %v3354
        %3448 = vmatpush.msra.mxu0 %v3353
        %3449 = vmatpush.msra.mxu0 %v3352
        %3450 = vmatpush.msra.mxu0 %v3351
        %3451 = vmatpush.msra.mxu0 %v3350
        %3452 = vmatpush.msra.mxu0 %v3349
        %3453 = vmatpush.msra.mxu0 %v3348
        %3454 = vmatpush.msra.mxu0 %v3347
        %3455 = vmatmul.f32.gmra.mxu0 %v3290
        %v3456 = vpop.f32.mrf.mxu0
        %v3457 = vadd.f32 %v3437, %v3456
        %3458 = vdwg.mxu0
        %3459 = vmatpush.msra.mxu0 %v3378
        %3460 = vmatpush.msra.mxu0 %v3377
        %3461 = vmatpush.msra.mxu0 %v3376
        %3462 = vmatpush.msra.mxu0 %v3375
        %3463 = vmatpush.msra.mxu0 %v3374
        %3464 = vmatpush.msra.mxu0 %v3373
        %3465 = vmatpush.msra.mxu0 %v3372
        %3466 = vmatpush.msra.mxu0 %v3371
        %3467 = vmatpush.msra.mxu0 %v3370
        %3468 = vmatpush.msra.mxu0 %v3369
        %3469 = vmatpush.msra.mxu0 %v3368
        %3470 = vmatpush.msra.mxu0 %v3367
        %3471 = vmatpush.msra.mxu0 %v3366
        %3472 = vmatpush.msra.mxu0 %v3365
        %3473 = vmatpush.msra.mxu0 %v3364
        %3474 = vmatpush.msra.mxu0 %v3363
        %3475 = vmatmul.f32.gmra.mxu0 %v3299
        %v3476 = vpop.f32.mrf.mxu0
        %v3477 = vadd.f32 %v3457, %v3476
        %3478 = vdwg.mxu0
        %3479 = vmatpush.msra.mxu0 %v3394
        %3480 = vmatpush.msra.mxu0 %v3393
        %3481 = vmatpush.msra.mxu0 %v3392
        %3482 = vmatpush.msra.mxu0 %v3391
        %3483 = vmatpush.msra.mxu0 %v3390
        %3484 = vmatpush.msra.mxu0 %v3389
        %3485 = vmatpush.msra.mxu0 %v3388
        %3486 = vmatpush.msra.mxu0 %v3387
        %3487 = vmatpush.msra.mxu0 %v3386
        %3488 = vmatpush.msra.mxu0 %v3385
        %3489 = vmatpush.msra.mxu0 %v3384
        %3490 = vmatpush.msra.mxu0 %v3383
        %3491 = vmatpush.msra.mxu0 %v3382
        %3492 = vmatpush.msra.mxu0 %v3381
        %3493 = vmatpush.msra.mxu0 %v3380
        %3494 = vmatpush.msra.mxu0 %v3379
        %3495 = vmatmul.f32.gmra.mxu0 %v3308
        %v3496 = vpop.f32.mrf.mxu0
        %v3497 = vadd.f32 %v3477, %v3496
        %3498 = vdwg.mxu0
        %3499 = vmatpush.msra.mxu0 %v3410
        %3500 = vmatpush.msra.mxu0 %v3409
        %3501 = vmatpush.msra.mxu0 %v3408
        %3502 = vmatpush.msra.mxu0 %v3407
        %3503 = vmatpush.msra.mxu0 %v3406
        %3504 = vmatpush.msra.mxu0 %v3405
        %3505 = vmatpush.msra.mxu0 %v3404
        %3506 = vmatpush.msra.mxu0 %v3403
        %3507 = vmatpush.msra.mxu0 %v3402
        %3508 = vmatpush.msra.mxu0 %v3401
        %3509 = vmatpush.msra.mxu0 %v3400
        %3510 = vmatpush.msra.mxu0 %v3399
        %3511 = vmatpush.msra.mxu0 %v3398
        %3512 = vmatpush.msra.mxu0 %v3397
        %3513 = vmatpush.msra.mxu0 %v3396
        %3514 = vmatpush.msra.mxu0 %v3395
        %3515 = vmatmul.f32.gmra.mxu0 %v3317
        %v3516 = vpop.f32.mrf.mxu0
        %v3517 = vadd.f32 %v3497, %v3516
        %3518 = vdwg.mxu0
        %3519 = vmatpush.msra.mxu0 0.0
        %3520 = vmatpush.msra.mxu0 0.0
        %3521 = vmatpush.msra.mxu0 0.0
        %3522 = vmatpush.msra.mxu0 0.0
        %3523 = vmatpush.msra.mxu0 0.0
        %3524 = vmatpush.msra.mxu0 0.0
        %3525 = vmatpush.msra.mxu0 0.0
        %3526 = vmatpush.msra.mxu0 0.0
        %3527 = vmatpush.msra.mxu0 0.0
        %3528 = vmatpush.msra.mxu0 0.0
        %3529 = vmatpush.msra.mxu0 0.0
        %3530 = vmatpush.msra.mxu0 0.0
        %3531 = vmatpush.msra.mxu0 %v3414
        %3532 = vmatpush.msra.mxu0 %v3413
        %3533 = vmatpush.msra.mxu0 %v3412
        %3534 = vmatpush.msra.mxu0 %v3411
        %3535 = vmatmul.f32.gmra.mxu0 %v3417
        %v3536 = vpop.f32.mrf.mxu0
        %v3537 = vadd.f32 %v3517, %v3536
        %3538 = vdwg.mxu0
        %v3539 = vmax.f32 %v3537, 0.0
        %v3540 = vld [vmem:[%s8] sm:$0xff]
        %v3541 = vld [vmem:[%s8 + $0x8] sm:$0xff]
        %v3542 = vld [vmem:[%s8 + $0x10] sm:$0xff]
        %v3543 = vld [vmem:[%s8 + $0x18] sm:$0xff]
        %v3544 = vld [vmem:[%s9] sm:$0x1]
        %v3546 = vsel %vm3318, %v3539, 0
        %3548 = vmatpush.msra.mxu0 0.0
        %3549 = vmatpush.msra.mxu0 0.0
        %3550 = vmatpush.msra.mxu0 0.0
        %3551 = vmatpush.msra.mxu0 0.0
        %3552 = vmatpush.msra.mxu0 0.0
        %3553 = vmatpush.msra.mxu0 0.0
        %3554 = vmatpush.msra.mxu0 0.0
        %3555 = vmatpush.msra.mxu0 0.0
        %3556 = vmatpush.msra.mxu0 0.0
        %3557 = vmatpush.msra.mxu0 0.0
        %3558 = vmatpush.msra.mxu0 0.0
        %3559 = vmatpush.msra.mxu0 0.0
        %3560 = vmatpush.msra.mxu0 %v3543
        %3561 = vmatpush.msra.mxu0 %v3542
        %3562 = vmatpush.msra.mxu0 %v3541
        %3563 = vmatpush.msra.mxu0 %v3540
        %3564 = vmatmul.f32.gmra.mxu0 %v3546
        %v3565 = vpop.f32.mrf.mxu0
        %v3566 = vadd.f32 %v3544, %v3565
        %3567 = vdwg.mxu0
        %vm3568 = vcmask 24576
        %3569 = vst.msk [vmem:[%s351] sm:$0x1] %vm3568, %v3566
        %s3570 = sand.u32 %s247, 1
        %s3571 = scalar_lea.sflag [#allocation5], %s3570
        %s3572 = sand.u32 %s247, 1
        %s3573 = scalar_lea.vmem [#allocation4], %s3572
        // Predicated region
        $region61: #{net_forward.1} parent=59 // pred_check
          %p3574 = pneg %p257
        $region62: #{net_forward.1} parent=59 // pred_check_branch
          %3576 = sbr.rel (%p3574) target = $region64
        $region63: #{net_forward.1} parent=59 // pred_region
          %3578 = vsyncadd %s3571, 0
          %s3579 = scalar_lea.hbm %s10, %s24
          %s3581 = sshll.u32 %s3573, 4
          %s3582 = int_to_ptr.vmem [resolvable:$true] %s3581
          %s3583 = sshll.u32 %s3579, 4
          %s3584 = int_to_ptr.hbm [resolvable:$true] %s3583
          %3586 = dma.vmem_to_hbm [thread:$0]  %s3582, 16, %s3584, %s3571
        $region64: #{net_forward.1} parent=59 // pred_fallthru
          _
      $region60: #{net_forward.1} parent=5 // pred_fallthru
        _
      %p3587 = scmp.le.s32.totalorder 2, %s19
      // Predicated region
      $region65: #{net_forward.1} parent=5 // pred_check
        %p3588 = pneg %p3587
      $region66: #{net_forward.1} parent=5 // pred_check_branch
        %3590 = sbr.rel (%p3588) target = $region68
      $region67: #{net_forward.1} parent=5 // pred_region
        %s3591 = ssub.s32 %s19, 2
        // Predicated region
        $region69: #{net_forward.1} parent=67 // pred_check
          %p3592 = pneg %p263
        $region70: #{net_forward.1} parent=67 // pred_check_branch
          %3594 = sbr.rel (%p3592) target = $region72
        $region71: #{net_forward.1} parent=67 // pred_region
          %s3595 = sand.u32 %s248, 1
          %s3596 = scalar_lea.sflag [#allocation5], %s3595
          %s3597 = sand.u32 %s248, 1
          %s3598 = scalar_lea.vmem [#allocation4], %s3597
          %3600 = dma.done %s3596, 16
        $region72: #{net_forward.1} parent=67 // pred_fallthru
          _
      $region68: #{net_forward.1} parent=5 // pred_fallthru
        _
    $region6: #{net_forward.1} parent=1 // loop_footer
      %s23 = sadd.s32 1, %s19
    $region7: #{net_forward.1} parent=1 // loop_footer_branch
      %18 = sbr.rel target = $region3
    $region8: #{net_forward.1} parent=1 // loop_exit
      _
    %3601 = vsyncpa [#allocation5], 1
    %s3602 = scalar_lea.sflag [#allocation5], 1
    %3603 = vsyncpa %s3602, 1

</llo_original>
